<compile_context>
chip_gen: v7x
topology: tpu7x:2x2x1
jax: 0.10.0
libtpu: 0.0.40
codegen_flags: <defaults>
</compile_context>

<pallas_src>
import functools
import math

import numpy as np
import jax
import jax.numpy as jnp
from jax import lax
from jax.experimental import pallas as pl
from jax.experimental.pallas import tpu as pltpu

_GN_EPS = 1e-5
_SQRT1_2 = 0.7071067811865476


def _gelu(v):
    # exact (erf) GELU == nn.GELU(approximate='none') / F.gelu default
    return 0.5 * v * (1.0 + lax.erf(v * _SQRT1_2))


def _group_norm(y, gamma, beta):
    # GroupNorm(num_groups=1, C): normalize jointly over (C, S), per-channel affine.
    c, s = y.shape
    inv_n = 1.0 / float(c * s)
    mu = jnp.sum(jnp.sum(y, axis=1, keepdims=True), axis=0, keepdims=True) * inv_n
    d = y - mu
    var = jnp.sum(jnp.sum(d * d, axis=1, keepdims=True), axis=0, keepdims=True) * inv_n
    return d * lax.rsqrt(var + _GN_EPS) * gamma + beta


def _conv3x3(x, w_stacked, width, m_not_first, m_not_last):
    """3x3 'same' conv (zero pad, no bias) on a (C_in, S) tile, S = H*W row-major.

    w_stacked: (C_out, 9*C_in), tap-major column blocks; block t = ky*3+kx equals
    torch_weight[:, :, ky, kx]  (i.e. torch_w.permute(0, 2, 3, 1).reshape(Co, 9*Ci)).
    """
    c, s = x.shape
    cols = []
    for oy in (-1, 0, 1):
        for ox in (-1, 0, 1):
            d = oy * width + ox                 # flattened spatial offset
            if d > 0:
                sh = jnp.concatenate([x[:, d:], jnp.zeros((c, d), x.dtype)], axis=1)
            elif d < 0:
                sh = jnp.concatenate([jnp.zeros((c, -d), x.dtype), x[:, :d]], axis=1)
            else:
                sh = x
            # zero out reads that crossed a row boundary (left/right image edges)
            if ox == 1:
                sh = sh * m_not_last
            elif ox == -1:
                sh = sh * m_not_first
            cols.append(sh)
    patches = jnp.concatenate(cols, axis=0)     # (9*C_in, S) im2col
    return jnp.dot(w_stacked, patches, preferred_element_type=jnp.float32)


def _up_kernel(x_ref, skip_ref, t_ref, up_ref, mnf_ref, mnl_ref,
               w1a_ref, g1a_ref, b1a_ref, w1b_ref, g1b_ref, b1b_ref,
               w2a_ref, g2a_ref, b2a_ref, w2b_ref, g2b_ref, b2b_ref,
               we_ref, be_ref, o_ref, *, width):
    m_nf = mnf_ref[...]
    m_nl = mnl_ref[...]

    # --- bilinear 2x upsample (align_corners=True) as a single matmul ---
    up = jnp.dot(x_ref[...], up_ref[...], preferred_element_type=jnp.float32)

    # --- channel concat: [skip, upsampled x] ---
    xc = jnp.concatenate([skip_ref[...], up], axis=0)          # (C_in, S)

    # --- DoubleConv #1 (residual) ---
    h = _conv3x3(xc, w1a_ref[...], width, m_nf, m_nl)
    h = _gelu(_group_norm(h, g1a_ref[...], b1a_ref[...]))
    h = _conv3x3(h, w1b_ref[...], width, m_nf, m_nl)
    h = _group_norm(h, g1b_ref[...], b1b_ref[...])
    y = _gelu(xc + h)

    # --- DoubleConv #2 (in -> in//2 -> out) ---
    h = _conv3x3(y, w2a_ref[...], width, m_nf, m_nl)
    h = _gelu(_group_norm(h, g2a_ref[...], b2a_ref[...]))
    h = _conv3x3(h, w2b_ref[...], width, m_nf, m_nl)
    h = _group_norm(h, g2b_ref[...], b2b_ref[...])

    # --- time embedding: SiLU -> Linear, broadcast over spatial ---
    t = t_ref[...]                                             # (emb_dim, 1)
    t = t * (1.0 / (1.0 + jnp.exp(-t)))
    emb = jnp.dot(we_ref[...], t,
                  preferred_element_type=jnp.float32) + be_ref[...]   # (C_out, 1)

    o_ref[...] = h + emb


def _bilinear_matrix(n_in, n_out):
    # 1-D align_corners=True linear interpolation matrix, shape (n_out, n_in).
    if n_in == 1:
        return np.ones((n_out, 1), np.float64)
    src = np.arange(n_out, dtype=np.float64) * (n_in - 1) / (n_out - 1)
    lo = np.minimum(np.floor(src).astype(np.int64), n_in - 2)
    w = src - lo
    r = np.zeros((n_out, n_in), np.float64)
    r[np.arange(n_out), lo] = 1.0 - w
    r[np.arange(n_out), lo + 1] = w
    return r


def _spatial_constants(h_in, w_in, h_out, w_out):
    rh = _bilinear_matrix(h_in, h_out)
    rw = _bilinear_matrix(w_in, w_out)
    m = np.kron(rh, rw)                                  # (S_out, S_in)
    up_mat = jnp.asarray(m.T, jnp.float32)               # (S_in, S_out)
    col = np.arange(h_out * w_out) % w_out
    m_nf = jnp.asarray((col != 0).astype(np.float32).reshape(1, -1))
    m_nl = jnp.asarray((col != (w_out - 1)).astype(np.float32).reshape(1, -1))
    return up_mat, m_nf, m_nl


def up_forward(x, skip_x, t, params):
    """x: (B, Cx, H, W), skip_x: (B, Cs, 2H, 2W), t: (B, emb_dim) -> (B, C_out, 2H, 2W)."""
    b, cx, h, w = x.shape
    _, cs, ho, wo = skip_x.shape
    emb_dim = t.shape[1]
    s_in, s_out = h * w, ho * wo
    c_out = params[-2].shape[0]                          # we: (c_out, emb_dim)

    up_mat, m_nf, m_nl = _spatial_constants(h, w, ho, wo)

    x_flat = x.reshape(b, cx, s_in)
    skip_flat = skip_x.reshape(b, cs, s_out)
    t_col = t.reshape(b, emb_dim, 1)

    consts = [up_mat, m_nf, m_nl] + list(params)

    def _const_spec(p):
        nd = p.ndim
        return pl.BlockSpec(p.shape, lambda i, nd=nd: (0,) * nd)

    in_specs = ([pl.BlockSpec((None, cx, s_in), lambda i: (i, 0, 0)),
                 pl.BlockSpec((None, cs, s_out), lambda i: (i, 0, 0)),
                 pl.BlockSpec((None, emb_dim, 1), lambda i: (i, 0, 0))]
                + [_const_spec(p) for p in consts])

    out = pl.pallas_call(
        functools.partial(_up_kernel, width=wo),
        out_shape=jax.ShapeDtypeStruct((b, c_out, s_out), jnp.float32),
        grid=(b,),
        in_specs=in_specs,
        out_specs=pl.BlockSpec((None, c_out, s_out), lambda i: (i, 0, 0)),
        compiler_params=pltpu.CompilerParams(
            dimension_semantics=("parallel",)),
    )(x_flat, skip_flat, t_col, *consts)

    return out.reshape(b, c_out, ho, wo)


def init_params(key, c_in, c_out, emb_dim):
    """Deterministic synthetic params in the kernel layout.

    Conv weights are stacked as (C_out, 9*C_in), tap-major (== torch conv weight
    .permute(0, 2, 3, 1).reshape(C_out, 9*C_in)); convs have no bias (matches
    bias=False); GroupNorm affine uses PyTorch defaults (gamma=1, beta=0);
    the embedding Linear keeps PyTorch's (out, in) weight layout.
    """
    c_mid = c_in // 2
    ks = jax.random.split(key, 6)

    def conv_w(k, co, ci):
        std = 1.0 / math.sqrt(9 * ci)
        return jax.random.normal(k, (co, 9 * ci), jnp.float32) * std

    w1a = conv_w(ks[0], c_in, c_in)
    w1b = conv_w(ks[1], c_in, c_in)
    w2a = conv_w(ks[2], c_mid, c_in)
    w2b = conv_w(ks[3], c_out, c_mid)

    ones = lambda c: jnp.ones((c, 1), jnp.float32)
    zeros = lambda c: jnp.zeros((c, 1), jnp.float32)
    g1a, b1a = ones(c_in), zeros(c_in)
    g1b, b1b = ones(c_in), zeros(c_in)
    g2a, b2a = ones(c_mid), zeros(c_mid)
    g2b, b2b = ones(c_out), zeros(c_out)

    we = jax.random.normal(ks[4], (c_out, emb_dim), jnp.float32) / math.sqrt(emb_dim)
    be = jax.random.normal(ks[5], (c_out, 1), jnp.float32) * 0.01

    return [w1a, g1a, b1a, w1b, g1b, b1b,
            w2a, g2a, b2a, w2b, g2b, b2b, we, be]


if __name__ == "__main__":
    B = 2
    C_X, C_SKIP = 4, 4                  # concat -> in_channels = 8
    C_IN, C_OUT = C_X + C_SKIP, 8
    EMB = 32
    H = W = 16                          # x spatial; skip / output spatial = 32x32

    key = jax.random.PRNGKey(0)
    kx, ksk, kt, kp = jax.random.split(key, 4)
    x = jax.random.normal(kx, (B, C_X, H, W), jnp.float32)
    skip = jax.random.normal(ksk, (B, C_SKIP, 2 * H, 2 * W), jnp.float32)
    t = jax.random.normal(kt, (B, EMB), jnp.float32)
    params = init_params(kp, C_IN, C_OUT, EMB)

    out = up_forward(x, skip, t, params)
    out = jax.block_until_ready(out)
    assert out.shape == (B, C_OUT, 2 * H, 2 * W)
    assert bool(jnp.all(jnp.isfinite(out)))
    print("KERNEL_OK")
</pallas_src>

<mosaic_0001>
module attributes {stable_mosaic.version = 11 : i64} {
  func.func @_up_kernel(%arg0: i32, %arg1: memref<1x4x256xf32, #tpu.memory_space<vmem>>, %arg2: memref<1x4x1024xf32, #tpu.memory_space<vmem>>, %arg3: memref<1x32x1xf32, #tpu.memory_space<vmem>>, %arg4: memref<256x1024xf32, #tpu.memory_space<vmem>>, %arg5: memref<1x1024xf32, #tpu.memory_space<vmem>>, %arg6: memref<1x1024xf32, #tpu.memory_space<vmem>>, %arg7: memref<8x72xf32, #tpu.memory_space<vmem>>, %arg8: memref<8x1xf32, #tpu.memory_space<vmem>>, %arg9: memref<8x1xf32, #tpu.memory_space<vmem>>, %arg10: memref<8x72xf32, #tpu.memory_space<vmem>>, %arg11: memref<8x1xf32, #tpu.memory_space<vmem>>, %arg12: memref<8x1xf32, #tpu.memory_space<vmem>>, %arg13: memref<4x72xf32, #tpu.memory_space<vmem>>, %arg14: memref<4x1xf32, #tpu.memory_space<vmem>>, %arg15: memref<4x1xf32, #tpu.memory_space<vmem>>, %arg16: memref<8x36xf32, #tpu.memory_space<vmem>>, %arg17: memref<8x1xf32, #tpu.memory_space<vmem>>, %arg18: memref<8x1xf32, #tpu.memory_space<vmem>>, %arg19: memref<8x32xf32, #tpu.memory_space<vmem>>, %arg20: memref<8x1xf32, #tpu.memory_space<vmem>>, %arg21: memref<1x8x1024xf32, #tpu.memory_space<vmem>>) attributes {dimension_semantics = [#tpu.dimension_semantics<parallel>], iteration_bounds = array<i64: 2>, scalar_prefetch = 0 : i64, scratch_operands = 0 : i64, tpu.core_type = #tpu.core_type<tc>, window_params = [{transform_indices = @transform_0, window_bounds = array<i64: 1, 4, 256>}, {transform_indices = @transform_1, window_bounds = array<i64: 1, 4, 1024>}, {transform_indices = @transform_2, window_bounds = array<i64: 1, 32, 1>}, {pipeline_mode = #tpu.pipeline_mode<synchronous>, transform_indices = @transform_3, window_bounds = array<i64: 256, 1024>}, {pipeline_mode = #tpu.pipeline_mode<synchronous>, transform_indices = @transform_4, window_bounds = array<i64: 1, 1024>}, {pipeline_mode = #tpu.pipeline_mode<synchronous>, transform_indices = @transform_5, window_bounds = array<i64: 1, 1024>}, {pipeline_mode = #tpu.pipeline_mode<synchronous>, transform_indices = @transform_6, window_bounds = array<i64: 8, 72>}, {pipeline_mode = #tpu.pipeline_mode<synchronous>, transform_indices = @transform_7, window_bounds = array<i64: 8, 1>}, {pipeline_mode = #tpu.pipeline_mode<synchronous>, transform_indices = @transform_8, window_bounds = array<i64: 8, 1>}, {pipeline_mode = #tpu.pipeline_mode<synchronous>, transform_indices = @transform_9, window_bounds = array<i64: 8, 72>}, {pipeline_mode = #tpu.pipeline_mode<synchronous>, transform_indices = @transform_10, window_bounds = array<i64: 8, 1>}, {pipeline_mode = #tpu.pipeline_mode<synchronous>, transform_indices = @transform_11, window_bounds = array<i64: 8, 1>}, {pipeline_mode = #tpu.pipeline_mode<synchronous>, transform_indices = @transform_12, window_bounds = array<i64: 4, 72>}, {pipeline_mode = #tpu.pipeline_mode<synchronous>, transform_indices = @transform_13, window_bounds = array<i64: 4, 1>}, {pipeline_mode = #tpu.pipeline_mode<synchronous>, transform_indices = @transform_14, window_bounds = array<i64: 4, 1>}, {pipeline_mode = #tpu.pipeline_mode<synchronous>, transform_indices = @transform_15, window_bounds = array<i64: 8, 36>}, {pipeline_mode = #tpu.pipeline_mode<synchronous>, transform_indices = @transform_16, window_bounds = array<i64: 8, 1>}, {pipeline_mode = #tpu.pipeline_mode<synchronous>, transform_indices = @transform_17, window_bounds = array<i64: 8, 1>}, {pipeline_mode = #tpu.pipeline_mode<synchronous>, transform_indices = @transform_18, window_bounds = array<i64: 8, 32>}, {pipeline_mode = #tpu.pipeline_mode<synchronous>, transform_indices = @transform_19, window_bounds = array<i64: 8, 1>}, {transform_indices = @transform_20, window_bounds = array<i64: 1, 8, 1024>}]} {
    %c0 = arith.constant 0 : index
    %c0_0 = arith.constant 0 : index
    %0 = vector.load %arg5[%c0, %c0_0] : memref<1x1024xf32, #tpu.memory_space<vmem>>, vector<1x1024xf32>
    %c0_1 = arith.constant 0 : index
    %c0_2 = arith.constant 0 : index
    %1 = vector.load %arg6[%c0_1, %c0_2] : memref<1x1024xf32, #tpu.memory_space<vmem>>, vector<1x1024xf32>
    %c0_3 = arith.constant 0 : index
    %c0_4 = arith.constant 0 : index
    %c0_5 = arith.constant 0 : index
    %2 = vector.load %arg1[%c0_3, %c0_4, %c0_5] : memref<1x4x256xf32, #tpu.memory_space<vmem>>, vector<1x4x256xf32>
    %3 = vector.shape_cast %2 : vector<1x4x256xf32> to vector<4x256xf32>
    %c0_6 = arith.constant 0 : index
    %c0_7 = arith.constant 0 : index
    %4 = vector.load %arg4[%c0_6, %c0_7] : memref<256x1024xf32, #tpu.memory_space<vmem>>, vector<256x1024xf32>
    %cst = arith.constant dense<0.000000e+00> : vector<4x1024xf32>
    %5 = tpu.matmul %3, %4, %cst {dimension_numbers = #tpu.dot_dimension_numbers<[1], [0], [0], [1], [0, 0, 1, 1], [], []>} : vector<4x256xf32>, vector<256x1024xf32>, vector<4x1024xf32> -> vector<4x1024xf32>
    %c0_8 = arith.constant 0 : index
    %c0_9 = arith.constant 0 : index
    %c0_10 = arith.constant 0 : index
    %6 = vector.load %arg2[%c0_8, %c0_9, %c0_10] : memref<1x4x1024xf32, #tpu.memory_space<vmem>>, vector<1x4x1024xf32>
    %7 = vector.shape_cast %6 : vector<1x4x1024xf32> to vector<4x1024xf32>
    %8 = tpu.concatenate %7, %5 in 0 : vector<4x1024xf32>, vector<4x1024xf32> -> vector<8x1024xf32>
    %c0_11 = arith.constant 0 : index
    %c0_12 = arith.constant 0 : index
    %9 = vector.load %arg7[%c0_11, %c0_12] : memref<8x72xf32, #tpu.memory_space<vmem>>, vector<8x72xf32>
    %cst_13 = arith.constant 0.000000e+00 : f32
    %10 = vector.broadcast %cst_13 : f32 to vector<8x33xf32>
    %11 = vector.extract_strided_slice %8 {offsets = [0, 0], sizes = [8, 991], strides = [1, 1]} : vector<8x1024xf32> to vector<8x991xf32>
    %12 = tpu.concatenate %10, %11 in 1 : vector<8x33xf32>, vector<8x991xf32> -> vector<8x1024xf32>
    %13 = vector.broadcast %0 : vector<1x1024xf32> to vector<8x1024xf32>
    %14 = arith.mulf %12, %13 : vector<8x1024xf32>
    %cst_14 = arith.constant 0.000000e+00 : f32
    %15 = vector.broadcast %cst_14 : f32 to vector<8x32xf32>
    %16 = vector.extract_strided_slice %8 {offsets = [0, 0], sizes = [8, 992], strides = [1, 1]} : vector<8x1024xf32> to vector<8x992xf32>
    %17 = tpu.concatenate %15, %16 in 1 : vector<8x32xf32>, vector<8x992xf32> -> vector<8x1024xf32>
    %cst_15 = arith.constant 0.000000e+00 : f32
    %18 = vector.broadcast %cst_15 : f32 to vector<8x31xf32>
    %19 = vector.extract_strided_slice %8 {offsets = [0, 0], sizes = [8, 993], strides = [1, 1]} : vector<8x1024xf32> to vector<8x993xf32>
    %20 = tpu.concatenate %18, %19 in 1 : vector<8x31xf32>, vector<8x993xf32> -> vector<8x1024xf32>
    %21 = vector.broadcast %1 : vector<1x1024xf32> to vector<8x1024xf32>
    %22 = arith.mulf %20, %21 : vector<8x1024xf32>
    %cst_16 = arith.constant 0.000000e+00 : f32
    %23 = vector.broadcast %cst_16 : f32 to vector<8x1xf32>
    %24 = vector.extract_strided_slice %8 {offsets = [0, 0], sizes = [8, 1023], strides = [1, 1]} : vector<8x1024xf32> to vector<8x1023xf32>
    %25 = tpu.concatenate %23, %24 in 1 : vector<8x1xf32>, vector<8x1023xf32> -> vector<8x1024xf32>
    %26 = vector.broadcast %0 : vector<1x1024xf32> to vector<8x1024xf32>
    %27 = arith.mulf %25, %26 : vector<8x1024xf32>
    %28 = vector.extract_strided_slice %8 {offsets = [0, 1], sizes = [8, 1023], strides = [1, 1]} : vector<8x1024xf32> to vector<8x1023xf32>
    %cst_17 = arith.constant 0.000000e+00 : f32
    %29 = vector.broadcast %cst_17 : f32 to vector<8x1xf32>
    %30 = tpu.concatenate %28, %29 in 1 : vector<8x1023xf32>, vector<8x1xf32> -> vector<8x1024xf32>
    %31 = vector.broadcast %1 : vector<1x1024xf32> to vector<8x1024xf32>
    %32 = arith.mulf %30, %31 : vector<8x1024xf32>
    %33 = vector.extract_strided_slice %8 {offsets = [0, 31], sizes = [8, 993], strides = [1, 1]} : vector<8x1024xf32> to vector<8x993xf32>
    %cst_18 = arith.constant 0.000000e+00 : f32
    %34 = vector.broadcast %cst_18 : f32 to vector<8x31xf32>
    %35 = tpu.concatenate %33, %34 in 1 : vector<8x993xf32>, vector<8x31xf32> -> vector<8x1024xf32>
    %36 = vector.broadcast %0 : vector<1x1024xf32> to vector<8x1024xf32>
    %37 = arith.mulf %35, %36 : vector<8x1024xf32>
    %38 = vector.extract_strided_slice %8 {offsets = [0, 32], sizes = [8, 992], strides = [1, 1]} : vector<8x1024xf32> to vector<8x992xf32>
    %cst_19 = arith.constant 0.000000e+00 : f32
    %39 = vector.broadcast %cst_19 : f32 to vector<8x32xf32>
    %40 = tpu.concatenate %38, %39 in 1 : vector<8x992xf32>, vector<8x32xf32> -> vector<8x1024xf32>
    %41 = vector.extract_strided_slice %8 {offsets = [0, 33], sizes = [8, 991], strides = [1, 1]} : vector<8x1024xf32> to vector<8x991xf32>
    %cst_20 = arith.constant 0.000000e+00 : f32
    %42 = vector.broadcast %cst_20 : f32 to vector<8x33xf32>
    %43 = tpu.concatenate %41, %42 in 1 : vector<8x991xf32>, vector<8x33xf32> -> vector<8x1024xf32>
    %44 = vector.broadcast %1 : vector<1x1024xf32> to vector<8x1024xf32>
    %45 = arith.mulf %43, %44 : vector<8x1024xf32>
    %46 = tpu.concatenate %14, %17, %22, %27, %8, %32, %37, %40, %45 in 0 : vector<8x1024xf32>, vector<8x1024xf32>, vector<8x1024xf32>, vector<8x1024xf32>, vector<8x1024xf32>, vector<8x1024xf32>, vector<8x1024xf32>, vector<8x1024xf32>, vector<8x1024xf32> -> vector<72x1024xf32>
    %cst_21 = arith.constant dense<0.000000e+00> : vector<8x1024xf32>
    %47 = tpu.matmul %9, %46, %cst_21 {dimension_numbers = #tpu.dot_dimension_numbers<[1], [0], [0], [1], [0, 0, 1, 1], [], []>} : vector<8x72xf32>, vector<72x1024xf32>, vector<8x1024xf32> -> vector<8x1024xf32>
    %c0_22 = arith.constant 0 : index
    %c0_23 = arith.constant 0 : index
    %48 = vector.load %arg8[%c0_22, %c0_23] : memref<8x1xf32, #tpu.memory_space<vmem>>, vector<8x1xf32>
    %c0_24 = arith.constant 0 : index
    %c0_25 = arith.constant 0 : index
    %49 = vector.load %arg9[%c0_24, %c0_25] : memref<8x1xf32, #tpu.memory_space<vmem>>, vector<8x1xf32>
    %cst_26 = arith.constant dense<0.000000e+00> : vector<8xf32>
    %50 = vector.multi_reduction <add>, %47, %cst_26 [1] : vector<8x1024xf32> to vector<8xf32>
    %51 = vector.shape_cast %50 : vector<8xf32> to vector<8x1xf32>
    %cst_27 = arith.constant dense<0.000000e+00> : vector<1xf32>
    %52 = vector.multi_reduction <add>, %51, %cst_27 [0] : vector<8x1xf32> to vector<1xf32>
    %53 = vector.shape_cast %52 : vector<1xf32> to vector<1x1xf32>
    %cst_28 = arith.constant 1.22070313E-4 : f32
    %54 = vector.broadcast %cst_28 : f32 to vector<1x1xf32>
    %55 = arith.mulf %53, %54 : vector<1x1xf32>
    %56 = vector.broadcast %55 : vector<1x1xf32> to vector<8x1024xf32>
    %57 = arith.subf %47, %56 : vector<8x1024xf32>
    %58 = arith.mulf %57, %57 : vector<8x1024xf32>
    %cst_29 = arith.constant dense<0.000000e+00> : vector<8xf32>
    %59 = vector.multi_reduction <add>, %58, %cst_29 [1] : vector<8x1024xf32> to vector<8xf32>
    %60 = vector.shape_cast %59 : vector<8xf32> to vector<8x1xf32>
    %cst_30 = arith.constant dense<0.000000e+00> : vector<1xf32>
    %61 = vector.multi_reduction <add>, %60, %cst_30 [0] : vector<8x1xf32> to vector<1xf32>
    %62 = vector.shape_cast %61 : vector<1xf32> to vector<1x1xf32>
    %cst_31 = arith.constant 1.22070313E-4 : f32
    %63 = vector.broadcast %cst_31 : f32 to vector<1x1xf32>
    %64 = arith.mulf %62, %63 : vector<1x1xf32>
    %cst_32 = arith.constant 9.99999974E-6 : f32
    %65 = vector.broadcast %cst_32 : f32 to vector<1x1xf32>
    %66 = arith.addf %64, %65 : vector<1x1xf32>
    %67 = math.rsqrt %66 : vector<1x1xf32>
    %68 = vector.broadcast %67 : vector<1x1xf32> to vector<8x1024xf32>
    %69 = arith.mulf %57, %68 : vector<8x1024xf32>
    %70 = vector.broadcast %48 : vector<8x1xf32> to vector<8x1024xf32>
    %71 = arith.mulf %69, %70 : vector<8x1024xf32>
    %72 = vector.broadcast %49 : vector<8x1xf32> to vector<8x1024xf32>
    %73 = arith.addf %71, %72 : vector<8x1024xf32>
    %cst_33 = arith.constant 5.000000e-01 : f32
    %74 = vector.broadcast %cst_33 : f32 to vector<8x1024xf32>
    %75 = arith.mulf %74, %73 : vector<8x1024xf32>
    %cst_34 = arith.constant 0.707106769 : f32
    %76 = vector.broadcast %cst_34 : f32 to vector<8x1024xf32>
    %77 = arith.mulf %73, %76 : vector<8x1024xf32>
    %78 = math.erf %77 : vector<8x1024xf32>
    %cst_35 = arith.constant 1.000000e+00 : f32
    %79 = vector.broadcast %cst_35 : f32 to vector<8x1024xf32>
    %80 = arith.addf %79, %78 : vector<8x1024xf32>
    %81 = arith.mulf %75, %80 : vector<8x1024xf32>
    %c0_36 = arith.constant 0 : index
    %c0_37 = arith.constant 0 : index
    %82 = vector.load %arg10[%c0_36, %c0_37] : memref<8x72xf32, #tpu.memory_space<vmem>>, vector<8x72xf32>
    %cst_38 = arith.constant 0.000000e+00 : f32
    %83 = vector.broadcast %cst_38 : f32 to vector<8x33xf32>
    %84 = vector.extract_strided_slice %81 {offsets = [0, 0], sizes = [8, 991], strides = [1, 1]} : vector<8x1024xf32> to vector<8x991xf32>
    %85 = tpu.concatenate %83, %84 in 1 : vector<8x33xf32>, vector<8x991xf32> -> vector<8x1024xf32>
    %86 = vector.broadcast %0 : vector<1x1024xf32> to vector<8x1024xf32>
    %87 = arith.mulf %85, %86 : vector<8x1024xf32>
    %cst_39 = arith.constant 0.000000e+00 : f32
    %88 = vector.broadcast %cst_39 : f32 to vector<8x32xf32>
    %89 = vector.extract_strided_slice %81 {offsets = [0, 0], sizes = [8, 992], strides = [1, 1]} : vector<8x1024xf32> to vector<8x992xf32>
    %90 = tpu.concatenate %88, %89 in 1 : vector<8x32xf32>, vector<8x992xf32> -> vector<8x1024xf32>
    %cst_40 = arith.constant 0.000000e+00 : f32
    %91 = vector.broadcast %cst_40 : f32 to vector<8x31xf32>
    %92 = vector.extract_strided_slice %81 {offsets = [0, 0], sizes = [8, 993], strides = [1, 1]} : vector<8x1024xf32> to vector<8x993xf32>
    %93 = tpu.concatenate %91, %92 in 1 : vector<8x31xf32>, vector<8x993xf32> -> vector<8x1024xf32>
    %94 = vector.broadcast %1 : vector<1x1024xf32> to vector<8x1024xf32>
    %95 = arith.mulf %93, %94 : vector<8x1024xf32>
    %cst_41 = arith.constant 0.000000e+00 : f32
    %96 = vector.broadcast %cst_41 : f32 to vector<8x1xf32>
    %97 = vector.extract_strided_slice %81 {offsets = [0, 0], sizes = [8, 1023], strides = [1, 1]} : vector<8x1024xf32> to vector<8x1023xf32>
    %98 = tpu.concatenate %96, %97 in 1 : vector<8x1xf32>, vector<8x1023xf32> -> vector<8x1024xf32>
    %99 = vector.broadcast %0 : vector<1x1024xf32> to vector<8x1024xf32>
    %100 = arith.mulf %98, %99 : vector<8x1024xf32>
    %101 = vector.extract_strided_slice %81 {offsets = [0, 1], sizes = [8, 1023], strides = [1, 1]} : vector<8x1024xf32> to vector<8x1023xf32>
    %cst_42 = arith.constant 0.000000e+00 : f32
    %102 = vector.broadcast %cst_42 : f32 to vector<8x1xf32>
    %103 = tpu.concatenate %101, %102 in 1 : vector<8x1023xf32>, vector<8x1xf32> -> vector<8x1024xf32>
    %104 = vector.broadcast %1 : vector<1x1024xf32> to vector<8x1024xf32>
    %105 = arith.mulf %103, %104 : vector<8x1024xf32>
    %106 = vector.extract_strided_slice %81 {offsets = [0, 31], sizes = [8, 993], strides = [1, 1]} : vector<8x1024xf32> to vector<8x993xf32>
    %cst_43 = arith.constant 0.000000e+00 : f32
    %107 = vector.broadcast %cst_43 : f32 to vector<8x31xf32>
    %108 = tpu.concatenate %106, %107 in 1 : vector<8x993xf32>, vector<8x31xf32> -> vector<8x1024xf32>
    %109 = vector.broadcast %0 : vector<1x1024xf32> to vector<8x1024xf32>
    %110 = arith.mulf %108, %109 : vector<8x1024xf32>
    %111 = vector.extract_strided_slice %81 {offsets = [0, 32], sizes = [8, 992], strides = [1, 1]} : vector<8x1024xf32> to vector<8x992xf32>
    %cst_44 = arith.constant 0.000000e+00 : f32
    %112 = vector.broadcast %cst_44 : f32 to vector<8x32xf32>
    %113 = tpu.concatenate %111, %112 in 1 : vector<8x992xf32>, vector<8x32xf32> -> vector<8x1024xf32>
    %114 = vector.extract_strided_slice %81 {offsets = [0, 33], sizes = [8, 991], strides = [1, 1]} : vector<8x1024xf32> to vector<8x991xf32>
    %cst_45 = arith.constant 0.000000e+00 : f32
    %115 = vector.broadcast %cst_45 : f32 to vector<8x33xf32>
    %116 = tpu.concatenate %114, %115 in 1 : vector<8x991xf32>, vector<8x33xf32> -> vector<8x1024xf32>
    %117 = vector.broadcast %1 : vector<1x1024xf32> to vector<8x1024xf32>
    %118 = arith.mulf %116, %117 : vector<8x1024xf32>
    %119 = tpu.concatenate %87, %90, %95, %100, %81, %105, %110, %113, %118 in 0 : vector<8x1024xf32>, vector<8x1024xf32>, vector<8x1024xf32>, vector<8x1024xf32>, vector<8x1024xf32>, vector<8x1024xf32>, vector<8x1024xf32>, vector<8x1024xf32>, vector<8x1024xf32> -> vector<72x1024xf32>
    %cst_46 = arith.constant dense<0.000000e+00> : vector<8x1024xf32>
    %120 = tpu.matmul %82, %119, %cst_46 {dimension_numbers = #tpu.dot_dimension_numbers<[1], [0], [0], [1], [0, 0, 1, 1], [], []>} : vector<8x72xf32>, vector<72x1024xf32>, vector<8x1024xf32> -> vector<8x1024xf32>
    %c0_47 = arith.constant 0 : index
    %c0_48 = arith.constant 0 : index
    %121 = vector.load %arg11[%c0_47, %c0_48] : memref<8x1xf32, #tpu.memory_space<vmem>>, vector<8x1xf32>
    %c0_49 = arith.constant 0 : index
    %c0_50 = arith.constant 0 : index
    %122 = vector.load %arg12[%c0_49, %c0_50] : memref<8x1xf32, #tpu.memory_space<vmem>>, vector<8x1xf32>
    %cst_51 = arith.constant dense<0.000000e+00> : vector<8xf32>
    %123 = vector.multi_reduction <add>, %120, %cst_51 [1] : vector<8x1024xf32> to vector<8xf32>
    %124 = vector.shape_cast %123 : vector<8xf32> to vector<8x1xf32>
    %cst_52 = arith.constant dense<0.000000e+00> : vector<1xf32>
    %125 = vector.multi_reduction <add>, %124, %cst_52 [0] : vector<8x1xf32> to vector<1xf32>
    %126 = vector.shape_cast %125 : vector<1xf32> to vector<1x1xf32>
    %cst_53 = arith.constant 1.22070313E-4 : f32
    %127 = vector.broadcast %cst_53 : f32 to vector<1x1xf32>
    %128 = arith.mulf %126, %127 : vector<1x1xf32>
    %129 = vector.broadcast %128 : vector<1x1xf32> to vector<8x1024xf32>
    %130 = arith.subf %120, %129 : vector<8x1024xf32>
    %131 = arith.mulf %130, %130 : vector<8x1024xf32>
    %cst_54 = arith.constant dense<0.000000e+00> : vector<8xf32>
    %132 = vector.multi_reduction <add>, %131, %cst_54 [1] : vector<8x1024xf32> to vector<8xf32>
    %133 = vector.shape_cast %132 : vector<8xf32> to vector<8x1xf32>
    %cst_55 = arith.constant dense<0.000000e+00> : vector<1xf32>
    %134 = vector.multi_reduction <add>, %133, %cst_55 [0] : vector<8x1xf32> to vector<1xf32>
    %135 = vector.shape_cast %134 : vector<1xf32> to vector<1x1xf32>
    %cst_56 = arith.constant 1.22070313E-4 : f32
    %136 = vector.broadcast %cst_56 : f32 to vector<1x1xf32>
    %137 = arith.mulf %135, %136 : vector<1x1xf32>
    %cst_57 = arith.constant 9.99999974E-6 : f32
    %138 = vector.broadcast %cst_57 : f32 to vector<1x1xf32>
    %139 = arith.addf %137, %138 : vector<1x1xf32>
    %140 = math.rsqrt %139 : vector<1x1xf32>
    %141 = vector.broadcast %140 : vector<1x1xf32> to vector<8x1024xf32>
    %142 = arith.mulf %130, %141 : vector<8x1024xf32>
    %143 = vector.broadcast %121 : vector<8x1xf32> to vector<8x1024xf32>
    %144 = arith.mulf %142, %143 : vector<8x1024xf32>
    %145 = vector.broadcast %122 : vector<8x1xf32> to vector<8x1024xf32>
    %146 = arith.addf %144, %145 : vector<8x1024xf32>
    %147 = arith.addf %8, %146 : vector<8x1024xf32>
    %cst_58 = arith.constant 5.000000e-01 : f32
    %148 = vector.broadcast %cst_58 : f32 to vector<8x1024xf32>
    %149 = arith.mulf %148, %147 : vector<8x1024xf32>
    %cst_59 = arith.constant 0.707106769 : f32
    %150 = vector.broadcast %cst_59 : f32 to vector<8x1024xf32>
    %151 = arith.mulf %147, %150 : vector<8x1024xf32>
    %152 = math.erf %151 : vector<8x1024xf32>
    %cst_60 = arith.constant 1.000000e+00 : f32
    %153 = vector.broadcast %cst_60 : f32 to vector<8x1024xf32>
    %154 = arith.addf %153, %152 : vector<8x1024xf32>
    %155 = arith.mulf %149, %154 : vector<8x1024xf32>
    %c0_61 = arith.constant 0 : index
    %c0_62 = arith.constant 0 : index
    %156 = vector.load %arg13[%c0_61, %c0_62] : memref<4x72xf32, #tpu.memory_space<vmem>>, vector<4x72xf32>
    %cst_63 = arith.constant 0.000000e+00 : f32
    %157 = vector.broadcast %cst_63 : f32 to vector<8x33xf32>
    %158 = vector.extract_strided_slice %155 {offsets = [0, 0], sizes = [8, 991], strides = [1, 1]} : vector<8x1024xf32> to vector<8x991xf32>
    %159 = tpu.concatenate %157, %158 in 1 : vector<8x33xf32>, vector<8x991xf32> -> vector<8x1024xf32>
    %160 = vector.broadcast %0 : vector<1x1024xf32> to vector<8x1024xf32>
    %161 = arith.mulf %159, %160 : vector<8x1024xf32>
    %cst_64 = arith.constant 0.000000e+00 : f32
    %162 = vector.broadcast %cst_64 : f32 to vector<8x32xf32>
    %163 = vector.extract_strided_slice %155 {offsets = [0, 0], sizes = [8, 992], strides = [1, 1]} : vector<8x1024xf32> to vector<8x992xf32>
    %164 = tpu.concatenate %162, %163 in 1 : vector<8x32xf32>, vector<8x992xf32> -> vector<8x1024xf32>
    %cst_65 = arith.constant 0.000000e+00 : f32
    %165 = vector.broadcast %cst_65 : f32 to vector<8x31xf32>
    %166 = vector.extract_strided_slice %155 {offsets = [0, 0], sizes = [8, 993], strides = [1, 1]} : vector<8x1024xf32> to vector<8x993xf32>
    %167 = tpu.concatenate %165, %166 in 1 : vector<8x31xf32>, vector<8x993xf32> -> vector<8x1024xf32>
    %168 = vector.broadcast %1 : vector<1x1024xf32> to vector<8x1024xf32>
    %169 = arith.mulf %167, %168 : vector<8x1024xf32>
    %cst_66 = arith.constant 0.000000e+00 : f32
    %170 = vector.broadcast %cst_66 : f32 to vector<8x1xf32>
    %171 = vector.extract_strided_slice %155 {offsets = [0, 0], sizes = [8, 1023], strides = [1, 1]} : vector<8x1024xf32> to vector<8x1023xf32>
    %172 = tpu.concatenate %170, %171 in 1 : vector<8x1xf32>, vector<8x1023xf32> -> vector<8x1024xf32>
    %173 = vector.broadcast %0 : vector<1x1024xf32> to vector<8x1024xf32>
    %174 = arith.mulf %172, %173 : vector<8x1024xf32>
    %175 = vector.extract_strided_slice %155 {offsets = [0, 1], sizes = [8, 1023], strides = [1, 1]} : vector<8x1024xf32> to vector<8x1023xf32>
    %cst_67 = arith.constant 0.000000e+00 : f32
    %176 = vector.broadcast %cst_67 : f32 to vector<8x1xf32>
    %177 = tpu.concatenate %175, %176 in 1 : vector<8x1023xf32>, vector<8x1xf32> -> vector<8x1024xf32>
    %178 = vector.broadcast %1 : vector<1x1024xf32> to vector<8x1024xf32>
    %179 = arith.mulf %177, %178 : vector<8x1024xf32>
    %180 = vector.extract_strided_slice %155 {offsets = [0, 31], sizes = [8, 993], strides = [1, 1]} : vector<8x1024xf32> to vector<8x993xf32>
    %cst_68 = arith.constant 0.000000e+00 : f32
    %181 = vector.broadcast %cst_68 : f32 to vector<8x31xf32>
    %182 = tpu.concatenate %180, %181 in 1 : vector<8x993xf32>, vector<8x31xf32> -> vector<8x1024xf32>
    %183 = vector.broadcast %0 : vector<1x1024xf32> to vector<8x1024xf32>
    %184 = arith.mulf %182, %183 : vector<8x1024xf32>
    %185 = vector.extract_strided_slice %155 {offsets = [0, 32], sizes = [8, 992], strides = [1, 1]} : vector<8x1024xf32> to vector<8x992xf32>
    %cst_69 = arith.constant 0.000000e+00 : f32
    %186 = vector.broadcast %cst_69 : f32 to vector<8x32xf32>
    %187 = tpu.concatenate %185, %186 in 1 : vector<8x992xf32>, vector<8x32xf32> -> vector<8x1024xf32>
    %188 = vector.extract_strided_slice %155 {offsets = [0, 33], sizes = [8, 991], strides = [1, 1]} : vector<8x1024xf32> to vector<8x991xf32>
    %cst_70 = arith.constant 0.000000e+00 : f32
    %189 = vector.broadcast %cst_70 : f32 to vector<8x33xf32>
    %190 = tpu.concatenate %188, %189 in 1 : vector<8x991xf32>, vector<8x33xf32> -> vector<8x1024xf32>
    %191 = vector.broadcast %1 : vector<1x1024xf32> to vector<8x1024xf32>
    %192 = arith.mulf %190, %191 : vector<8x1024xf32>
    %193 = tpu.concatenate %161, %164, %169, %174, %155, %179, %184, %187, %192 in 0 : vector<8x1024xf32>, vector<8x1024xf32>, vector<8x1024xf32>, vector<8x1024xf32>, vector<8x1024xf32>, vector<8x1024xf32>, vector<8x1024xf32>, vector<8x1024xf32>, vector<8x1024xf32> -> vector<72x1024xf32>
    %cst_71 = arith.constant dense<0.000000e+00> : vector<4x1024xf32>
    %194 = tpu.matmul %156, %193, %cst_71 {dimension_numbers = #tpu.dot_dimension_numbers<[1], [0], [0], [1], [0, 0, 1, 1], [], []>} : vector<4x72xf32>, vector<72x1024xf32>, vector<4x1024xf32> -> vector<4x1024xf32>
    %c0_72 = arith.constant 0 : index
    %c0_73 = arith.constant 0 : index
    %195 = vector.load %arg14[%c0_72, %c0_73] : memref<4x1xf32, #tpu.memory_space<vmem>>, vector<4x1xf32>
    %c0_74 = arith.constant 0 : index
    %c0_75 = arith.constant 0 : index
    %196 = vector.load %arg15[%c0_74, %c0_75] : memref<4x1xf32, #tpu.memory_space<vmem>>, vector<4x1xf32>
    %cst_76 = arith.constant dense<0.000000e+00> : vector<4xf32>
    %197 = vector.multi_reduction <add>, %194, %cst_76 [1] : vector<4x1024xf32> to vector<4xf32>
    %198 = vector.shape_cast %197 : vector<4xf32> to vector<4x1xf32>
    %cst_77 = arith.constant dense<0.000000e+00> : vector<1xf32>
    %199 = vector.multi_reduction <add>, %198, %cst_77 [0] : vector<4x1xf32> to vector<1xf32>
    %200 = vector.shape_cast %199 : vector<1xf32> to vector<1x1xf32>
    %cst_78 = arith.constant 2.44140625E-4 : f32
    %201 = vector.broadcast %cst_78 : f32 to vector<1x1xf32>
    %202 = arith.mulf %200, %201 : vector<1x1xf32>
    %203 = vector.broadcast %202 : vector<1x1xf32> to vector<4x1024xf32>
    %204 = arith.subf %194, %203 : vector<4x1024xf32>
    %205 = arith.mulf %204, %204 : vector<4x1024xf32>
    %cst_79 = arith.constant dense<0.000000e+00> : vector<4xf32>
    %206 = vector.multi_reduction <add>, %205, %cst_79 [1] : vector<4x1024xf32> to vector<4xf32>
    %207 = vector.shape_cast %206 : vector<4xf32> to vector<4x1xf32>
    %cst_80 = arith.constant dense<0.000000e+00> : vector<1xf32>
    %208 = vector.multi_reduction <add>, %207, %cst_80 [0] : vector<4x1xf32> to vector<1xf32>
    %209 = vector.shape_cast %208 : vector<1xf32> to vector<1x1xf32>
    %cst_81 = arith.constant 2.44140625E-4 : f32
    %210 = vector.broadcast %cst_81 : f32 to vector<1x1xf32>
    %211 = arith.mulf %209, %210 : vector<1x1xf32>
    %cst_82 = arith.constant 9.99999974E-6 : f32
    %212 = vector.broadcast %cst_82 : f32 to vector<1x1xf32>
    %213 = arith.addf %211, %212 : vector<1x1xf32>
    %214 = math.rsqrt %213 : vector<1x1xf32>
    %215 = vector.broadcast %214 : vector<1x1xf32> to vector<4x1024xf32>
    %216 = arith.mulf %204, %215 : vector<4x1024xf32>
    %217 = vector.broadcast %195 : vector<4x1xf32> to vector<4x1024xf32>
    %218 = arith.mulf %216, %217 : vector<4x1024xf32>
    %219 = vector.broadcast %196 : vector<4x1xf32> to vector<4x1024xf32>
    %220 = arith.addf %218, %219 : vector<4x1024xf32>
    %cst_83 = arith.constant 5.000000e-01 : f32
    %221 = vector.broadcast %cst_83 : f32 to vector<4x1024xf32>
    %222 = arith.mulf %221, %220 : vector<4x1024xf32>
    %cst_84 = arith.constant 0.707106769 : f32
    %223 = vector.broadcast %cst_84 : f32 to vector<4x1024xf32>
    %224 = arith.mulf %220, %223 : vector<4x1024xf32>
    %225 = math.erf %224 : vector<4x1024xf32>
    %cst_85 = arith.constant 1.000000e+00 : f32
    %226 = vector.broadcast %cst_85 : f32 to vector<4x1024xf32>
    %227 = arith.addf %226, %225 : vector<4x1024xf32>
    %228 = arith.mulf %222, %227 : vector<4x1024xf32>
    %c0_86 = arith.constant 0 : index
    %c0_87 = arith.constant 0 : index
    %229 = vector.load %arg16[%c0_86, %c0_87] : memref<8x36xf32, #tpu.memory_space<vmem>>, vector<8x36xf32>
    %cst_88 = arith.constant 0.000000e+00 : f32
    %230 = vector.broadcast %cst_88 : f32 to vector<4x33xf32>
    %231 = vector.extract_strided_slice %228 {offsets = [0, 0], sizes = [4, 991], strides = [1, 1]} : vector<4x1024xf32> to vector<4x991xf32>
    %232 = tpu.concatenate %230, %231 in 1 : vector<4x33xf32>, vector<4x991xf32> -> vector<4x1024xf32>
    %233 = vector.broadcast %0 : vector<1x1024xf32> to vector<4x1024xf32>
    %234 = arith.mulf %232, %233 : vector<4x1024xf32>
    %cst_89 = arith.constant 0.000000e+00 : f32
    %235 = vector.broadcast %cst_89 : f32 to vector<4x32xf32>
    %236 = vector.extract_strided_slice %228 {offsets = [0, 0], sizes = [4, 992], strides = [1, 1]} : vector<4x1024xf32> to vector<4x992xf32>
    %237 = tpu.concatenate %235, %236 in 1 : vector<4x32xf32>, vector<4x992xf32> -> vector<4x1024xf32>
    %cst_90 = arith.constant 0.000000e+00 : f32
    %238 = vector.broadcast %cst_90 : f32 to vector<4x31xf32>
    %239 = vector.extract_strided_slice %228 {offsets = [0, 0], sizes = [4, 993], strides = [1, 1]} : vector<4x1024xf32> to vector<4x993xf32>
    %240 = tpu.concatenate %238, %239 in 1 : vector<4x31xf32>, vector<4x993xf32> -> vector<4x1024xf32>
    %241 = vector.broadcast %1 : vector<1x1024xf32> to vector<4x1024xf32>
    %242 = arith.mulf %240, %241 : vector<4x1024xf32>
    %cst_91 = arith.constant 0.000000e+00 : f32
    %243 = vector.broadcast %cst_91 : f32 to vector<4x1xf32>
    %244 = vector.extract_strided_slice %228 {offsets = [0, 0], sizes = [4, 1023], strides = [1, 1]} : vector<4x1024xf32> to vector<4x1023xf32>
    %245 = tpu.concatenate %243, %244 in 1 : vector<4x1xf32>, vector<4x1023xf32> -> vector<4x1024xf32>
    %246 = vector.broadcast %0 : vector<1x1024xf32> to vector<4x1024xf32>
    %247 = arith.mulf %245, %246 : vector<4x1024xf32>
    %248 = vector.extract_strided_slice %228 {offsets = [0, 1], sizes = [4, 1023], strides = [1, 1]} : vector<4x1024xf32> to vector<4x1023xf32>
    %cst_92 = arith.constant 0.000000e+00 : f32
    %249 = vector.broadcast %cst_92 : f32 to vector<4x1xf32>
    %250 = tpu.concatenate %248, %249 in 1 : vector<4x1023xf32>, vector<4x1xf32> -> vector<4x1024xf32>
    %251 = vector.broadcast %1 : vector<1x1024xf32> to vector<4x1024xf32>
    %252 = arith.mulf %250, %251 : vector<4x1024xf32>
    %253 = vector.extract_strided_slice %228 {offsets = [0, 31], sizes = [4, 993], strides = [1, 1]} : vector<4x1024xf32> to vector<4x993xf32>
    %cst_93 = arith.constant 0.000000e+00 : f32
    %254 = vector.broadcast %cst_93 : f32 to vector<4x31xf32>
    %255 = tpu.concatenate %253, %254 in 1 : vector<4x993xf32>, vector<4x31xf32> -> vector<4x1024xf32>
    %256 = vector.broadcast %0 : vector<1x1024xf32> to vector<4x1024xf32>
    %257 = arith.mulf %255, %256 : vector<4x1024xf32>
    %258 = vector.extract_strided_slice %228 {offsets = [0, 32], sizes = [4, 992], strides = [1, 1]} : vector<4x1024xf32> to vector<4x992xf32>
    %cst_94 = arith.constant 0.000000e+00 : f32
    %259 = vector.broadcast %cst_94 : f32 to vector<4x32xf32>
    %260 = tpu.concatenate %258, %259 in 1 : vector<4x992xf32>, vector<4x32xf32> -> vector<4x1024xf32>
    %261 = vector.extract_strided_slice %228 {offsets = [0, 33], sizes = [4, 991], strides = [1, 1]} : vector<4x1024xf32> to vector<4x991xf32>
    %cst_95 = arith.constant 0.000000e+00 : f32
    %262 = vector.broadcast %cst_95 : f32 to vector<4x33xf32>
    %263 = tpu.concatenate %261, %262 in 1 : vector<4x991xf32>, vector<4x33xf32> -> vector<4x1024xf32>
    %264 = vector.broadcast %1 : vector<1x1024xf32> to vector<4x1024xf32>
    %265 = arith.mulf %263, %264 : vector<4x1024xf32>
    %266 = tpu.concatenate %234, %237, %242, %247, %228, %252, %257, %260, %265 in 0 : vector<4x1024xf32>, vector<4x1024xf32>, vector<4x1024xf32>, vector<4x1024xf32>, vector<4x1024xf32>, vector<4x1024xf32>, vector<4x1024xf32>, vector<4x1024xf32>, vector<4x1024xf32> -> vector<36x1024xf32>
    %cst_96 = arith.constant dense<0.000000e+00> : vector<8x1024xf32>
    %267 = tpu.matmul %229, %266, %cst_96 {dimension_numbers = #tpu.dot_dimension_numbers<[1], [0], [0], [1], [0, 0, 1, 1], [], []>} : vector<8x36xf32>, vector<36x1024xf32>, vector<8x1024xf32> -> vector<8x1024xf32>
    %c0_97 = arith.constant 0 : index
    %c0_98 = arith.constant 0 : index
    %268 = vector.load %arg17[%c0_97, %c0_98] : memref<8x1xf32, #tpu.memory_space<vmem>>, vector<8x1xf32>
    %c0_99 = arith.constant 0 : index
    %c0_100 = arith.constant 0 : index
    %269 = vector.load %arg18[%c0_99, %c0_100] : memref<8x1xf32, #tpu.memory_space<vmem>>, vector<8x1xf32>
    %cst_101 = arith.constant dense<0.000000e+00> : vector<8xf32>
    %270 = vector.multi_reduction <add>, %267, %cst_101 [1] : vector<8x1024xf32> to vector<8xf32>
    %271 = vector.shape_cast %270 : vector<8xf32> to vector<8x1xf32>
    %cst_102 = arith.constant dense<0.000000e+00> : vector<1xf32>
    %272 = vector.multi_reduction <add>, %271, %cst_102 [0] : vector<8x1xf32> to vector<1xf32>
    %273 = vector.shape_cast %272 : vector<1xf32> to vector<1x1xf32>
    %cst_103 = arith.constant 1.22070313E-4 : f32
    %274 = vector.broadcast %cst_103 : f32 to vector<1x1xf32>
    %275 = arith.mulf %273, %274 : vector<1x1xf32>
    %276 = vector.broadcast %275 : vector<1x1xf32> to vector<8x1024xf32>
    %277 = arith.subf %267, %276 : vector<8x1024xf32>
    %278 = arith.mulf %277, %277 : vector<8x1024xf32>
    %cst_104 = arith.constant dense<0.000000e+00> : vector<8xf32>
    %279 = vector.multi_reduction <add>, %278, %cst_104 [1] : vector<8x1024xf32> to vector<8xf32>
    %280 = vector.shape_cast %279 : vector<8xf32> to vector<8x1xf32>
    %cst_105 = arith.constant dense<0.000000e+00> : vector<1xf32>
    %281 = vector.multi_reduction <add>, %280, %cst_105 [0] : vector<8x1xf32> to vector<1xf32>
    %282 = vector.shape_cast %281 : vector<1xf32> to vector<1x1xf32>
    %cst_106 = arith.constant 1.22070313E-4 : f32
    %283 = vector.broadcast %cst_106 : f32 to vector<1x1xf32>
    %284 = arith.mulf %282, %283 : vector<1x1xf32>
    %cst_107 = arith.constant 9.99999974E-6 : f32
    %285 = vector.broadcast %cst_107 : f32 to vector<1x1xf32>
    %286 = arith.addf %284, %285 : vector<1x1xf32>
    %287 = math.rsqrt %286 : vector<1x1xf32>
    %288 = vector.broadcast %287 : vector<1x1xf32> to vector<8x1024xf32>
    %289 = arith.mulf %277, %288 : vector<8x1024xf32>
    %290 = vector.broadcast %268 : vector<8x1xf32> to vector<8x1024xf32>
    %291 = arith.mulf %289, %290 : vector<8x1024xf32>
    %292 = vector.broadcast %269 : vector<8x1xf32> to vector<8x1024xf32>
    %293 = arith.addf %291, %292 : vector<8x1024xf32>
    %c0_108 = arith.constant 0 : index
    %c0_109 = arith.constant 0 : index
    %c0_110 = arith.constant 0 : index
    %294 = vector.load %arg3[%c0_108, %c0_109, %c0_110] : memref<1x32x1xf32, #tpu.memory_space<vmem>>, vector<1x32x1xf32>
    %295 = vector.shape_cast %294 : vector<1x32x1xf32> to vector<32x1xf32>
    %cst_111 = arith.constant 0.000000e+00 : f32
    %296 = vector.broadcast %cst_111 : f32 to vector<32x1xf32>
    %297 = arith.subf %296, %295 : vector<32x1xf32>
    %298 = math.exp %297 : vector<32x1xf32>
    %cst_112 = arith.constant 1.000000e+00 : f32
    %299 = vector.broadcast %cst_112 : f32 to vector<32x1xf32>
    %300 = arith.addf %299, %298 : vector<32x1xf32>
    %cst_113 = arith.constant 1.000000e+00 : f32
    %301 = vector.broadcast %cst_113 : f32 to vector<32x1xf32>
    %302 = arith.divf %301, %300 : vector<32x1xf32>
    %303 = arith.mulf %295, %302 : vector<32x1xf32>
    %c0_114 = arith.constant 0 : index
    %c0_115 = arith.constant 0 : index
    %304 = vector.load %arg19[%c0_114, %c0_115] : memref<8x32xf32, #tpu.memory_space<vmem>>, vector<8x32xf32>
    %cst_116 = arith.constant dense<0.000000e+00> : vector<8x1xf32>
    %305 = tpu.matmul %304, %303, %cst_116 {dimension_numbers = #tpu.dot_dimension_numbers<[1], [0], [0], [1], [0, 0, 1, 1], [], []>} : vector<8x32xf32>, vector<32x1xf32>, vector<8x1xf32> -> vector<8x1xf32>
    %c0_117 = arith.constant 0 : index
    %c0_118 = arith.constant 0 : index
    %306 = vector.load %arg20[%c0_117, %c0_118] : memref<8x1xf32, #tpu.memory_space<vmem>>, vector<8x1xf32>
    %307 = arith.addf %305, %306 : vector<8x1xf32>
    %308 = vector.broadcast %307 : vector<8x1xf32> to vector<8x1024xf32>
    %309 = arith.addf %293, %308 : vector<8x1024xf32>
    %c0_119 = arith.constant 0 : index
    %c0_120 = arith.constant 0 : index
    %c0_121 = arith.constant 0 : index
    %310 = vector.load %arg21[%c0_119, %c0_120, %c0_121] : memref<1x8x1024xf32, #tpu.memory_space<vmem>>, vector<1x8x1024xf32>
    %311 = vector.shape_cast %310 : vector<1x8x1024xf32> to vector<8x1024xf32>
    %312 = vector.shape_cast %309 : vector<8x1024xf32> to vector<1x8x1024xf32>
    tpu.vector_store %arg21[%c0_119, %c0_120, %c0_121], %312 {strides = array<i32>} : memref<1x8x1024xf32, #tpu.memory_space<vmem>>, vector<1x8x1024xf32>,
    return
  }
  func.func @transform_0(%arg0: i32) -> (i32, i32, i32) {
    %c0_i32 = arith.constant 0 : i32
    %c0_i32_0 = arith.constant 0 : i32
    %c0_i32_1 = arith.constant 0 : i32
    return %arg0, %c0_i32, %c0_i32_0 : i32, i32, i32
  }
  func.func @transform_1(%arg0: i32) -> (i32, i32, i32) {
    %c0_i32 = arith.constant 0 : i32
    %c0_i32_0 = arith.constant 0 : i32
    %c0_i32_1 = arith.constant 0 : i32
    return %arg0, %c0_i32, %c0_i32_0 : i32, i32, i32
  }
  func.func @transform_2(%arg0: i32) -> (i32, i32, i32) {
    %c0_i32 = arith.constant 0 : i32
    %c0_i32_0 = arith.constant 0 : i32
    %c0_i32_1 = arith.constant 0 : i32
    return %arg0, %c0_i32, %c0_i32_0 : i32, i32, i32
  }
  func.func @transform_3(%arg0: i32) -> (i32, i32) {
    %c0_i32 = arith.constant 0 : i32
    %c0_i32_0 = arith.constant 0 : i32
    %c0_i32_1 = arith.constant 0 : i32
    return %c0_i32, %c0_i32_0 : i32, i32
  }
  func.func @transform_4(%arg0: i32) -> (i32, i32) {
    %c0_i32 = arith.constant 0 : i32
    %c0_i32_0 = arith.constant 0 : i32
    %c0_i32_1 = arith.constant 0 : i32
    return %c0_i32, %c0_i32_0 : i32, i32
  }
  func.func @transform_5(%arg0: i32) -> (i32, i32) {
    %c0_i32 = arith.constant 0 : i32
    %c0_i32_0 = arith.constant 0 : i32
    %c0_i32_1 = arith.constant 0 : i32
    return %c0_i32, %c0_i32_0 : i32, i32
  }
  func.func @transform_6(%arg0: i32) -> (i32, i32) {
    %c0_i32 = arith.constant 0 : i32
    %c0_i32_0 = arith.constant 0 : i32
    %c0_i32_1 = arith.constant 0 : i32
    return %c0_i32, %c0_i32_0 : i32, i32
  }
  func.func @transform_7(%arg0: i32) -> (i32, i32) {
    %c0_i32 = arith.constant 0 : i32
    %c0_i32_0 = arith.constant 0 : i32
    %c0_i32_1 = arith.constant 0 : i32
    return %c0_i32, %c0_i32_0 : i32, i32
  }
  func.func @transform_8(%arg0: i32) -> (i32, i32) {
    %c0_i32 = arith.constant 0 : i32
    %c0_i32_0 = arith.constant 0 : i32
    %c0_i32_1 = arith.constant 0 : i32
    return %c0_i32, %c0_i32_0 : i32, i32
  }
  func.func @transform_9(%arg0: i32) -> (i32, i32) {
    %c0_i32 = arith.constant 0 : i32
    %c0_i32_0 = arith.constant 0 : i32
    %c0_i32_1 = arith.constant 0 : i32
    return %c0_i32, %c0_i32_0 : i32, i32
  }
  func.func @transform_10(%arg0: i32) -> (i32, i32) {
    %c0_i32 = arith.constant 0 : i32
    %c0_i32_0 = arith.constant 0 : i32
    %c0_i32_1 = arith.constant 0 : i32
    return %c0_i32, %c0_i32_0 : i32, i32
  }
  func.func @transform_11(%arg0: i32) -> (i32, i32) {
    %c0_i32 = arith.constant 0 : i32
    %c0_i32_0 = arith.constant 0 : i32
    %c0_i32_1 = arith.constant 0 : i32
    return %c0_i32, %c0_i32_0 : i32, i32
  }
  func.func @transform_12(%arg0: i32) -> (i32, i32) {
    %c0_i32 = arith.constant 0 : i32
    %c0_i32_0 = arith.constant 0 : i32
    %c0_i32_1 = arith.constant 0 : i32
    return %c0_i32, %c0_i32_0 : i32, i32
  }
  func.func @transform_13(%arg0: i32) -> (i32, i32) {
    %c0_i32 = arith.constant 0 : i32
    %c0_i32_0 = arith.constant 0 : i32
    %c0_i32_1 = arith.constant 0 : i32
    return %c0_i32, %c0_i32_0 : i32, i32
  }
  func.func @transform_14(%arg0: i32) -> (i32, i32) {
    %c0_i32 = arith.constant 0 : i32
    %c0_i32_0 = arith.constant 0 : i32
    %c0_i32_1 = arith.constant 0 : i32
    return %c0_i32, %c0_i32_0 : i32, i32
  }
  func.func @transform_15(%arg0: i32) -> (i32, i32) {
    %c0_i32 = arith.constant 0 : i32
    %c0_i32_0 = arith.constant 0 : i32
    %c0_i32_1 = arith.constant 0 : i32
    return %c0_i32, %c0_i32_0 : i32, i32
  }
  func.func @transform_16(%arg0: i32) -> (i32, i32) {
    %c0_i32 = arith.constant 0 : i32
    %c0_i32_0 = arith.constant 0 : i32
    %c0_i32_1 = arith.constant 0 : i32
    return %c0_i32, %c0_i32_0 : i32, i32
  }
  func.func @transform_17(%arg0: i32) -> (i32, i32) {
    %c0_i32 = arith.constant 0 : i32
    %c0_i32_0 = arith.constant 0 : i32
    %c0_i32_1 = arith.constant 0 : i32
    return %c0_i32, %c0_i32_0 : i32, i32
  }
  func.func @transform_18(%arg0: i32) -> (i32, i32) {
    %c0_i32 = arith.constant 0 : i32
    %c0_i32_0 = arith.constant 0 : i32
    %c0_i32_1 = arith.constant 0 : i32
    return %c0_i32, %c0_i32_0 : i32, i32
  }
  func.func @transform_19(%arg0: i32) -> (i32, i32) {
    %c0_i32 = arith.constant 0 : i32
    %c0_i32_0 = arith.constant 0 : i32
    %c0_i32_1 = arith.constant 0 : i32
    return %c0_i32, %c0_i32_0 : i32, i32
  }
  func.func @transform_20(%arg0: i32) -> (i32, i32, i32) {
    %c0_i32 = arith.constant 0 : i32
    %c0_i32_0 = arith.constant 0 : i32
    %c0_i32_1 = arith.constant 0 : i32
    return %arg0, %c0_i32, %c0_i32_0 : i32, i32, i32
  }
}

</mosaic_0001>

<llo_original>
// kernel: tpu_custom_call.1
$region0: #{tpu_custom_call.1}
  #allocation0 [shape = 'u32[]', space=smem, size = 0x4, offset = 0x4, fixed_abs, tag = 'smem constant byte address 0x4 - core index']
  #allocation1 [shape = 'u32[144,128]{1,0:T(1,128)}', space=vmem, size = 0x12000, scoped, tag = 'internal scratch']
  %s0 = inlined_call_operand.vmem [shape: f32[2,4,256], index: 0, kind: input, shape index: {}]
  %s1 = inlined_call_operand.vmem [shape: f32[2,4,1024], index: 1, kind: input, shape index: {}]
  %s2 = inlined_call_operand.vmem [shape: f32[2,32,1], index: 2, kind: input, shape index: {}]
  %s3 = inlined_call_operand.hbm [shape: f32[256,1024], index: 3, kind: input, shape index: {}]
  %s4 = inlined_call_operand.vmem [shape: f32[1,1024], index: 4, kind: input, shape index: {}]
  %s5 = inlined_call_operand.vmem [shape: f32[1,1024], index: 5, kind: input, shape index: {}]
  %s6 = inlined_call_operand.vmem [shape: f32[8,72], index: 6, kind: input, shape index: {}]
  %s7 = inlined_call_operand.vmem [shape: f32[8,1], index: 7, kind: input, shape index: {}]
  %s8 = inlined_call_operand.vmem [shape: f32[8,1], index: 8, kind: input, shape index: {}]
  %s9 = inlined_call_operand.vmem [shape: f32[8,72], index: 9, kind: input, shape index: {}]
  %s10 = inlined_call_operand.vmem [shape: f32[8,1], index: 10, kind: input, shape index: {}]
  %s11 = inlined_call_operand.vmem [shape: f32[8,1], index: 11, kind: input, shape index: {}]
  %s12 = inlined_call_operand.vmem [shape: f32[4,72], index: 12, kind: input, shape index: {}]
  %s13 = inlined_call_operand.vmem [shape: f32[4,1], index: 13, kind: input, shape index: {}]
  %s14 = inlined_call_operand.vmem [shape: f32[4,1], index: 14, kind: input, shape index: {}]
  %s15 = inlined_call_operand.vmem [shape: f32[8,36], index: 15, kind: input, shape index: {}]
  %s16 = inlined_call_operand.vmem [shape: f32[8,1], index: 16, kind: input, shape index: {}]
  %s17 = inlined_call_operand.vmem [shape: f32[8,1], index: 17, kind: input, shape index: {}]
  %s18 = inlined_call_operand.vmem [shape: f32[8,32], index: 18, kind: input, shape index: {}]
  %s19 = inlined_call_operand.vmem [shape: f32[8,1], index: 19, kind: input, shape index: {}]
  %s20 = inlined_call_operand.hbm [shape: f32[2,8,1024], index: 20, kind: output, shape index: {}]
  %s21 = sld [smem:[#allocation0]]
  $region117: #{tpu_custom_call.1} parent=0
    _
  %s23 = ssub.s32 1, %s21
  %s24 = scalar_select 0, %s23, %s21
  $region1: #{tpu_custom_call.1} parent=0
    #allocation2 [shape = 'u8[1048576]{0}', space=vmem, size = 0x100000, scoped, tag = 'input window, operand 3, single buffered']
    #allocation3 [shape = 's32[2]{0}', space=sflag, size = 0x8, scoped, tag = 'scoped memory for tpu_custom_call.1']
    #allocation4 [shape = 's32[2]{0}', space=sflag, size = 0x8, scoped, tag = 'scoped memory for tpu_custom_call.1']
    #allocation5 [shape = 'u8[65536]{0}', space=vmem, size = 0x10000, scoped, tag = 'output window, operand 0']
    %25 = vsyncpa [#allocation3], 0
    %26 = vsyncpa [#allocation4], 0
    %s27 = scalar_lea.sflag [#allocation4], 1
    %28 = vsyncpa %s27, 0
    loop: start=0, step=1, limit=4
    $region2: #{tpu_custom_call.1} parent=1 // loop_pre_header
      _
    $region3: #{tpu_custom_call.1} parent=1 // loop_header
      %s30 = sphi 0, %s34
      %p31 = scmp.ge.s32.totalorder %s30, 4
      %s40 = sphi 0, %s42
      %s43 = sphi 0, %s40
      %s44 = sphi 0, %s43
      %s60 = sphi 0, %s44
      %s66 = sphi 0, %s68
      %s69 = sphi 0, %s66
      %s70 = sphi 0, %s69
      %s86 = sphi 0, %s70
      %s92 = sphi 0, %s94
      %s95 = sphi 0, %s92
      %s96 = sphi 0, %s95
      %s112 = sphi 0, %s96
      %s116 = sphi 0, %s116
      %s118 = sphi 0, %s116
      %s119 = sphi 0, %s118
      %s133 = sphi 0, %s119
      %s137 = sphi 0, %s137
      %s139 = sphi 0, %s137
      %s140 = sphi 0, %s139
      %s154 = sphi 0, %s140
      %s158 = sphi 0, %s158
      %s160 = sphi 0, %s158
      %s161 = sphi 0, %s160
      %s175 = sphi 0, %s161
      %s179 = sphi 0, %s179
      %s181 = sphi 0, %s179
      %s182 = sphi 0, %s181
      %s196 = sphi 0, %s182
      %s200 = sphi 0, %s200
      %s202 = sphi 0, %s200
      %s203 = sphi 0, %s202
      %s217 = sphi 0, %s203
      %s221 = sphi 0, %s221
      %s223 = sphi 0, %s221
      %s224 = sphi 0, %s223
      %s238 = sphi 0, %s224
      %s242 = sphi 0, %s242
      %s244 = sphi 0, %s242
      %s245 = sphi 0, %s244
      %s259 = sphi 0, %s245
      %s263 = sphi 0, %s263
      %s265 = sphi 0, %s263
      %s266 = sphi 0, %s265
      %s280 = sphi 0, %s266
      %s284 = sphi 0, %s284
      %s286 = sphi 0, %s284
      %s287 = sphi 0, %s286
      %s301 = sphi 0, %s287
      %s305 = sphi 0, %s305
      %s307 = sphi 0, %s305
      %s308 = sphi 0, %s307
      %s322 = sphi 0, %s308
      %s326 = sphi 0, %s326
      %s328 = sphi 0, %s326
      %s329 = sphi 0, %s328
      %s343 = sphi 0, %s329
      %s347 = sphi 0, %s347
      %s349 = sphi 0, %s347
      %s350 = sphi 0, %s349
      %s364 = sphi 0, %s350
      %s368 = sphi 0, %s368
      %s370 = sphi 0, %s368
      %s371 = sphi 0, %s370
      %s385 = sphi 0, %s371
      %s389 = sphi 0, %s389
      %s391 = sphi 0, %s389
      %s392 = sphi 0, %s391
      %s406 = sphi 0, %s392
      %s410 = sphi 0, %s410
      %s412 = sphi 0, %s410
      %s413 = sphi 0, %s412
      %s427 = sphi 0, %s413
      %s431 = sphi 0, %s431
      %s433 = sphi 0, %s431
      %s434 = sphi 0, %s433
      %s448 = sphi 0, %s434
      %s452 = sphi 0, %s452
      %s454 = sphi 0, %s452
      %s455 = sphi 0, %s454
      %s469 = sphi 0, %s455
      %s475 = sphi 0, %s477
      %s478 = sphi 0, %s475
      %s479 = sphi 0, %s478
      %s495 = sphi 0, %s479
    $region4: #{tpu_custom_call.1} parent=1 // loop_header_branch
      %33 = sbr.rel (%p31) target = $region8
    $region5: #{tpu_custom_call.1} parent=1 // loop_body
      %s35 = ssub.s32 %s30, 1
      %s36 = ssub.s32 %s30, 2
      %s37 = sadd.s32 %s30, 1
      %s38 = ssub.s32 %s30, %s37
      %p39 = scmp.eq.s32.totalorder %s38, 0
      %s41 = sadd.s32 %s40, 1
      %s42 = scalar_select %p39, %s40, %s41
      %p45 = pneg %p39
      %p46 = scmp.eq.s32.totalorder %s30, 1
      %p47 = por %p45, %p46
      %p48 = scmp.ne.s32.totalorder %s40, %s43
      %p49 = scmp.eq.s32.totalorder %s30, 0
      %p50 = por %p48, %p49
      %p51 = scmp.ne.s32.totalorder %s40, %s43
      %p52 = scmp.eq.s32.totalorder %s35, 1
      %p53 = por %p51, %p52
      %p54 = scmp.ne.s32.totalorder %s43, %s44
      %p55 = scmp.eq.s32.totalorder %s35, 0
      %p56 = por %p54, %p55
      %p57 = scmp.ne.s32.totalorder %s43, %s44
      %p58 = scmp.eq.s32.totalorder %s36, 1
      %p59 = por %p57, %p58
      %p61 = scmp.ne.s32.totalorder %s44, %s60
      %p62 = scmp.eq.s32.totalorder %s36, 0
      %p63 = por %p61, %p62
      %s64 = ssub.s32 %s30, %s37
      %p65 = scmp.eq.s32.totalorder %s64, 0
      %s67 = sadd.s32 %s66, 1
      %s68 = scalar_select %p65, %s66, %s67
      %p71 = pneg %p65
      %p72 = scmp.eq.s32.totalorder %s30, 1
      %p73 = por %p71, %p72
      %p74 = scmp.ne.s32.totalorder %s66, %s69
      %p75 = scmp.eq.s32.totalorder %s30, 0
      %p76 = por %p74, %p75
      %p77 = scmp.ne.s32.totalorder %s66, %s69
      %p78 = scmp.eq.s32.totalorder %s35, 1
      %p79 = por %p77, %p78
      %p80 = scmp.ne.s32.totalorder %s69, %s70
      %p81 = scmp.eq.s32.totalorder %s35, 0
      %p82 = por %p80, %p81
      %p83 = scmp.ne.s32.totalorder %s69, %s70
      %p84 = scmp.eq.s32.totalorder %s36, 1
      %p85 = por %p83, %p84
      %p87 = scmp.ne.s32.totalorder %s70, %s86
      %p88 = scmp.eq.s32.totalorder %s36, 0
      %p89 = por %p87, %p88
      %s90 = ssub.s32 %s30, %s37
      %p91 = scmp.eq.s32.totalorder %s90, 0
      %s93 = sadd.s32 %s92, 1
      %s94 = scalar_select %p91, %s92, %s93
      %p97 = pneg %p91
      %p98 = scmp.eq.s32.totalorder %s30, 1
      %p99 = por %p97, %p98
      %p100 = scmp.ne.s32.totalorder %s92, %s95
      %p101 = scmp.eq.s32.totalorder %s30, 0
      %p102 = por %p100, %p101
      %p103 = scmp.ne.s32.totalorder %s92, %s95
      %p104 = scmp.eq.s32.totalorder %s35, 1
      %p105 = por %p103, %p104
      %p106 = scmp.ne.s32.totalorder %s95, %s96
      %p107 = scmp.eq.s32.totalorder %s35, 0
      %p108 = por %p106, %p107
      %p109 = scmp.ne.s32.totalorder %s95, %s96
      %p110 = scmp.eq.s32.totalorder %s36, 1
      %p111 = por %p109, %p110
      %p113 = scmp.ne.s32.totalorder %s96, %s112
      %p114 = scmp.eq.s32.totalorder %s36, 0
      %p115 = por %p113, %p114
      %s117 = sadd.s32 %s116, 1
      %p120 = scmp.eq.s32.totalorder %s30, 1
      %p121 = scmp.ne.s32.totalorder %s116, %s118
      %p122 = scmp.eq.s32.totalorder %s30, 0
      %p123 = por %p121, %p122
      %p124 = scmp.ne.s32.totalorder %s116, %s118
      %p125 = scmp.eq.s32.totalorder %s35, 1
      %p126 = por %p124, %p125
      %p127 = scmp.ne.s32.totalorder %s118, %s119
      %p128 = scmp.eq.s32.totalorder %s35, 0
      %p129 = por %p127, %p128
      %p130 = scmp.ne.s32.totalorder %s118, %s119
      %p131 = scmp.eq.s32.totalorder %s36, 1
      %p132 = por %p130, %p131
      %p134 = scmp.ne.s32.totalorder %s119, %s133
      %p135 = scmp.eq.s32.totalorder %s36, 0
      %p136 = por %p134, %p135
      %s138 = sadd.s32 %s137, 1
      %p141 = scmp.eq.s32.totalorder %s30, 1
      %p142 = scmp.ne.s32.totalorder %s137, %s139
      %p143 = scmp.eq.s32.totalorder %s30, 0
      %p144 = por %p142, %p143
      %p145 = scmp.ne.s32.totalorder %s137, %s139
      %p146 = scmp.eq.s32.totalorder %s35, 1
      %p147 = por %p145, %p146
      %p148 = scmp.ne.s32.totalorder %s139, %s140
      %p149 = scmp.eq.s32.totalorder %s35, 0
      %p150 = por %p148, %p149
      %p151 = scmp.ne.s32.totalorder %s139, %s140
      %p152 = scmp.eq.s32.totalorder %s36, 1
      %p153 = por %p151, %p152
      %p155 = scmp.ne.s32.totalorder %s140, %s154
      %p156 = scmp.eq.s32.totalorder %s36, 0
      %p157 = por %p155, %p156
      %s159 = sadd.s32 %s158, 1
      %p162 = scmp.eq.s32.totalorder %s30, 1
      %p163 = scmp.ne.s32.totalorder %s158, %s160
      %p164 = scmp.eq.s32.totalorder %s30, 0
      %p165 = por %p163, %p164
      %p166 = scmp.ne.s32.totalorder %s158, %s160
      %p167 = scmp.eq.s32.totalorder %s35, 1
      %p168 = por %p166, %p167
      %p169 = scmp.ne.s32.totalorder %s160, %s161
      %p170 = scmp.eq.s32.totalorder %s35, 0
      %p171 = por %p169, %p170
      %p172 = scmp.ne.s32.totalorder %s160, %s161
      %p173 = scmp.eq.s32.totalorder %s36, 1
      %p174 = por %p172, %p173
      %p176 = scmp.ne.s32.totalorder %s161, %s175
      %p177 = scmp.eq.s32.totalorder %s36, 0
      %p178 = por %p176, %p177
      %s180 = sadd.s32 %s179, 1
      %p183 = scmp.eq.s32.totalorder %s30, 1
      %p184 = scmp.ne.s32.totalorder %s179, %s181
      %p185 = scmp.eq.s32.totalorder %s30, 0
      %p186 = por %p184, %p185
      %p187 = scmp.ne.s32.totalorder %s179, %s181
      %p188 = scmp.eq.s32.totalorder %s35, 1
      %p189 = por %p187, %p188
      %p190 = scmp.ne.s32.totalorder %s181, %s182
      %p191 = scmp.eq.s32.totalorder %s35, 0
      %p192 = por %p190, %p191
      %p193 = scmp.ne.s32.totalorder %s181, %s182
      %p194 = scmp.eq.s32.totalorder %s36, 1
      %p195 = por %p193, %p194
      %p197 = scmp.ne.s32.totalorder %s182, %s196
      %p198 = scmp.eq.s32.totalorder %s36, 0
      %p199 = por %p197, %p198
      %s201 = sadd.s32 %s200, 1
      %p204 = scmp.eq.s32.totalorder %s30, 1
      %p205 = scmp.ne.s32.totalorder %s200, %s202
      %p206 = scmp.eq.s32.totalorder %s30, 0
      %p207 = por %p205, %p206
      %p208 = scmp.ne.s32.totalorder %s200, %s202
      %p209 = scmp.eq.s32.totalorder %s35, 1
      %p210 = por %p208, %p209
      %p211 = scmp.ne.s32.totalorder %s202, %s203
      %p212 = scmp.eq.s32.totalorder %s35, 0
      %p213 = por %p211, %p212
      %p214 = scmp.ne.s32.totalorder %s202, %s203
      %p215 = scmp.eq.s32.totalorder %s36, 1
      %p216 = por %p214, %p215
      %p218 = scmp.ne.s32.totalorder %s203, %s217
      %p219 = scmp.eq.s32.totalorder %s36, 0
      %p220 = por %p218, %p219
      %s222 = sadd.s32 %s221, 1
      %p225 = scmp.eq.s32.totalorder %s30, 1
      %p226 = scmp.ne.s32.totalorder %s221, %s223
      %p227 = scmp.eq.s32.totalorder %s30, 0
      %p228 = por %p226, %p227
      %p229 = scmp.ne.s32.totalorder %s221, %s223
      %p230 = scmp.eq.s32.totalorder %s35, 1
      %p231 = por %p229, %p230
      %p232 = scmp.ne.s32.totalorder %s223, %s224
      %p233 = scmp.eq.s32.totalorder %s35, 0
      %p234 = por %p232, %p233
      %p235 = scmp.ne.s32.totalorder %s223, %s224
      %p236 = scmp.eq.s32.totalorder %s36, 1
      %p237 = por %p235, %p236
      %p239 = scmp.ne.s32.totalorder %s224, %s238
      %p240 = scmp.eq.s32.totalorder %s36, 0
      %p241 = por %p239, %p240
      %s243 = sadd.s32 %s242, 1
      %p246 = scmp.eq.s32.totalorder %s30, 1
      %p247 = scmp.ne.s32.totalorder %s242, %s244
      %p248 = scmp.eq.s32.totalorder %s30, 0
      %p249 = por %p247, %p248
      %p250 = scmp.ne.s32.totalorder %s242, %s244
      %p251 = scmp.eq.s32.totalorder %s35, 1
      %p252 = por %p250, %p251
      %p253 = scmp.ne.s32.totalorder %s244, %s245
      %p254 = scmp.eq.s32.totalorder %s35, 0
      %p255 = por %p253, %p254
      %p256 = scmp.ne.s32.totalorder %s244, %s245
      %p257 = scmp.eq.s32.totalorder %s36, 1
      %p258 = por %p256, %p257
      %p260 = scmp.ne.s32.totalorder %s245, %s259
      %p261 = scmp.eq.s32.totalorder %s36, 0
      %p262 = por %p260, %p261
      %s264 = sadd.s32 %s263, 1
      %p267 = scmp.eq.s32.totalorder %s30, 1
      %p268 = scmp.ne.s32.totalorder %s263, %s265
      %p269 = scmp.eq.s32.totalorder %s30, 0
      %p270 = por %p268, %p269
      %p271 = scmp.ne.s32.totalorder %s263, %s265
      %p272 = scmp.eq.s32.totalorder %s35, 1
      %p273 = por %p271, %p272
      %p274 = scmp.ne.s32.totalorder %s265, %s266
      %p275 = scmp.eq.s32.totalorder %s35, 0
      %p276 = por %p274, %p275
      %p277 = scmp.ne.s32.totalorder %s265, %s266
      %p278 = scmp.eq.s32.totalorder %s36, 1
      %p279 = por %p277, %p278
      %p281 = scmp.ne.s32.totalorder %s266, %s280
      %p282 = scmp.eq.s32.totalorder %s36, 0
      %p283 = por %p281, %p282
      %s285 = sadd.s32 %s284, 1
      %p288 = scmp.eq.s32.totalorder %s30, 1
      %p289 = scmp.ne.s32.totalorder %s284, %s286
      %p290 = scmp.eq.s32.totalorder %s30, 0
      %p291 = por %p289, %p290
      %p292 = scmp.ne.s32.totalorder %s284, %s286
      %p293 = scmp.eq.s32.totalorder %s35, 1
      %p294 = por %p292, %p293
      %p295 = scmp.ne.s32.totalorder %s286, %s287
      %p296 = scmp.eq.s32.totalorder %s35, 0
      %p297 = por %p295, %p296
      %p298 = scmp.ne.s32.totalorder %s286, %s287
      %p299 = scmp.eq.s32.totalorder %s36, 1
      %p300 = por %p298, %p299
      %p302 = scmp.ne.s32.totalorder %s287, %s301
      %p303 = scmp.eq.s32.totalorder %s36, 0
      %p304 = por %p302, %p303
      %s306 = sadd.s32 %s305, 1
      %p309 = scmp.eq.s32.totalorder %s30, 1
      %p310 = scmp.ne.s32.totalorder %s305, %s307
      %p311 = scmp.eq.s32.totalorder %s30, 0
      %p312 = por %p310, %p311
      %p313 = scmp.ne.s32.totalorder %s305, %s307
      %p314 = scmp.eq.s32.totalorder %s35, 1
      %p315 = por %p313, %p314
      %p316 = scmp.ne.s32.totalorder %s307, %s308
      %p317 = scmp.eq.s32.totalorder %s35, 0
      %p318 = por %p316, %p317
      %p319 = scmp.ne.s32.totalorder %s307, %s308
      %p320 = scmp.eq.s32.totalorder %s36, 1
      %p321 = por %p319, %p320
      %p323 = scmp.ne.s32.totalorder %s308, %s322
      %p324 = scmp.eq.s32.totalorder %s36, 0
      %p325 = por %p323, %p324
      %s327 = sadd.s32 %s326, 1
      %p330 = scmp.eq.s32.totalorder %s30, 1
      %p331 = scmp.ne.s32.totalorder %s326, %s328
      %p332 = scmp.eq.s32.totalorder %s30, 0
      %p333 = por %p331, %p332
      %p334 = scmp.ne.s32.totalorder %s326, %s328
      %p335 = scmp.eq.s32.totalorder %s35, 1
      %p336 = por %p334, %p335
      %p337 = scmp.ne.s32.totalorder %s328, %s329
      %p338 = scmp.eq.s32.totalorder %s35, 0
      %p339 = por %p337, %p338
      %p340 = scmp.ne.s32.totalorder %s328, %s329
      %p341 = scmp.eq.s32.totalorder %s36, 1
      %p342 = por %p340, %p341
      %p344 = scmp.ne.s32.totalorder %s329, %s343
      %p345 = scmp.eq.s32.totalorder %s36, 0
      %p346 = por %p344, %p345
      %s348 = sadd.s32 %s347, 1
      %p351 = scmp.eq.s32.totalorder %s30, 1
      %p352 = scmp.ne.s32.totalorder %s347, %s349
      %p353 = scmp.eq.s32.totalorder %s30, 0
      %p354 = por %p352, %p353
      %p355 = scmp.ne.s32.totalorder %s347, %s349
      %p356 = scmp.eq.s32.totalorder %s35, 1
      %p357 = por %p355, %p356
      %p358 = scmp.ne.s32.totalorder %s349, %s350
      %p359 = scmp.eq.s32.totalorder %s35, 0
      %p360 = por %p358, %p359
      %p361 = scmp.ne.s32.totalorder %s349, %s350
      %p362 = scmp.eq.s32.totalorder %s36, 1
      %p363 = por %p361, %p362
      %p365 = scmp.ne.s32.totalorder %s350, %s364
      %p366 = scmp.eq.s32.totalorder %s36, 0
      %p367 = por %p365, %p366
      %s369 = sadd.s32 %s368, 1
      %p372 = scmp.eq.s32.totalorder %s30, 1
      %p373 = scmp.ne.s32.totalorder %s368, %s370
      %p374 = scmp.eq.s32.totalorder %s30, 0
      %p375 = por %p373, %p374
      %p376 = scmp.ne.s32.totalorder %s368, %s370
      %p377 = scmp.eq.s32.totalorder %s35, 1
      %p378 = por %p376, %p377
      %p379 = scmp.ne.s32.totalorder %s370, %s371
      %p380 = scmp.eq.s32.totalorder %s35, 0
      %p381 = por %p379, %p380
      %p382 = scmp.ne.s32.totalorder %s370, %s371
      %p383 = scmp.eq.s32.totalorder %s36, 1
      %p384 = por %p382, %p383
      %p386 = scmp.ne.s32.totalorder %s371, %s385
      %p387 = scmp.eq.s32.totalorder %s36, 0
      %p388 = por %p386, %p387
      %s390 = sadd.s32 %s389, 1
      %p393 = scmp.eq.s32.totalorder %s30, 1
      %p394 = scmp.ne.s32.totalorder %s389, %s391
      %p395 = scmp.eq.s32.totalorder %s30, 0
      %p396 = por %p394, %p395
      %p397 = scmp.ne.s32.totalorder %s389, %s391
      %p398 = scmp.eq.s32.totalorder %s35, 1
      %p399 = por %p397, %p398
      %p400 = scmp.ne.s32.totalorder %s391, %s392
      %p401 = scmp.eq.s32.totalorder %s35, 0
      %p402 = por %p400, %p401
      %p403 = scmp.ne.s32.totalorder %s391, %s392
      %p404 = scmp.eq.s32.totalorder %s36, 1
      %p405 = por %p403, %p404
      %p407 = scmp.ne.s32.totalorder %s392, %s406
      %p408 = scmp.eq.s32.totalorder %s36, 0
      %p409 = por %p407, %p408
      %s411 = sadd.s32 %s410, 1
      %p414 = scmp.eq.s32.totalorder %s30, 1
      %p415 = scmp.ne.s32.totalorder %s410, %s412
      %p416 = scmp.eq.s32.totalorder %s30, 0
      %p417 = por %p415, %p416
      %p418 = scmp.ne.s32.totalorder %s410, %s412
      %p419 = scmp.eq.s32.totalorder %s35, 1
      %p420 = por %p418, %p419
      %p421 = scmp.ne.s32.totalorder %s412, %s413
      %p422 = scmp.eq.s32.totalorder %s35, 0
      %p423 = por %p421, %p422
      %p424 = scmp.ne.s32.totalorder %s412, %s413
      %p425 = scmp.eq.s32.totalorder %s36, 1
      %p426 = por %p424, %p425
      %p428 = scmp.ne.s32.totalorder %s413, %s427
      %p429 = scmp.eq.s32.totalorder %s36, 0
      %p430 = por %p428, %p429
      %s432 = sadd.s32 %s431, 1
      %p435 = scmp.eq.s32.totalorder %s30, 1
      %p436 = scmp.ne.s32.totalorder %s431, %s433
      %p437 = scmp.eq.s32.totalorder %s30, 0
      %p438 = por %p436, %p437
      %p439 = scmp.ne.s32.totalorder %s431, %s433
      %p440 = scmp.eq.s32.totalorder %s35, 1
      %p441 = por %p439, %p440
      %p442 = scmp.ne.s32.totalorder %s433, %s434
      %p443 = scmp.eq.s32.totalorder %s35, 0
      %p444 = por %p442, %p443
      %p445 = scmp.ne.s32.totalorder %s433, %s434
      %p446 = scmp.eq.s32.totalorder %s36, 1
      %p447 = por %p445, %p446
      %p449 = scmp.ne.s32.totalorder %s434, %s448
      %p450 = scmp.eq.s32.totalorder %s36, 0
      %p451 = por %p449, %p450
      %s453 = sadd.s32 %s452, 1
      %p456 = scmp.eq.s32.totalorder %s30, 1
      %p457 = scmp.ne.s32.totalorder %s452, %s454
      %p458 = scmp.eq.s32.totalorder %s30, 0
      %p459 = por %p457, %p458
      %p460 = scmp.ne.s32.totalorder %s452, %s454
      %p461 = scmp.eq.s32.totalorder %s35, 1
      %p462 = por %p460, %p461
      %p463 = scmp.ne.s32.totalorder %s454, %s455
      %p464 = scmp.eq.s32.totalorder %s35, 0
      %p465 = por %p463, %p464
      %p466 = scmp.ne.s32.totalorder %s454, %s455
      %p467 = scmp.eq.s32.totalorder %s36, 1
      %p468 = por %p466, %p467
      %p470 = scmp.ne.s32.totalorder %s455, %s469
      %p471 = scmp.eq.s32.totalorder %s36, 0
      %p472 = por %p470, %p471
      %s473 = ssub.s32 %s30, %s37
      %p474 = scmp.eq.s32.totalorder %s473, 0
      %s476 = sadd.s32 %s475, 1
      %s477 = scalar_select %p474, %s475, %s476
      %p480 = pneg %p474
      %p481 = scmp.eq.s32.totalorder %s30, 1
      %p482 = por %p480, %p481
      %p483 = scmp.ne.s32.totalorder %s475, %s478
      %p484 = scmp.eq.s32.totalorder %s30, 0
      %p485 = por %p483, %p484
      %p486 = scmp.ne.s32.totalorder %s475, %s478
      %p487 = scmp.eq.s32.totalorder %s35, 1
      %p488 = por %p486, %p487
      %p489 = scmp.ne.s32.totalorder %s478, %s479
      %p490 = scmp.eq.s32.totalorder %s35, 0
      %p491 = por %p489, %p490
      %p492 = scmp.ne.s32.totalorder %s478, %s479
      %p493 = scmp.eq.s32.totalorder %s36, 1
      %p494 = por %p492, %p493
      %p496 = scmp.ne.s32.totalorder %s479, %s495
      %p497 = scmp.eq.s32.totalorder %s36, 0
      %p498 = por %p496, %p497
      %p499 = scmp.le.s32.totalorder 1, %s30
      %p500 = scmp.lt.s32.totalorder %s30, 3
      %p501 = pnand %p499, %p500
      %p502 = pneg %p501
      // Predicated region
      $region9: #{tpu_custom_call.1} parent=5 // pred_check
        _
      $region10: #{tpu_custom_call.1} parent=5 // pred_check_branch
        %504 = sbr.rel (%p501) target = $region12
      $region11: #{tpu_custom_call.1} parent=5 // pred_region
        %s505 = ssub.s32 %s30, 1
        // Predicated region
        $region13: #{tpu_custom_call.1} parent=11 // pred_check
          %p506 = pneg %p129
        $region14: #{tpu_custom_call.1} parent=11 // pred_check_branch
          %508 = sbr.rel (%p506) target = $region16
        $region15: #{tpu_custom_call.1} parent=11 // pred_region
          %s510 = ssub.s32 32768, 32768
          %511 = vsyncadd [#allocation3], %s510
          %s512 = sshll.u32 [#allocation2], 4
          %s513 = int_to_ptr.vmem [resolvable:$true] %s512
          %518 = dma.hbm_to_vmem [thread:$0]  %s3, 32768, %s513, [#allocation3], 1024, 1024, 64
        $region16: #{tpu_custom_call.1} parent=11 // pred_fallthru
          _
        // Predicated region
        $region17: #{tpu_custom_call.1} parent=11 // pred_check
          %p519 = pneg %p150
        $region18: #{tpu_custom_call.1} parent=11 // pred_check_branch
          %521 = sbr.rel (%p519) target = $region20
        $region19: #{tpu_custom_call.1} parent=11 // pred_region
          _
        $region20: #{tpu_custom_call.1} parent=11 // pred_fallthru
          _
        // Predicated region
        $region21: #{tpu_custom_call.1} parent=11 // pred_check
          %p522 = pneg %p171
        $region22: #{tpu_custom_call.1} parent=11 // pred_check_branch
          %524 = sbr.rel (%p522) target = $region24
        $region23: #{tpu_custom_call.1} parent=11 // pred_region
          _
        $region24: #{tpu_custom_call.1} parent=11 // pred_fallthru
          _
        // Predicated region
        $region25: #{tpu_custom_call.1} parent=11 // pred_check
          %p525 = pneg %p192
        $region26: #{tpu_custom_call.1} parent=11 // pred_check_branch
          %527 = sbr.rel (%p525) target = $region28
        $region27: #{tpu_custom_call.1} parent=11 // pred_region
          _
        $region28: #{tpu_custom_call.1} parent=11 // pred_fallthru
          _
        // Predicated region
        $region29: #{tpu_custom_call.1} parent=11 // pred_check
          %p528 = pneg %p213
        $region30: #{tpu_custom_call.1} parent=11 // pred_check_branch
          %530 = sbr.rel (%p528) target = $region32
        $region31: #{tpu_custom_call.1} parent=11 // pred_region
          _
        $region32: #{tpu_custom_call.1} parent=11 // pred_fallthru
          _
        // Predicated region
        $region33: #{tpu_custom_call.1} parent=11 // pred_check
          %p531 = pneg %p234
        $region34: #{tpu_custom_call.1} parent=11 // pred_check_branch
          %533 = sbr.rel (%p531) target = $region36
        $region35: #{tpu_custom_call.1} parent=11 // pred_region
          _
        $region36: #{tpu_custom_call.1} parent=11 // pred_fallthru
          _
        // Predicated region
        $region37: #{tpu_custom_call.1} parent=11 // pred_check
          %p534 = pneg %p255
        $region38: #{tpu_custom_call.1} parent=11 // pred_check_branch
          %536 = sbr.rel (%p534) target = $region40
        $region39: #{tpu_custom_call.1} parent=11 // pred_region
          _
        $region40: #{tpu_custom_call.1} parent=11 // pred_fallthru
          _
        // Predicated region
        $region41: #{tpu_custom_call.1} parent=11 // pred_check
          %p537 = pneg %p276
        $region42: #{tpu_custom_call.1} parent=11 // pred_check_branch
          %539 = sbr.rel (%p537) target = $region44
        $region43: #{tpu_custom_call.1} parent=11 // pred_region
          _
        $region44: #{tpu_custom_call.1} parent=11 // pred_fallthru
          _
        // Predicated region
        $region45: #{tpu_custom_call.1} parent=11 // pred_check
          %p540 = pneg %p297
        $region46: #{tpu_custom_call.1} parent=11 // pred_check_branch
          %542 = sbr.rel (%p540) target = $region48
        $region47: #{tpu_custom_call.1} parent=11 // pred_region
          _
        $region48: #{tpu_custom_call.1} parent=11 // pred_fallthru
          _
        // Predicated region
        $region49: #{tpu_custom_call.1} parent=11 // pred_check
          %p543 = pneg %p318
        $region50: #{tpu_custom_call.1} parent=11 // pred_check_branch
          %545 = sbr.rel (%p543) target = $region52
        $region51: #{tpu_custom_call.1} parent=11 // pred_region
          _
        $region52: #{tpu_custom_call.1} parent=11 // pred_fallthru
          _
        // Predicated region
        $region53: #{tpu_custom_call.1} parent=11 // pred_check
          %p546 = pneg %p339
        $region54: #{tpu_custom_call.1} parent=11 // pred_check_branch
          %548 = sbr.rel (%p546) target = $region56
        $region55: #{tpu_custom_call.1} parent=11 // pred_region
          _
        $region56: #{tpu_custom_call.1} parent=11 // pred_fallthru
          _
        // Predicated region
        $region57: #{tpu_custom_call.1} parent=11 // pred_check
          %p549 = pneg %p360
        $region58: #{tpu_custom_call.1} parent=11 // pred_check_branch
          %551 = sbr.rel (%p549) target = $region60
        $region59: #{tpu_custom_call.1} parent=11 // pred_region
          _
        $region60: #{tpu_custom_call.1} parent=11 // pred_fallthru
          _
        // Predicated region
        $region61: #{tpu_custom_call.1} parent=11 // pred_check
          %p552 = pneg %p381
        $region62: #{tpu_custom_call.1} parent=11 // pred_check_branch
          %554 = sbr.rel (%p552) target = $region64
        $region63: #{tpu_custom_call.1} parent=11 // pred_region
          _
        $region64: #{tpu_custom_call.1} parent=11 // pred_fallthru
          _
        // Predicated region
        $region65: #{tpu_custom_call.1} parent=11 // pred_check
          %p555 = pneg %p402
        $region66: #{tpu_custom_call.1} parent=11 // pred_check_branch
          %557 = sbr.rel (%p555) target = $region68
        $region67: #{tpu_custom_call.1} parent=11 // pred_region
          _
        $region68: #{tpu_custom_call.1} parent=11 // pred_fallthru
          _
        // Predicated region
        $region69: #{tpu_custom_call.1} parent=11 // pred_check
          %p558 = pneg %p423
        $region70: #{tpu_custom_call.1} parent=11 // pred_check_branch
          %560 = sbr.rel (%p558) target = $region72
        $region71: #{tpu_custom_call.1} parent=11 // pred_region
          _
        $region72: #{tpu_custom_call.1} parent=11 // pred_fallthru
          _
        // Predicated region
        $region73: #{tpu_custom_call.1} parent=11 // pred_check
          %p561 = pneg %p444
        $region74: #{tpu_custom_call.1} parent=11 // pred_check_branch
          %563 = sbr.rel (%p561) target = $region76
        $region75: #{tpu_custom_call.1} parent=11 // pred_region
          _
        $region76: #{tpu_custom_call.1} parent=11 // pred_fallthru
          _
        // Predicated region
        $region77: #{tpu_custom_call.1} parent=11 // pred_check
          %p564 = pneg %p465
        $region78: #{tpu_custom_call.1} parent=11 // pred_check_branch
          %566 = sbr.rel (%p564) target = $region80
        $region79: #{tpu_custom_call.1} parent=11 // pred_region
          _
        $region80: #{tpu_custom_call.1} parent=11 // pred_fallthru
          _
      $region12: #{tpu_custom_call.1} parent=5 // pred_fallthru
        _
      %p567 = scmp.lt.s32.totalorder %s30, 2
      // Predicated region
      $region81: #{tpu_custom_call.1} parent=5 // pred_check
        %p568 = pneg %p567
      $region82: #{tpu_custom_call.1} parent=5 // pred_check_branch
        %570 = sbr.rel (%p568) target = $region84
      $region83: #{tpu_custom_call.1} parent=5 // pred_region
        // Predicated region
        $region85: #{tpu_custom_call.1} parent=83 // pred_check
          %p571 = pneg %p50
        $region86: #{tpu_custom_call.1} parent=83 // pred_check_branch
          %573 = sbr.rel (%p571) target = $region88
        $region87: #{tpu_custom_call.1} parent=83 // pred_region
          %p574 = scmp.lt.s32.totalorder %s30, 1
          %s575 = scalar_select %p574, %s30, 1
          %s576 = smul.addr %s575, 2
          %s577 = smul.addr %s576, 4
          %s578 = scalar_lea.vmem %s0, %s577
        $region88: #{tpu_custom_call.1} parent=83 // pred_fallthru
          _
        // Predicated region
        $region89: #{tpu_custom_call.1} parent=83 // pred_check
          %p579 = pneg %p76
        $region90: #{tpu_custom_call.1} parent=83 // pred_check_branch
          %581 = sbr.rel (%p579) target = $region92
        $region91: #{tpu_custom_call.1} parent=83 // pred_region
          %p582 = scmp.lt.s32.totalorder %s30, 1
          %s583 = scalar_select %p582, %s30, 1
          %s584 = smul.addr %s583, 8
          %s585 = smul.addr %s584, 4
          %s586 = scalar_lea.vmem %s1, %s585
        $region92: #{tpu_custom_call.1} parent=83 // pred_fallthru
          _
        // Predicated region
        $region93: #{tpu_custom_call.1} parent=83 // pred_check
          %p587 = pneg %p102
        $region94: #{tpu_custom_call.1} parent=83 // pred_check_branch
          %589 = sbr.rel (%p587) target = $region96
        $region95: #{tpu_custom_call.1} parent=83 // pred_region
          %p590 = scmp.lt.s32.totalorder %s30, 1
          %s591 = scalar_select %p590, %s30, 1
          %s592 = smul.addr %s591, 4
          %s593 = smul.addr %s592, 8
          %s594 = scalar_lea.vmem %s2, %s593
        $region96: #{tpu_custom_call.1} parent=83 // pred_fallthru
          _
      $region84: #{tpu_custom_call.1} parent=5 // pred_fallthru
        _
      %p595 = scmp.le.s32.totalorder 1, %s30
      %p596 = scmp.lt.s32.totalorder %s30, 3
      %p597 = pnand %p595, %p596
      %p598 = pneg %p597
      // Predicated region
      $region97: #{tpu_custom_call.1} parent=5 // pred_check
        _
      $region98: #{tpu_custom_call.1} parent=5 // pred_check_branch
        %600 = sbr.rel (%p597) target = $region100
      $region99: #{tpu_custom_call.1} parent=5 // pred_region
        %s601 = ssub.s32 %s30, 1
        // Predicated region
        $region101: #{tpu_custom_call.1} parent=99 // pred_check
          %p602 = pneg %p129
        $region102: #{tpu_custom_call.1} parent=99 // pred_check_branch
          %604 = sbr.rel (%p602) target = $region104
        $region103: #{tpu_custom_call.1} parent=99 // pred_region
          %605 = dma.done [#allocation3], 32768
        $region104: #{tpu_custom_call.1} parent=99 // pred_fallthru
          _
        %p606 = scmp.lt.s32.totalorder %s35, 1
        %s607 = scalar_select %p606, %s35, 1
        %s608 = smul.addr %s607, 2
        %s609 = smul.addr %s608, 4
        %s610 = scalar_lea.vmem %s0, %s609
        %p611 = pneg %p56
        %p612 = pneg %p53
        %p613 = scmp.lt.s32.totalorder %s35, 1
        %s614 = scalar_select %p613, %s35, 1
        %s615 = smul.addr %s614, 8
        %s616 = smul.addr %s615, 4
        %s617 = scalar_lea.vmem %s1, %s616
        %p618 = pneg %p82
        %p619 = pneg %p79
        %p620 = scmp.lt.s32.totalorder %s35, 1
        %s621 = scalar_select %p620, %s35, 1
        %s622 = smul.addr %s621, 4
        %s623 = smul.addr %s622, 8
        %s624 = scalar_lea.vmem %s2, %s623
        %p625 = pneg %p108
        %p626 = pneg %p105
        %p627 = pneg %p129
        %p628 = pneg %p126
        %p629 = pneg %p150
        %p630 = pneg %p147
        %p631 = pneg %p171
        %p632 = pneg %p168
        %p633 = pneg %p192
        %p634 = pneg %p189
        %p635 = pneg %p213
        %p636 = pneg %p210
        %p637 = pneg %p234
        %p638 = pneg %p231
        %p639 = pneg %p255
        %p640 = pneg %p252
        %p641 = pneg %p276
        %p642 = pneg %p273
        %p643 = pneg %p297
        %p644 = pneg %p294
        %p645 = pneg %p318
        %p646 = pneg %p315
        %p647 = pneg %p339
        %p648 = pneg %p336
        %p649 = pneg %p360
        %p650 = pneg %p357
        %p651 = pneg %p381
        %p652 = pneg %p378
        %p653 = pneg %p402
        %p654 = pneg %p399
        %p655 = pneg %p423
        %p656 = pneg %p420
        %p657 = pneg %p444
        %p658 = pneg %p441
        %p659 = pneg %p465
        %p660 = pneg %p462
        %p661 = pneg %p491
        %p662 = pneg %p488
        %s663 = sand.u32 %s478, 1
        %s664 = scalar_lea.sflag [#allocation4], %s663
        %s665 = sand.u32 %s478, 1
        %s666 = smul.addr %s665, 64
        %s667 = scalar_lea.vmem [#allocation5], %s666
        %p668 = scmp.lt.s32.totalorder %s35, 1
        %s669 = scalar_select %p668, %s35, 1
        %s670 = smul.addr %s669, 2
        %s671 = smul.addr %s670, 4
        %s672 = scalar_lea.vmem %s0, %s671
        %p673 = scmp.lt.s32.totalorder %s35, 1
        %s674 = scalar_select %p673, %s35, 1
        %s675 = smul.addr %s674, 8
        %s676 = smul.addr %s675, 4
        %s677 = scalar_lea.vmem %s1, %s676
        %p678 = scmp.lt.s32.totalorder %s35, 1
        %s679 = scalar_select %p678, %s35, 1
        %s680 = smul.addr %s679, 4
        %s681 = smul.addr %s680, 8
        %s682 = scalar_lea.vmem %s2, %s681
        %v683 = vld [vmem:[%s4] sm:$0xff]
        %v684 = vld [vmem:[%s5] sm:$0xff]
        %v685 = vld [vmem:[%s672] sm:$0xff]
        %v686 = vld [vmem:[#allocation2] sm:$0xff]
        %v687 = vld [vmem:[#allocation2 + $0x8] sm:$0xff]
        %v688 = vld [vmem:[#allocation2 + $0x10] sm:$0xff]
        %v689 = vld [vmem:[#allocation2 + $0x18] sm:$0xff]
        %v690 = vld [vmem:[#allocation2 + $0x20] sm:$0xff]
        %v691 = vld [vmem:[#allocation2 + $0x28] sm:$0xff]
        %v692 = vld [vmem:[#allocation2 + $0x30] sm:$0xff]
        %v693 = vld [vmem:[#allocation2 + $0x38] sm:$0xff]
        %v694 = vld [vmem:[#allocation2 + $0x40] sm:$0xff]
        %v695 = vld [vmem:[#allocation2 + $0x48] sm:$0xff]
        %v696 = vld [vmem:[#allocation2 + $0x50] sm:$0xff]
        %v697 = vld [vmem:[#allocation2 + $0x58] sm:$0xff]
        %v698 = vld [vmem:[#allocation2 + $0x60] sm:$0xff]
        %v699 = vld [vmem:[#allocation2 + $0x68] sm:$0xff]
        %v700 = vld [vmem:[#allocation2 + $0x70] sm:$0xff]
        %v701 = vld [vmem:[#allocation2 + $0x78] sm:$0xff]
        %v702 = vld [vmem:[#allocation2 + $0x80] sm:$0xff]
        %v703 = vld [vmem:[#allocation2 + $0x88] sm:$0xff]
        %v704 = vld [vmem:[#allocation2 + $0x90] sm:$0xff]
        %v705 = vld [vmem:[#allocation2 + $0x98] sm:$0xff]
        %v706 = vld [vmem:[#allocation2 + $0xa0] sm:$0xff]
        %v707 = vld [vmem:[#allocation2 + $0xa8] sm:$0xff]
        %v708 = vld [vmem:[#allocation2 + $0xb0] sm:$0xff]
        %v709 = vld [vmem:[#allocation2 + $0xb8] sm:$0xff]
        %v710 = vld [vmem:[#allocation2 + $0xc0] sm:$0xff]
        %v711 = vld [vmem:[#allocation2 + $0xc8] sm:$0xff]
        %v712 = vld [vmem:[#allocation2 + $0xd0] sm:$0xff]
        %v713 = vld [vmem:[#allocation2 + $0xd8] sm:$0xff]
        %v714 = vld [vmem:[#allocation2 + $0xe0] sm:$0xff]
        %v715 = vld [vmem:[#allocation2 + $0xe8] sm:$0xff]
        %v716 = vld [vmem:[#allocation2 + $0xf0] sm:$0xff]
        %v717 = vld [vmem:[#allocation2 + $0xf8] sm:$0xff]
        %v718 = vld [vmem:[#allocation2 + $0x100] sm:$0xff]
        %v719 = vld [vmem:[#allocation2 + $0x108] sm:$0xff]
        %v720 = vld [vmem:[#allocation2 + $0x110] sm:$0xff]
        %v721 = vld [vmem:[#allocation2 + $0x118] sm:$0xff]
        %v722 = vld [vmem:[#allocation2 + $0x120] sm:$0xff]
        %v723 = vld [vmem:[#allocation2 + $0x128] sm:$0xff]
        %v724 = vld [vmem:[#allocation2 + $0x130] sm:$0xff]
        %v725 = vld [vmem:[#allocation2 + $0x138] sm:$0xff]
        %v726 = vld [vmem:[#allocation2 + $0x140] sm:$0xff]
        %v727 = vld [vmem:[#allocation2 + $0x148] sm:$0xff]
        %v728 = vld [vmem:[#allocation2 + $0x150] sm:$0xff]
        %v729 = vld [vmem:[#allocation2 + $0x158] sm:$0xff]
        %v730 = vld [vmem:[#allocation2 + $0x160] sm:$0xff]
        %v731 = vld [vmem:[#allocation2 + $0x168] sm:$0xff]
        %v732 = vld [vmem:[#allocation2 + $0x170] sm:$0xff]
        %v733 = vld [vmem:[#allocation2 + $0x178] sm:$0xff]
        %v734 = vld [vmem:[#allocation2 + $0x180] sm:$0xff]
        %v735 = vld [vmem:[#allocation2 + $0x188] sm:$0xff]
        %v736 = vld [vmem:[#allocation2 + $0x190] sm:$0xff]
        %v737 = vld [vmem:[#allocation2 + $0x198] sm:$0xff]
        %v738 = vld [vmem:[#allocation2 + $0x1a0] sm:$0xff]
        %v739 = vld [vmem:[#allocation2 + $0x1a8] sm:$0xff]
        %v740 = vld [vmem:[#allocation2 + $0x1b0] sm:$0xff]
        %v741 = vld [vmem:[#allocation2 + $0x1b8] sm:$0xff]
        %v742 = vld [vmem:[#allocation2 + $0x1c0] sm:$0xff]
        %v743 = vld [vmem:[#allocation2 + $0x1c8] sm:$0xff]
        %v744 = vld [vmem:[#allocation2 + $0x1d0] sm:$0xff]
        %v745 = vld [vmem:[#allocation2 + $0x1d8] sm:$0xff]
        %v746 = vld [vmem:[#allocation2 + $0x1e0] sm:$0xff]
        %v747 = vld [vmem:[#allocation2 + $0x1e8] sm:$0xff]
        %v748 = vld [vmem:[#allocation2 + $0x1f0] sm:$0xff]
        %v749 = vld [vmem:[#allocation2 + $0x1f8] sm:$0xff]
        %v750 = vld [vmem:[#allocation2 + $0x200] sm:$0xff]
        %v751 = vld [vmem:[#allocation2 + $0x208] sm:$0xff]
        %v752 = vld [vmem:[#allocation2 + $0x210] sm:$0xff]
        %v753 = vld [vmem:[#allocation2 + $0x218] sm:$0xff]
        %v754 = vld [vmem:[#allocation2 + $0x220] sm:$0xff]
        %v755 = vld [vmem:[#allocation2 + $0x228] sm:$0xff]
        %v756 = vld [vmem:[#allocation2 + $0x230] sm:$0xff]
        %v757 = vld [vmem:[#allocation2 + $0x238] sm:$0xff]
        %v758 = vld [vmem:[#allocation2 + $0x240] sm:$0xff]
        %v759 = vld [vmem:[#allocation2 + $0x248] sm:$0xff]
        %v760 = vld [vmem:[#allocation2 + $0x250] sm:$0xff]
        %v761 = vld [vmem:[#allocation2 + $0x258] sm:$0xff]
        %v762 = vld [vmem:[#allocation2 + $0x260] sm:$0xff]
        %v763 = vld [vmem:[#allocation2 + $0x268] sm:$0xff]
        %v764 = vld [vmem:[#allocation2 + $0x270] sm:$0xff]
        %v765 = vld [vmem:[#allocation2 + $0x278] sm:$0xff]
        %v766 = vld [vmem:[#allocation2 + $0x280] sm:$0xff]
        %v767 = vld [vmem:[#allocation2 + $0x288] sm:$0xff]
        %v768 = vld [vmem:[#allocation2 + $0x290] sm:$0xff]
        %v769 = vld [vmem:[#allocation2 + $0x298] sm:$0xff]
        %v770 = vld [vmem:[#allocation2 + $0x2a0] sm:$0xff]
        %v771 = vld [vmem:[#allocation2 + $0x2a8] sm:$0xff]
        %v772 = vld [vmem:[#allocation2 + $0x2b0] sm:$0xff]
        %v773 = vld [vmem:[#allocation2 + $0x2b8] sm:$0xff]
        %v774 = vld [vmem:[#allocation2 + $0x2c0] sm:$0xff]
        %v775 = vld [vmem:[#allocation2 + $0x2c8] sm:$0xff]
        %v776 = vld [vmem:[#allocation2 + $0x2d0] sm:$0xff]
        %v777 = vld [vmem:[#allocation2 + $0x2d8] sm:$0xff]
        %v778 = vld [vmem:[#allocation2 + $0x2e0] sm:$0xff]
        %v779 = vld [vmem:[#allocation2 + $0x2e8] sm:$0xff]
        %v780 = vld [vmem:[#allocation2 + $0x2f0] sm:$0xff]
        %v781 = vld [vmem:[#allocation2 + $0x2f8] sm:$0xff]
        %v782 = vld [vmem:[#allocation2 + $0x300] sm:$0xff]
        %v783 = vld [vmem:[#allocation2 + $0x308] sm:$0xff]
        %v784 = vld [vmem:[#allocation2 + $0x310] sm:$0xff]
        %v785 = vld [vmem:[#allocation2 + $0x318] sm:$0xff]
        %v786 = vld [vmem:[#allocation2 + $0x320] sm:$0xff]
        %v787 = vld [vmem:[#allocation2 + $0x328] sm:$0xff]
        %v788 = vld [vmem:[#allocation2 + $0x330] sm:$0xff]
        %v789 = vld [vmem:[#allocation2 + $0x338] sm:$0xff]
        %v790 = vld [vmem:[#allocation2 + $0x340] sm:$0xff]
        %v791 = vld [vmem:[#allocation2 + $0x348] sm:$0xff]
        %v792 = vld [vmem:[#allocation2 + $0x350] sm:$0xff]
        %v793 = vld [vmem:[#allocation2 + $0x358] sm:$0xff]
        %v794 = vld [vmem:[#allocation2 + $0x360] sm:$0xff]
        %v795 = vld [vmem:[#allocation2 + $0x368] sm:$0xff]
        %v796 = vld [vmem:[#allocation2 + $0x370] sm:$0xff]
        %v797 = vld [vmem:[#allocation2 + $0x378] sm:$0xff]
        %v798 = vld [vmem:[#allocation2 + $0x380] sm:$0xff]
        %v799 = vld [vmem:[#allocation2 + $0x388] sm:$0xff]
        %v800 = vld [vmem:[#allocation2 + $0x390] sm:$0xff]
        %v801 = vld [vmem:[#allocation2 + $0x398] sm:$0xff]
        %v802 = vld [vmem:[#allocation2 + $0x3a0] sm:$0xff]
        %v803 = vld [vmem:[#allocation2 + $0x3a8] sm:$0xff]
        %v804 = vld [vmem:[#allocation2 + $0x3b0] sm:$0xff]
        %v805 = vld [vmem:[#allocation2 + $0x3b8] sm:$0xff]
        %v806 = vld [vmem:[#allocation2 + $0x3c0] sm:$0xff]
        %v807 = vld [vmem:[#allocation2 + $0x3c8] sm:$0xff]
        %v808 = vld [vmem:[#allocation2 + $0x3d0] sm:$0xff]
        %v809 = vld [vmem:[#allocation2 + $0x3d8] sm:$0xff]
        %v810 = vld [vmem:[#allocation2 + $0x3e0] sm:$0xff]
        %v811 = vld [vmem:[#allocation2 + $0x3e8] sm:$0xff]
        %v812 = vld [vmem:[#allocation2 + $0x3f0] sm:$0xff]
        %v813 = vld [vmem:[#allocation2 + $0x3f8] sm:$0xff]
        %v814 = vld [vmem:[#allocation2 + $0x400] sm:$0xff]
        %v815 = vld [vmem:[#allocation2 + $0x408] sm:$0xff]
        %v816 = vld [vmem:[#allocation2 + $0x410] sm:$0xff]
        %v817 = vld [vmem:[#allocation2 + $0x418] sm:$0xff]
        %v818 = vld [vmem:[#allocation2 + $0x420] sm:$0xff]
        %v819 = vld [vmem:[#allocation2 + $0x428] sm:$0xff]
        %v820 = vld [vmem:[#allocation2 + $0x430] sm:$0xff]
        %v821 = vld [vmem:[#allocation2 + $0x438] sm:$0xff]
        %v822 = vld [vmem:[#allocation2 + $0x440] sm:$0xff]
        %v823 = vld [vmem:[#allocation2 + $0x448] sm:$0xff]
        %v824 = vld [vmem:[#allocation2 + $0x450] sm:$0xff]
        %v825 = vld [vmem:[#allocation2 + $0x458] sm:$0xff]
        %v826 = vld [vmem:[#allocation2 + $0x460] sm:$0xff]
        %v827 = vld [vmem:[#allocation2 + $0x468] sm:$0xff]
        %v828 = vld [vmem:[#allocation2 + $0x470] sm:$0xff]
        %v829 = vld [vmem:[#allocation2 + $0x478] sm:$0xff]
        %v830 = vld [vmem:[#allocation2 + $0x480] sm:$0xff]
        %v831 = vld [vmem:[#allocation2 + $0x488] sm:$0xff]
        %v832 = vld [vmem:[#allocation2 + $0x490] sm:$0xff]
        %v833 = vld [vmem:[#allocation2 + $0x498] sm:$0xff]
        %v834 = vld [vmem:[#allocation2 + $0x4a0] sm:$0xff]
        %v835 = vld [vmem:[#allocation2 + $0x4a8] sm:$0xff]
        %v836 = vld [vmem:[#allocation2 + $0x4b0] sm:$0xff]
        %v837 = vld [vmem:[#allocation2 + $0x4b8] sm:$0xff]
        %v838 = vld [vmem:[#allocation2 + $0x4c0] sm:$0xff]
        %v839 = vld [vmem:[#allocation2 + $0x4c8] sm:$0xff]
        %v840 = vld [vmem:[#allocation2 + $0x4d0] sm:$0xff]
        %v841 = vld [vmem:[#allocation2 + $0x4d8] sm:$0xff]
        %v842 = vld [vmem:[#allocation2 + $0x4e0] sm:$0xff]
        %v843 = vld [vmem:[#allocation2 + $0x4e8] sm:$0xff]
        %v844 = vld [vmem:[#allocation2 + $0x4f0] sm:$0xff]
        %v845 = vld [vmem:[#allocation2 + $0x4f8] sm:$0xff]
        %v846 = vld [vmem:[#allocation2 + $0x500] sm:$0xff]
        %v847 = vld [vmem:[#allocation2 + $0x508] sm:$0xff]
        %v848 = vld [vmem:[#allocation2 + $0x510] sm:$0xff]
        %v849 = vld [vmem:[#allocation2 + $0x518] sm:$0xff]
        %v850 = vld [vmem:[#allocation2 + $0x520] sm:$0xff]
        %v851 = vld [vmem:[#allocation2 + $0x528] sm:$0xff]
        %v852 = vld [vmem:[#allocation2 + $0x530] sm:$0xff]
        %v853 = vld [vmem:[#allocation2 + $0x538] sm:$0xff]
        %v854 = vld [vmem:[#allocation2 + $0x540] sm:$0xff]
        %v855 = vld [vmem:[#allocation2 + $0x548] sm:$0xff]
        %v856 = vld [vmem:[#allocation2 + $0x550] sm:$0xff]
        %v857 = vld [vmem:[#allocation2 + $0x558] sm:$0xff]
        %v858 = vld [vmem:[#allocation2 + $0x560] sm:$0xff]
        %v859 = vld [vmem:[#allocation2 + $0x568] sm:$0xff]
        %v860 = vld [vmem:[#allocation2 + $0x570] sm:$0xff]
        %v861 = vld [vmem:[#allocation2 + $0x578] sm:$0xff]
        %v862 = vld [vmem:[#allocation2 + $0x580] sm:$0xff]
        %v863 = vld [vmem:[#allocation2 + $0x588] sm:$0xff]
        %v864 = vld [vmem:[#allocation2 + $0x590] sm:$0xff]
        %v865 = vld [vmem:[#allocation2 + $0x598] sm:$0xff]
        %v866 = vld [vmem:[#allocation2 + $0x5a0] sm:$0xff]
        %v867 = vld [vmem:[#allocation2 + $0x5a8] sm:$0xff]
        %v868 = vld [vmem:[#allocation2 + $0x5b0] sm:$0xff]
        %v869 = vld [vmem:[#allocation2 + $0x5b8] sm:$0xff]
        %v870 = vld [vmem:[#allocation2 + $0x5c0] sm:$0xff]
        %v871 = vld [vmem:[#allocation2 + $0x5c8] sm:$0xff]
        %v872 = vld [vmem:[#allocation2 + $0x5d0] sm:$0xff]
        %v873 = vld [vmem:[#allocation2 + $0x5d8] sm:$0xff]
        %v874 = vld [vmem:[#allocation2 + $0x5e0] sm:$0xff]
        %v875 = vld [vmem:[#allocation2 + $0x5e8] sm:$0xff]
        %v876 = vld [vmem:[#allocation2 + $0x5f0] sm:$0xff]
        %v877 = vld [vmem:[#allocation2 + $0x5f8] sm:$0xff]
        %v878 = vld [vmem:[#allocation2 + $0x600] sm:$0xff]
        %v879 = vld [vmem:[#allocation2 + $0x608] sm:$0xff]
        %v880 = vld [vmem:[#allocation2 + $0x610] sm:$0xff]
        %v881 = vld [vmem:[#allocation2 + $0x618] sm:$0xff]
        %v882 = vld [vmem:[#allocation2 + $0x620] sm:$0xff]
        %v883 = vld [vmem:[#allocation2 + $0x628] sm:$0xff]
        %v884 = vld [vmem:[#allocation2 + $0x630] sm:$0xff]
        %v885 = vld [vmem:[#allocation2 + $0x638] sm:$0xff]
        %v886 = vld [vmem:[#allocation2 + $0x640] sm:$0xff]
        %v887 = vld [vmem:[#allocation2 + $0x648] sm:$0xff]
        %v888 = vld [vmem:[#allocation2 + $0x650] sm:$0xff]
        %v889 = vld [vmem:[#allocation2 + $0x658] sm:$0xff]
        %v890 = vld [vmem:[#allocation2 + $0x660] sm:$0xff]
        %v891 = vld [vmem:[#allocation2 + $0x668] sm:$0xff]
        %v892 = vld [vmem:[#allocation2 + $0x670] sm:$0xff]
        %v893 = vld [vmem:[#allocation2 + $0x678] sm:$0xff]
        %v894 = vld [vmem:[#allocation2 + $0x680] sm:$0xff]
        %v895 = vld [vmem:[#allocation2 + $0x688] sm:$0xff]
        %v896 = vld [vmem:[#allocation2 + $0x690] sm:$0xff]
        %v897 = vld [vmem:[#allocation2 + $0x698] sm:$0xff]
        %v898 = vld [vmem:[#allocation2 + $0x6a0] sm:$0xff]
        %v899 = vld [vmem:[#allocation2 + $0x6a8] sm:$0xff]
        %v900 = vld [vmem:[#allocation2 + $0x6b0] sm:$0xff]
        %v901 = vld [vmem:[#allocation2 + $0x6b8] sm:$0xff]
        %v902 = vld [vmem:[#allocation2 + $0x6c0] sm:$0xff]
        %v903 = vld [vmem:[#allocation2 + $0x6c8] sm:$0xff]
        %v904 = vld [vmem:[#allocation2 + $0x6d0] sm:$0xff]
        %v905 = vld [vmem:[#allocation2 + $0x6d8] sm:$0xff]
        %v906 = vld [vmem:[#allocation2 + $0x6e0] sm:$0xff]
        %v907 = vld [vmem:[#allocation2 + $0x6e8] sm:$0xff]
        %v908 = vld [vmem:[#allocation2 + $0x6f0] sm:$0xff]
        %v909 = vld [vmem:[#allocation2 + $0x6f8] sm:$0xff]
        %v910 = vld [vmem:[#allocation2 + $0x700] sm:$0xff]
        %v911 = vld [vmem:[#allocation2 + $0x708] sm:$0xff]
        %v912 = vld [vmem:[#allocation2 + $0x710] sm:$0xff]
        %v913 = vld [vmem:[#allocation2 + $0x718] sm:$0xff]
        %v914 = vld [vmem:[#allocation2 + $0x720] sm:$0xff]
        %v915 = vld [vmem:[#allocation2 + $0x728] sm:$0xff]
        %v916 = vld [vmem:[#allocation2 + $0x730] sm:$0xff]
        %v917 = vld [vmem:[#allocation2 + $0x738] sm:$0xff]
        %v918 = vld [vmem:[#allocation2 + $0x740] sm:$0xff]
        %v919 = vld [vmem:[#allocation2 + $0x748] sm:$0xff]
        %v920 = vld [vmem:[#allocation2 + $0x750] sm:$0xff]
        %v921 = vld [vmem:[#allocation2 + $0x758] sm:$0xff]
        %v922 = vld [vmem:[#allocation2 + $0x760] sm:$0xff]
        %v923 = vld [vmem:[#allocation2 + $0x768] sm:$0xff]
        %v924 = vld [vmem:[#allocation2 + $0x770] sm:$0xff]
        %v925 = vld [vmem:[#allocation2 + $0x778] sm:$0xff]
        %v926 = vld [vmem:[#allocation2 + $0x780] sm:$0xff]
        %v927 = vld [vmem:[#allocation2 + $0x788] sm:$0xff]
        %v928 = vld [vmem:[#allocation2 + $0x790] sm:$0xff]
        %v929 = vld [vmem:[#allocation2 + $0x798] sm:$0xff]
        %v930 = vld [vmem:[#allocation2 + $0x7a0] sm:$0xff]
        %v931 = vld [vmem:[#allocation2 + $0x7a8] sm:$0xff]
        %v932 = vld [vmem:[#allocation2 + $0x7b0] sm:$0xff]
        %v933 = vld [vmem:[#allocation2 + $0x7b8] sm:$0xff]
        %v934 = vld [vmem:[#allocation2 + $0x7c0] sm:$0xff]
        %v935 = vld [vmem:[#allocation2 + $0x7c8] sm:$0xff]
        %v936 = vld [vmem:[#allocation2 + $0x7d0] sm:$0xff]
        %v937 = vld [vmem:[#allocation2 + $0x7d8] sm:$0xff]
        %v938 = vld [vmem:[#allocation2 + $0x7e0] sm:$0xff]
        %v939 = vld [vmem:[#allocation2 + $0x7e8] sm:$0xff]
        %v940 = vld [vmem:[#allocation2 + $0x7f0] sm:$0xff]
        %v941 = vld [vmem:[#allocation2 + $0x7f8] sm:$0xff]
        %v943 = vcombine.high %v685, %v685
        %945 = vmatprep.subr.mxu0 %v687
        %946 = vmatpush1.msra.mxu0 %v686
        %947 = vmatprep.subr.mxu0 %v695
        %948 = vmatpush1.msra.mxu0 %v694
        %949 = vmatprep.subr.mxu0 %v703
        %950 = vmatpush1.msra.mxu0 %v702
        %951 = vmatprep.subr.mxu0 %v711
        %952 = vmatpush1.msra.mxu0 %v710
        %953 = vmatprep.subr.mxu0 %v719
        %954 = vmatpush1.msra.mxu0 %v718
        %955 = vmatprep.subr.mxu0 %v727
        %956 = vmatpush1.msra.mxu0 %v726
        %957 = vmatprep.subr.mxu0 %v735
        %958 = vmatpush1.msra.mxu0 %v734
        %959 = vmatprep.subr.mxu0 %v743
        %960 = vmatpush1.msra.mxu0 %v742
        %961 = vmatprep.subr.mxu0 %v751
        %962 = vmatpush1.msra.mxu0 %v750
        %963 = vmatprep.subr.mxu0 %v759
        %964 = vmatpush1.msra.mxu0 %v758
        %965 = vmatprep.subr.mxu0 %v767
        %966 = vmatpush1.msra.mxu0 %v766
        %967 = vmatprep.subr.mxu0 %v775
        %968 = vmatpush1.msra.mxu0 %v774
        %969 = vmatprep.subr.mxu0 %v783
        %970 = vmatpush1.msra.mxu0 %v782
        %971 = vmatprep.subr.mxu0 %v791
        %972 = vmatpush1.msra.mxu0 %v790
        %973 = vmatprep.subr.mxu0 %v799
        %974 = vmatpush1.msra.mxu0 %v798
        %975 = vmatprep.subr.mxu0 %v807
        %976 = vmatpush1.msra.mxu0 %v806
        %977 = vmatprep.subr.mxu0 %v815
        %978 = vmatpush1.msra.mxu0 %v814
        %979 = vmatprep.subr.mxu0 %v823
        %980 = vmatpush1.msra.mxu0 %v822
        %981 = vmatprep.subr.mxu0 %v831
        %982 = vmatpush1.msra.mxu0 %v830
        %983 = vmatprep.subr.mxu0 %v839
        %984 = vmatpush1.msra.mxu0 %v838
        %985 = vmatprep.subr.mxu0 %v847
        %986 = vmatpush1.msra.mxu0 %v846
        %987 = vmatprep.subr.mxu0 %v855
        %988 = vmatpush1.msra.mxu0 %v854
        %989 = vmatprep.subr.mxu0 %v863
        %990 = vmatpush1.msra.mxu0 %v862
        %991 = vmatprep.subr.mxu0 %v871
        %992 = vmatpush1.msra.mxu0 %v870
        %993 = vmatprep.subr.mxu0 %v879
        %994 = vmatpush1.msra.mxu0 %v878
        %995 = vmatprep.subr.mxu0 %v887
        %996 = vmatpush1.msra.mxu0 %v886
        %997 = vmatprep.subr.mxu0 %v895
        %998 = vmatpush1.msra.mxu0 %v894
        %999 = vmatprep.subr.mxu0 %v903
        %1000 = vmatpush1.msra.mxu0 %v902
        %1001 = vmatprep.subr.mxu0 %v911
        %1002 = vmatpush1.msra.mxu0 %v910
        %1003 = vmatprep.subr.mxu0 %v919
        %1004 = vmatpush1.msra.mxu0 %v918
        %1005 = vmatprep.subr.mxu0 %v927
        %1006 = vmatpush1.msra.mxu0 %v926
        %1007 = vmatprep.subr.mxu0 %v935
        %1008 = vmatpush1.msra.mxu0 %v934
        %1009 = vmatprep.mubr.f32.mxu0 %v943
        %1010 = vmatmul.mubr.f32.gmra.mrb[0].mxu0 %v685
        %v1011 = vpop.f32.mrb[0].mxu0
        %v1012 = vadd.f32 0.0, %v1011
        %v1013 = vpop.f32.mrb[0].mxu0
        %v1014 = vadd.f32 0.0, %v1013
        %1015 = vdwg.mxu0
        %1016 = vmatprep.subr.mxu0 %v689
        %1017 = vmatpush1.msra.mxu0 %v688
        %1018 = vmatprep.subr.mxu0 %v697
        %1019 = vmatpush1.msra.mxu0 %v696
        %1020 = vmatprep.subr.mxu0 %v705
        %1021 = vmatpush1.msra.mxu0 %v704
        %1022 = vmatprep.subr.mxu0 %v713
        %1023 = vmatpush1.msra.mxu0 %v712
        %1024 = vmatprep.subr.mxu0 %v721
        %1025 = vmatpush1.msra.mxu0 %v720
        %1026 = vmatprep.subr.mxu0 %v729
        %1027 = vmatpush1.msra.mxu0 %v728
        %1028 = vmatprep.subr.mxu0 %v737
        %1029 = vmatpush1.msra.mxu0 %v736
        %1030 = vmatprep.subr.mxu0 %v745
        %1031 = vmatpush1.msra.mxu0 %v744
        %1032 = vmatprep.subr.mxu0 %v753
        %1033 = vmatpush1.msra.mxu0 %v752
        %1034 = vmatprep.subr.mxu0 %v761
        %1035 = vmatpush1.msra.mxu0 %v760
        %1036 = vmatprep.subr.mxu0 %v769
        %1037 = vmatpush1.msra.mxu0 %v768
        %1038 = vmatprep.subr.mxu0 %v777
        %1039 = vmatpush1.msra.mxu0 %v776
        %1040 = vmatprep.subr.mxu0 %v785
        %1041 = vmatpush1.msra.mxu0 %v784
        %1042 = vmatprep.subr.mxu0 %v793
        %1043 = vmatpush1.msra.mxu0 %v792
        %1044 = vmatprep.subr.mxu0 %v801
        %1045 = vmatpush1.msra.mxu0 %v800
        %1046 = vmatprep.subr.mxu0 %v809
        %1047 = vmatpush1.msra.mxu0 %v808
        %1048 = vmatprep.subr.mxu0 %v817
        %1049 = vmatpush1.msra.mxu0 %v816
        %1050 = vmatprep.subr.mxu0 %v825
        %1051 = vmatpush1.msra.mxu0 %v824
        %1052 = vmatprep.subr.mxu0 %v833
        %1053 = vmatpush1.msra.mxu0 %v832
        %1054 = vmatprep.subr.mxu0 %v841
        %1055 = vmatpush1.msra.mxu0 %v840
        %1056 = vmatprep.subr.mxu0 %v849
        %1057 = vmatpush1.msra.mxu0 %v848
        %1058 = vmatprep.subr.mxu0 %v857
        %1059 = vmatpush1.msra.mxu0 %v856
        %1060 = vmatprep.subr.mxu0 %v865
        %1061 = vmatpush1.msra.mxu0 %v864
        %1062 = vmatprep.subr.mxu0 %v873
        %1063 = vmatpush1.msra.mxu0 %v872
        %1064 = vmatprep.subr.mxu0 %v881
        %1065 = vmatpush1.msra.mxu0 %v880
        %1066 = vmatprep.subr.mxu0 %v889
        %1067 = vmatpush1.msra.mxu0 %v888
        %1068 = vmatprep.subr.mxu0 %v897
        %1069 = vmatpush1.msra.mxu0 %v896
        %1070 = vmatprep.subr.mxu0 %v905
        %1071 = vmatpush1.msra.mxu0 %v904
        %1072 = vmatprep.subr.mxu0 %v913
        %1073 = vmatpush1.msra.mxu0 %v912
        %1074 = vmatprep.subr.mxu0 %v921
        %1075 = vmatpush1.msra.mxu0 %v920
        %1076 = vmatprep.subr.mxu0 %v929
        %1077 = vmatpush1.msra.mxu0 %v928
        %1078 = vmatprep.subr.mxu0 %v937
        %1079 = vmatpush1.msra.mxu0 %v936
        %1080 = vmatprep.mubr.f32.mxu0 %v943
        %1081 = vmatmul.mubr.f32.gmra.mrb[0].mxu0 %v685
        %v1082 = vpop.f32.mrb[0].mxu0
        %v1083 = vadd.f32 0.0, %v1082
        %v1084 = vpop.f32.mrb[0].mxu0
        %v1085 = vadd.f32 0.0, %v1084
        %1086 = vdwg.mxu0
        %1087 = vmatprep.subr.mxu0 %v691
        %1088 = vmatpush1.msra.mxu0 %v690
        %1089 = vmatprep.subr.mxu0 %v699
        %1090 = vmatpush1.msra.mxu0 %v698
        %1091 = vmatprep.subr.mxu0 %v707
        %1092 = vmatpush1.msra.mxu0 %v706
        %1093 = vmatprep.subr.mxu0 %v715
        %1094 = vmatpush1.msra.mxu0 %v714
        %1095 = vmatprep.subr.mxu0 %v723
        %1096 = vmatpush1.msra.mxu0 %v722
        %1097 = vmatprep.subr.mxu0 %v731
        %1098 = vmatpush1.msra.mxu0 %v730
        %1099 = vmatprep.subr.mxu0 %v739
        %1100 = vmatpush1.msra.mxu0 %v738
        %1101 = vmatprep.subr.mxu0 %v747
        %1102 = vmatpush1.msra.mxu0 %v746
        %1103 = vmatprep.subr.mxu0 %v755
        %1104 = vmatpush1.msra.mxu0 %v754
        %1105 = vmatprep.subr.mxu0 %v763
        %1106 = vmatpush1.msra.mxu0 %v762
        %1107 = vmatprep.subr.mxu0 %v771
        %1108 = vmatpush1.msra.mxu0 %v770
        %1109 = vmatprep.subr.mxu0 %v779
        %1110 = vmatpush1.msra.mxu0 %v778
        %1111 = vmatprep.subr.mxu0 %v787
        %1112 = vmatpush1.msra.mxu0 %v786
        %1113 = vmatprep.subr.mxu0 %v795
        %1114 = vmatpush1.msra.mxu0 %v794
        %1115 = vmatprep.subr.mxu0 %v803
        %1116 = vmatpush1.msra.mxu0 %v802
        %1117 = vmatprep.subr.mxu0 %v811
        %1118 = vmatpush1.msra.mxu0 %v810
        %1119 = vmatprep.subr.mxu0 %v819
        %1120 = vmatpush1.msra.mxu0 %v818
        %1121 = vmatprep.subr.mxu0 %v827
        %1122 = vmatpush1.msra.mxu0 %v826
        %1123 = vmatprep.subr.mxu0 %v835
        %1124 = vmatpush1.msra.mxu0 %v834
        %1125 = vmatprep.subr.mxu0 %v843
        %1126 = vmatpush1.msra.mxu0 %v842
        %1127 = vmatprep.subr.mxu0 %v851
        %1128 = vmatpush1.msra.mxu0 %v850
        %1129 = vmatprep.subr.mxu0 %v859
        %1130 = vmatpush1.msra.mxu0 %v858
        %1131 = vmatprep.subr.mxu0 %v867
        %1132 = vmatpush1.msra.mxu0 %v866
        %1133 = vmatprep.subr.mxu0 %v875
        %1134 = vmatpush1.msra.mxu0 %v874
        %1135 = vmatprep.subr.mxu0 %v883
        %1136 = vmatpush1.msra.mxu0 %v882
        %1137 = vmatprep.subr.mxu0 %v891
        %1138 = vmatpush1.msra.mxu0 %v890
        %1139 = vmatprep.subr.mxu0 %v899
        %1140 = vmatpush1.msra.mxu0 %v898
        %1141 = vmatprep.subr.mxu0 %v907
        %1142 = vmatpush1.msra.mxu0 %v906
        %1143 = vmatprep.subr.mxu0 %v915
        %1144 = vmatpush1.msra.mxu0 %v914
        %1145 = vmatprep.subr.mxu0 %v923
        %1146 = vmatpush1.msra.mxu0 %v922
        %1147 = vmatprep.subr.mxu0 %v931
        %1148 = vmatpush1.msra.mxu0 %v930
        %1149 = vmatprep.subr.mxu0 %v939
        %1150 = vmatpush1.msra.mxu0 %v938
        %1151 = vmatprep.mubr.f32.mxu0 %v943
        %1152 = vmatmul.mubr.f32.gmra.mrb[0].mxu0 %v685
        %v1153 = vpop.f32.mrb[0].mxu0
        %v1154 = vadd.f32 0.0, %v1153
        %v1155 = vpop.f32.mrb[0].mxu0
        %v1156 = vadd.f32 0.0, %v1155
        %1157 = vdwg.mxu0
        %1158 = vmatprep.subr.mxu0 %v693
        %1159 = vmatpush1.msra.mxu0 %v692
        %1160 = vmatprep.subr.mxu0 %v701
        %1161 = vmatpush1.msra.mxu0 %v700
        %1162 = vmatprep.subr.mxu0 %v709
        %1163 = vmatpush1.msra.mxu0 %v708
        %1164 = vmatprep.subr.mxu0 %v717
        %1165 = vmatpush1.msra.mxu0 %v716
        %1166 = vmatprep.subr.mxu0 %v725
        %1167 = vmatpush1.msra.mxu0 %v724
        %1168 = vmatprep.subr.mxu0 %v733
        %1169 = vmatpush1.msra.mxu0 %v732
        %1170 = vmatprep.subr.mxu0 %v741
        %1171 = vmatpush1.msra.mxu0 %v740
        %1172 = vmatprep.subr.mxu0 %v749
        %1173 = vmatpush1.msra.mxu0 %v748
        %1174 = vmatprep.subr.mxu0 %v757
        %1175 = vmatpush1.msra.mxu0 %v756
        %1176 = vmatprep.subr.mxu0 %v765
        %1177 = vmatpush1.msra.mxu0 %v764
        %1178 = vmatprep.subr.mxu0 %v773
        %1179 = vmatpush1.msra.mxu0 %v772
        %1180 = vmatprep.subr.mxu0 %v781
        %1181 = vmatpush1.msra.mxu0 %v780
        %1182 = vmatprep.subr.mxu0 %v789
        %1183 = vmatpush1.msra.mxu0 %v788
        %1184 = vmatprep.subr.mxu0 %v797
        %1185 = vmatpush1.msra.mxu0 %v796
        %1186 = vmatprep.subr.mxu0 %v805
        %1187 = vmatpush1.msra.mxu0 %v804
        %1188 = vmatprep.subr.mxu0 %v813
        %1189 = vmatpush1.msra.mxu0 %v812
        %1190 = vmatprep.subr.mxu0 %v821
        %1191 = vmatpush1.msra.mxu0 %v820
        %1192 = vmatprep.subr.mxu0 %v829
        %1193 = vmatpush1.msra.mxu0 %v828
        %1194 = vmatprep.subr.mxu0 %v837
        %1195 = vmatpush1.msra.mxu0 %v836
        %1196 = vmatprep.subr.mxu0 %v845
        %1197 = vmatpush1.msra.mxu0 %v844
        %1198 = vmatprep.subr.mxu0 %v853
        %1199 = vmatpush1.msra.mxu0 %v852
        %1200 = vmatprep.subr.mxu0 %v861
        %1201 = vmatpush1.msra.mxu0 %v860
        %1202 = vmatprep.subr.mxu0 %v869
        %1203 = vmatpush1.msra.mxu0 %v868
        %1204 = vmatprep.subr.mxu0 %v877
        %1205 = vmatpush1.msra.mxu0 %v876
        %1206 = vmatprep.subr.mxu0 %v885
        %1207 = vmatpush1.msra.mxu0 %v884
        %1208 = vmatprep.subr.mxu0 %v893
        %1209 = vmatpush1.msra.mxu0 %v892
        %1210 = vmatprep.subr.mxu0 %v901
        %1211 = vmatpush1.msra.mxu0 %v900
        %1212 = vmatprep.subr.mxu0 %v909
        %1213 = vmatpush1.msra.mxu0 %v908
        %1214 = vmatprep.subr.mxu0 %v917
        %1215 = vmatpush1.msra.mxu0 %v916
        %1216 = vmatprep.subr.mxu0 %v925
        %1217 = vmatpush1.msra.mxu0 %v924
        %1218 = vmatprep.subr.mxu0 %v933
        %1219 = vmatpush1.msra.mxu0 %v932
        %1220 = vmatprep.subr.mxu0 %v941
        %1221 = vmatpush1.msra.mxu0 %v940
        %1222 = vmatprep.mubr.f32.mxu0 %v943
        %1223 = vmatmul.mubr.f32.gmra.mrb[0].mxu0 %v685
        %v1224 = vpop.f32.mrb[0].mxu0
        %v1225 = vadd.f32 0.0, %v1224
        %v1226 = vpop.f32.mrb[0].mxu0
        %v1227 = vadd.f32 0.0, %v1226
        %1228 = vdwg.mxu0
        %v1229 = vld [vmem:[%s677] sm:$0xff]
        %v1230 = vld [vmem:[%s677 + $0x8] sm:$0xff]
        %v1231 = vld [vmem:[%s677 + $0x10] sm:$0xff]
        %v1232 = vld [vmem:[%s677 + $0x18] sm:$0xff]
        %v1237 = vcombine.high %v1229, %v1229
        %v1238 = vcombine.high %v1230, %v1230
        %v1239 = vcombine.high %v1231, %v1231
        %v1240 = vcombine.high %v1232, %v1232
        %v1253 = vrot.slane %v1012, 4
        %v1254 = vrot.slane %v1014, 4
        %v1255 = vrot.slane %v1083, 4
        %v1256 = vrot.slane %v1085, 4
        %v1257 = vrot.slane %v1154, 4
        %v1258 = vrot.slane %v1156, 4
        %v1259 = vrot.slane %v1225, 4
        %v1260 = vrot.slane %v1227, 4
        %vm1269 = vcmask 1043456
        %v1270 = vsel %vm1269, %v1229, %v1253
        %v1271 = vsel %vm1269, %v1237, %v1254
        %v1272 = vsel %vm1269, %v1230, %v1255
        %v1273 = vsel %vm1269, %v1238, %v1256
        %v1274 = vsel %vm1269, %v1231, %v1257
        %v1275 = vsel %vm1269, %v1239, %v1258
        %v1276 = vsel %vm1269, %v1232, %v1259
        %v1277 = vsel %vm1269, %v1240, %v1260
        %v1278 = vld [vmem:[%s6] sm:$0xff]
        %1287 = vrot.lane.b32.xlu0 %v1270, 33
        %v1288 = vpop.permute.xlu0 %1287
        %1289 = vrot.lane.b32.xlu0 %v1271, 33
        %v1290 = vpop.permute.xlu0 %1289
        %1291 = vrot.lane.b32.xlu0 %v1272, 33
        %v1292 = vpop.permute.xlu0 %1291
        %1293 = vrot.lane.b32.xlu0 %v1273, 33
        %v1294 = vpop.permute.xlu0 %1293
        %1295 = vrot.lane.b32.xlu0 %v1274, 33
        %v1296 = vpop.permute.xlu0 %1295
        %1297 = vrot.lane.b32.xlu0 %v1275, 33
        %v1298 = vpop.permute.xlu0 %1297
        %1299 = vrot.lane.b32.xlu0 %v1276, 33
        %v1300 = vpop.permute.xlu0 %1299
        %1301 = vrot.lane.b32.xlu0 %v1277, 33
        %v1302 = vpop.permute.xlu0 %1301
        %vm1303 = vcmask 269312
        %v1304 = vsel %vm1303, %v1288, %v1290
        %v1305 = vsel %vm1303, %v1290, %v1292
        %v1306 = vsel %vm1303, %v1292, %v1294
        %v1307 = vsel %vm1303, %v1294, %v1296
        %v1308 = vsel %vm1303, %v1296, %v1298
        %v1309 = vsel %vm1303, %v1298, %v1300
        %v1310 = vsel %vm1303, %v1300, %v1302
        %v1319 = vsel %vm1303, 0.0, %v1288
        %v1321 = vlaneseq
        %v1322 = vshrl.u32 %v1321, 7
        %v1323 = vsub.s32 0, %v1322
        %v1324 = vrot.slane %v683, %v1323
        %v1325 = vlaneseq
        %v1326 = vshrl.u32 %v1325, 7
        %v1327 = vsub.s32 1, %v1326
        %v1328 = vrot.slane %v683, %v1327
        %v1329 = vlaneseq
        %v1330 = vshrl.u32 %v1329, 7
        %v1331 = vsub.s32 2, %v1330
        %v1332 = vrot.slane %v683, %v1331
        %v1333 = vlaneseq
        %v1334 = vshrl.u32 %v1333, 7
        %v1335 = vsub.s32 3, %v1334
        %v1336 = vrot.slane %v683, %v1335
        %v1337 = vlaneseq
        %v1338 = vshrl.u32 %v1337, 7
        %v1339 = vsub.s32 4, %v1338
        %v1340 = vrot.slane %v683, %v1339
        %v1341 = vlaneseq
        %v1342 = vshrl.u32 %v1341, 7
        %v1343 = vsub.s32 5, %v1342
        %v1344 = vrot.slane %v683, %v1343
        %v1345 = vlaneseq
        %v1346 = vshrl.u32 %v1345, 7
        %v1347 = vsub.s32 6, %v1346
        %v1348 = vrot.slane %v683, %v1347
        %v1349 = vlaneseq
        %v1350 = vshrl.u32 %v1349, 7
        %v1351 = vsub.s32 7, %v1350
        %v1352 = vrot.slane %v683, %v1351
        %v1361 = vmul.f32 %v1319, %v1324
        %v1362 = vmul.f32 %v1304, %v1328
        %v1363 = vmul.f32 %v1305, %v1332
        %v1364 = vmul.f32 %v1306, %v1336
        %v1365 = vmul.f32 %v1307, %v1340
        %v1366 = vmul.f32 %v1308, %v1344
        %v1367 = vmul.f32 %v1309, %v1348
        %v1368 = vmul.f32 %v1310, %v1352
        %1369 = vrot.lane.b32.xlu0 %v1270, 32
        %v1370 = vpop.permute.xlu0 %1369
        %1371 = vrot.lane.b32.xlu0 %v1271, 32
        %v1372 = vpop.permute.xlu0 %1371
        %1373 = vrot.lane.b32.xlu0 %v1272, 32
        %v1374 = vpop.permute.xlu0 %1373
        %1375 = vrot.lane.b32.xlu0 %v1273, 32
        %v1376 = vpop.permute.xlu0 %1375
        %1377 = vrot.lane.b32.xlu0 %v1274, 32
        %v1378 = vpop.permute.xlu0 %1377
        %1379 = vrot.lane.b32.xlu0 %v1275, 32
        %v1380 = vpop.permute.xlu0 %1379
        %1381 = vrot.lane.b32.xlu0 %v1276, 32
        %v1382 = vpop.permute.xlu0 %1381
        %1383 = vrot.lane.b32.xlu0 %v1277, 32
        %v1384 = vpop.permute.xlu0 %1383
        %vm1385 = vcmask 261120
        %v1386 = vsel %vm1385, %v1370, %v1372
        %v1387 = vsel %vm1385, %v1372, %v1374
        %v1388 = vsel %vm1385, %v1374, %v1376
        %v1389 = vsel %vm1385, %v1376, %v1378
        %v1390 = vsel %vm1385, %v1378, %v1380
        %v1391 = vsel %vm1385, %v1380, %v1382
        %v1392 = vsel %vm1385, %v1382, %v1384
        %v1401 = vsel %vm1385, 0.0, %v1370
        %1402 = vrot.lane.b32.xlu0 %v1270, 31
        %v1403 = vpop.permute.xlu0 %1402
        %1404 = vrot.lane.b32.xlu0 %v1271, 31
        %v1405 = vpop.permute.xlu0 %1404
        %1406 = vrot.lane.b32.xlu0 %v1272, 31
        %v1407 = vpop.permute.xlu0 %1406
        %1408 = vrot.lane.b32.xlu0 %v1273, 31
        %v1409 = vpop.permute.xlu0 %1408
        %1410 = vrot.lane.b32.xlu0 %v1274, 31
        %v1411 = vpop.permute.xlu0 %1410
        %1412 = vrot.lane.b32.xlu0 %v1275, 31
        %v1413 = vpop.permute.xlu0 %1412
        %1414 = vrot.lane.b32.xlu0 %v1276, 31
        %v1415 = vpop.permute.xlu0 %1414
        %1416 = vrot.lane.b32.xlu0 %v1277, 31
        %v1417 = vpop.permute.xlu0 %1416
        %vm1418 = vcmask 252928
        %v1419 = vsel %vm1418, %v1403, %v1405
        %v1420 = vsel %vm1418, %v1405, %v1407
        %v1421 = vsel %vm1418, %v1407, %v1409
        %v1422 = vsel %vm1418, %v1409, %v1411
        %v1423 = vsel %vm1418, %v1411, %v1413
        %v1424 = vsel %vm1418, %v1413, %v1415
        %v1425 = vsel %vm1418, %v1415, %v1417
        %v1434 = vsel %vm1418, 0.0, %v1403
        %v1436 = vlaneseq
        %v1437 = vshrl.u32 %v1436, 7
        %v1438 = vsub.s32 0, %v1437
        %v1439 = vrot.slane %v684, %v1438
        %v1440 = vlaneseq
        %v1441 = vshrl.u32 %v1440, 7
        %v1442 = vsub.s32 1, %v1441
        %v1443 = vrot.slane %v684, %v1442
        %v1444 = vlaneseq
        %v1445 = vshrl.u32 %v1444, 7
        %v1446 = vsub.s32 2, %v1445
        %v1447 = vrot.slane %v684, %v1446
        %v1448 = vlaneseq
        %v1449 = vshrl.u32 %v1448, 7
        %v1450 = vsub.s32 3, %v1449
        %v1451 = vrot.slane %v684, %v1450
        %v1452 = vlaneseq
        %v1453 = vshrl.u32 %v1452, 7
        %v1454 = vsub.s32 4, %v1453
        %v1455 = vrot.slane %v684, %v1454
        %v1456 = vlaneseq
        %v1457 = vshrl.u32 %v1456, 7
        %v1458 = vsub.s32 5, %v1457
        %v1459 = vrot.slane %v684, %v1458
        %v1460 = vlaneseq
        %v1461 = vshrl.u32 %v1460, 7
        %v1462 = vsub.s32 6, %v1461
        %v1463 = vrot.slane %v684, %v1462
        %v1464 = vlaneseq
        %v1465 = vshrl.u32 %v1464, 7
        %v1466 = vsub.s32 7, %v1465
        %v1467 = vrot.slane %v684, %v1466
        %v1476 = vmul.f32 %v1434, %v1439
        %v1477 = vmul.f32 %v1419, %v1443
        %v1478 = vmul.f32 %v1420, %v1447
        %v1479 = vmul.f32 %v1421, %v1451
        %v1480 = vmul.f32 %v1422, %v1455
        %v1481 = vmul.f32 %v1423, %v1459
        %v1482 = vmul.f32 %v1424, %v1463
        %v1483 = vmul.f32 %v1425, %v1467
        %1484 = vrot.lane.b32.xlu0 %v1270, 1
        %v1485 = vpop.permute.xlu0 %1484
        %1486 = vrot.lane.b32.xlu0 %v1271, 1
        %v1487 = vpop.permute.xlu0 %1486
        %1488 = vrot.lane.b32.xlu0 %v1272, 1
        %v1489 = vpop.permute.xlu0 %1488
        %1490 = vrot.lane.b32.xlu0 %v1273, 1
        %v1491 = vpop.permute.xlu0 %1490
        %1492 = vrot.lane.b32.xlu0 %v1274, 1
        %v1493 = vpop.permute.xlu0 %1492
        %1494 = vrot.lane.b32.xlu0 %v1275, 1
        %v1495 = vpop.permute.xlu0 %1494
        %1496 = vrot.lane.b32.xlu0 %v1276, 1
        %v1497 = vpop.permute.xlu0 %1496
        %1498 = vrot.lane.b32.xlu0 %v1277, 1
        %v1499 = vpop.permute.xlu0 %1498
        %vm1500 = vcmask 7168
        %v1501 = vsel %vm1500, %v1485, %v1487
        %v1502 = vsel %vm1500, %v1487, %v1489
        %v1503 = vsel %vm1500, %v1489, %v1491
        %v1504 = vsel %vm1500, %v1491, %v1493
        %v1505 = vsel %vm1500, %v1493, %v1495
        %v1506 = vsel %vm1500, %v1495, %v1497
        %v1507 = vsel %vm1500, %v1497, %v1499
        %v1516 = vsel %vm1500, 0.0, %v1485
        %v1517 = vmul.f32 %v1516, %v1324
        %v1518 = vmul.f32 %v1501, %v1328
        %v1519 = vmul.f32 %v1502, %v1332
        %v1520 = vmul.f32 %v1503, %v1336
        %v1521 = vmul.f32 %v1504, %v1340
        %v1522 = vmul.f32 %v1505, %v1344
        %v1523 = vmul.f32 %v1506, %v1348
        %v1524 = vmul.f32 %v1507, %v1352
        %1525 = vrot.lane.b32.xlu0 %v1270, 127
        %v1526 = vpop.permute.xlu0 %1525
        %1527 = vrot.lane.b32.xlu0 %v1271, 127
        %v1528 = vpop.permute.xlu0 %1527
        %1529 = vrot.lane.b32.xlu0 %v1272, 127
        %v1530 = vpop.permute.xlu0 %1529
        %1531 = vrot.lane.b32.xlu0 %v1273, 127
        %v1532 = vpop.permute.xlu0 %1531
        %1533 = vrot.lane.b32.xlu0 %v1274, 127
        %v1534 = vpop.permute.xlu0 %1533
        %1535 = vrot.lane.b32.xlu0 %v1275, 127
        %v1536 = vpop.permute.xlu0 %1535
        %1537 = vrot.lane.b32.xlu0 %v1276, 127
        %v1538 = vpop.permute.xlu0 %1537
        %1539 = vrot.lane.b32.xlu0 %v1277, 127
        %v1540 = vpop.permute.xlu0 %1539
        %vm1541 = vcmask 1039360
        %v1542 = vsel %vm1541, %v1526, %v1528
        %v1543 = vsel %vm1541, %v1528, %v1530
        %v1544 = vsel %vm1541, %v1530, %v1532
        %v1545 = vsel %vm1541, %v1532, %v1534
        %v1546 = vsel %vm1541, %v1534, %v1536
        %v1547 = vsel %vm1541, %v1536, %v1538
        %v1548 = vsel %vm1541, %v1538, %v1540
        %v1557 = vsel %vm1541, %v1540, 0.0
        %v1558 = vmul.f32 %v1542, %v1439
        %v1559 = vmul.f32 %v1543, %v1443
        %v1560 = vmul.f32 %v1544, %v1447
        %v1561 = vmul.f32 %v1545, %v1451
        %v1562 = vmul.f32 %v1546, %v1455
        %v1563 = vmul.f32 %v1547, %v1459
        %v1564 = vmul.f32 %v1548, %v1463
        %v1565 = vmul.f32 %v1557, %v1467
        %1566 = vrot.lane.b32.xlu0 %v1270, 97
        %v1567 = vpop.permute.xlu0 %1566
        %1568 = vrot.lane.b32.xlu0 %v1271, 97
        %v1569 = vpop.permute.xlu0 %1568
        %1570 = vrot.lane.b32.xlu0 %v1272, 97
        %v1571 = vpop.permute.xlu0 %1570
        %1572 = vrot.lane.b32.xlu0 %v1273, 97
        %v1573 = vpop.permute.xlu0 %1572
        %1574 = vrot.lane.b32.xlu0 %v1274, 97
        %v1575 = vpop.permute.xlu0 %1574
        %1576 = vrot.lane.b32.xlu0 %v1275, 97
        %v1577 = vpop.permute.xlu0 %1576
        %1578 = vrot.lane.b32.xlu0 %v1276, 97
        %v1579 = vpop.permute.xlu0 %1578
        %1580 = vrot.lane.b32.xlu0 %v1277, 97
        %v1581 = vpop.permute.xlu0 %1580
        %vm1582 = vcmask 793600
        %v1583 = vsel %vm1582, %v1567, %v1569
        %v1584 = vsel %vm1582, %v1569, %v1571
        %v1585 = vsel %vm1582, %v1571, %v1573
        %v1586 = vsel %vm1582, %v1573, %v1575
        %v1587 = vsel %vm1582, %v1575, %v1577
        %v1588 = vsel %vm1582, %v1577, %v1579
        %v1589 = vsel %vm1582, %v1579, %v1581
        %v1598 = vsel %vm1582, %v1581, 0.0
        %v1599 = vmul.f32 %v1583, %v1324
        %v1600 = vmul.f32 %v1584, %v1328
        %v1601 = vmul.f32 %v1585, %v1332
        %v1602 = vmul.f32 %v1586, %v1336
        %v1603 = vmul.f32 %v1587, %v1340
        %v1604 = vmul.f32 %v1588, %v1344
        %v1605 = vmul.f32 %v1589, %v1348
        %v1606 = vmul.f32 %v1598, %v1352
        %1607 = vrot.lane.b32.xlu0 %v1270, 96
        %v1608 = vpop.permute.xlu0 %1607
        %1609 = vrot.lane.b32.xlu0 %v1271, 96
        %v1610 = vpop.permute.xlu0 %1609
        %1611 = vrot.lane.b32.xlu0 %v1272, 96
        %v1612 = vpop.permute.xlu0 %1611
        %1613 = vrot.lane.b32.xlu0 %v1273, 96
        %v1614 = vpop.permute.xlu0 %1613
        %1615 = vrot.lane.b32.xlu0 %v1274, 96
        %v1616 = vpop.permute.xlu0 %1615
        %1617 = vrot.lane.b32.xlu0 %v1275, 96
        %v1618 = vpop.permute.xlu0 %1617
        %1619 = vrot.lane.b32.xlu0 %v1276, 96
        %v1620 = vpop.permute.xlu0 %1619
        %1621 = vrot.lane.b32.xlu0 %v1277, 96
        %v1622 = vpop.permute.xlu0 %1621
        %vm1623 = vcmask 785408
        %v1624 = vsel %vm1623, %v1608, %v1610
        %v1625 = vsel %vm1623, %v1610, %v1612
        %v1626 = vsel %vm1623, %v1612, %v1614
        %v1627 = vsel %vm1623, %v1614, %v1616
        %v1628 = vsel %vm1623, %v1616, %v1618
        %v1629 = vsel %vm1623, %v1618, %v1620
        %v1630 = vsel %vm1623, %v1620, %v1622
        %v1639 = vsel %vm1623, %v1622, 0.0
        %1640 = vrot.lane.b32.xlu0 %v1270, 95
        %v1641 = vpop.permute.xlu0 %1640
        %1642 = vrot.lane.b32.xlu0 %v1271, 95
        %v1643 = vpop.permute.xlu0 %1642
        %1644 = vrot.lane.b32.xlu0 %v1272, 95
        %v1645 = vpop.permute.xlu0 %1644
        %1646 = vrot.lane.b32.xlu0 %v1273, 95
        %v1647 = vpop.permute.xlu0 %1646
        %1648 = vrot.lane.b32.xlu0 %v1274, 95
        %v1649 = vpop.permute.xlu0 %1648
        %1650 = vrot.lane.b32.xlu0 %v1275, 95
        %v1651 = vpop.permute.xlu0 %1650
        %1652 = vrot.lane.b32.xlu0 %v1276, 95
        %v1653 = vpop.permute.xlu0 %1652
        %1654 = vrot.lane.b32.xlu0 %v1277, 95
        %v1655 = vpop.permute.xlu0 %1654
        %vm1656 = vcmask 777216
        %v1657 = vsel %vm1656, %v1641, %v1643
        %v1658 = vsel %vm1656, %v1643, %v1645
        %v1659 = vsel %vm1656, %v1645, %v1647
        %v1660 = vsel %vm1656, %v1647, %v1649
        %v1661 = vsel %vm1656, %v1649, %v1651
        %v1662 = vsel %vm1656, %v1651, %v1653
        %v1663 = vsel %vm1656, %v1653, %v1655
        %v1672 = vsel %vm1656, %v1655, 0.0
        %v1673 = vmul.f32 %v1657, %v1439
        %v1674 = vmul.f32 %v1658, %v1443
        %v1675 = vmul.f32 %v1659, %v1447
        %v1676 = vmul.f32 %v1660, %v1451
        %v1677 = vmul.f32 %v1661, %v1455
        %v1678 = vmul.f32 %v1662, %v1459
        %v1679 = vmul.f32 %v1663, %v1463
        %v1680 = vmul.f32 %v1672, %v1467
        %vm1681 = vcmask 588800
        %v1683 = vsel %vm1681, %v1278, 0
        %1685 = vmatprep.subr.mxu0 %v1362
        %1686 = vmatpush1.msra.mxu0 %v1361
        %1687 = vmatprep.subr.mxu0 %v1386
        %1688 = vmatpush1.msra.mxu0 %v1401
        %1689 = vmatprep.subr.mxu0 %v1477
        %1690 = vmatpush1.msra.mxu0 %v1476
        %1691 = vmatprep.subr.mxu0 %v1518
        %1692 = vmatpush1.msra.mxu0 %v1517
        %1693 = vmatprep.subr.mxu0 %v1271
        %1694 = vmatpush1.msra.mxu0 %v1270
        %1695 = vmatprep.subr.mxu0 %v1559
        %1696 = vmatpush1.msra.mxu0 %v1558
        %1697 = vmatprep.subr.mxu0 %v1600
        %1698 = vmatpush1.msra.mxu0 %v1599
        %1699 = vmatprep.subr.mxu0 %v1625
        %1700 = vmatpush1.msra.mxu0 %v1624
        %1701 = vmatprep.subr.mxu0 %v1674
        %1702 = vmatpush1.msra.mxu0 %v1673
        %1703 = vmatprep.subr.mxu0 0.0
        %1704 = vmatpush1.msra.mxu0 0.0
        %1705 = vmatprep.subr.mxu0 0.0
        %1706 = vmatpush1.msra.mxu0 0.0
        %1707 = vmatprep.subr.mxu0 0.0
        %1708 = vmatpush1.msra.mxu0 0.0
        %1709 = vmatprep.subr.mxu0 0.0
        %1710 = vmatpush1.msra.mxu0 0.0
        %1711 = vmatprep.subr.mxu0 0.0
        %1712 = vmatpush1.msra.mxu0 0.0
        %1713 = vmatprep.subr.mxu0 0.0
        %1714 = vmatpush1.msra.mxu0 0.0
        %1715 = vmatprep.subr.mxu0 0.0
        %1716 = vmatpush1.msra.mxu0 0.0
        %1717 = vmatprep.subr.mxu0 0.0
        %1718 = vmatpush1.msra.mxu0 0.0
        %1719 = vmatprep.subr.mxu0 0.0
        %1720 = vmatpush1.msra.mxu0 0.0
        %1721 = vmatprep.subr.mxu0 0.0
        %1722 = vmatpush1.msra.mxu0 0.0
        %1723 = vmatprep.subr.mxu0 0.0
        %1724 = vmatpush1.msra.mxu0 0.0
        %1725 = vmatprep.subr.mxu0 0.0
        %1726 = vmatpush1.msra.mxu0 0.0
        %1727 = vmatprep.subr.mxu0 0.0
        %1728 = vmatpush1.msra.mxu0 0.0
        %1729 = vmatprep.subr.mxu0 0.0
        %1730 = vmatpush1.msra.mxu0 0.0
        %1731 = vmatprep.subr.mxu0 0.0
        %1732 = vmatpush1.msra.mxu0 0.0
        %1733 = vmatprep.subr.mxu0 0.0
        %1734 = vmatpush1.msra.mxu0 0.0
        %1735 = vmatprep.subr.mxu0 0.0
        %1736 = vmatpush1.msra.mxu0 0.0
        %1737 = vmatprep.subr.mxu0 0.0
        %1738 = vmatpush1.msra.mxu0 0.0
        %1739 = vmatprep.subr.mxu0 0.0
        %1740 = vmatpush1.msra.mxu0 0.0
        %1741 = vmatprep.subr.mxu0 0.0
        %1742 = vmatpush1.msra.mxu0 0.0
        %1743 = vmatprep.subr.mxu0 0.0
        %1744 = vmatpush1.msra.mxu0 0.0
        %1745 = vmatprep.subr.mxu0 0.0
        %1746 = vmatpush1.msra.mxu0 0.0
        %1747 = vmatprep.subr.mxu0 0.0
        %1748 = vmatpush1.msra.mxu0 0.0
        %1749 = vmatprep.mubr.f32.mxu0 0.0
        %1750 = vmatmul.mubr.f32.gmra.mrb[0].mxu0 %v1683
        %v1751 = vpop.f32.mrb[0].mxu0
        %v1752 = vadd.f32 0.0, %v1751
        %v1753 = vpop.f32.mrb[0].mxu0
        %v1754 = vadd.f32 0.0, %v1753
        %1755 = vdwg.mxu0
        %1756 = vmatprep.subr.mxu0 %v1364
        %1757 = vmatpush1.msra.mxu0 %v1363
        %1758 = vmatprep.subr.mxu0 %v1388
        %1759 = vmatpush1.msra.mxu0 %v1387
        %1760 = vmatprep.subr.mxu0 %v1479
        %1761 = vmatpush1.msra.mxu0 %v1478
        %1762 = vmatprep.subr.mxu0 %v1520
        %1763 = vmatpush1.msra.mxu0 %v1519
        %1764 = vmatprep.subr.mxu0 %v1273
        %1765 = vmatpush1.msra.mxu0 %v1272
        %1766 = vmatprep.subr.mxu0 %v1561
        %1767 = vmatpush1.msra.mxu0 %v1560
        %1768 = vmatprep.subr.mxu0 %v1602
        %1769 = vmatpush1.msra.mxu0 %v1601
        %1770 = vmatprep.subr.mxu0 %v1627
        %1771 = vmatpush1.msra.mxu0 %v1626
        %1772 = vmatprep.subr.mxu0 %v1676
        %1773 = vmatpush1.msra.mxu0 %v1675
        %1774 = vmatprep.subr.mxu0 0.0
        %1775 = vmatpush1.msra.mxu0 0.0
        %1776 = vmatprep.subr.mxu0 0.0
        %1777 = vmatpush1.msra.mxu0 0.0
        %1778 = vmatprep.subr.mxu0 0.0
        %1779 = vmatpush1.msra.mxu0 0.0
        %1780 = vmatprep.subr.mxu0 0.0
        %1781 = vmatpush1.msra.mxu0 0.0
        %1782 = vmatprep.subr.mxu0 0.0
        %1783 = vmatpush1.msra.mxu0 0.0
        %1784 = vmatprep.subr.mxu0 0.0
        %1785 = vmatpush1.msra.mxu0 0.0
        %1786 = vmatprep.subr.mxu0 0.0
        %1787 = vmatpush1.msra.mxu0 0.0
        %1788 = vmatprep.subr.mxu0 0.0
        %1789 = vmatpush1.msra.mxu0 0.0
        %1790 = vmatprep.subr.mxu0 0.0
        %1791 = vmatpush1.msra.mxu0 0.0
        %1792 = vmatprep.subr.mxu0 0.0
        %1793 = vmatpush1.msra.mxu0 0.0
        %1794 = vmatprep.subr.mxu0 0.0
        %1795 = vmatpush1.msra.mxu0 0.0
        %1796 = vmatprep.subr.mxu0 0.0
        %1797 = vmatpush1.msra.mxu0 0.0
        %1798 = vmatprep.subr.mxu0 0.0
        %1799 = vmatpush1.msra.mxu0 0.0
        %1800 = vmatprep.subr.mxu0 0.0
        %1801 = vmatpush1.msra.mxu0 0.0
        %1802 = vmatprep.subr.mxu0 0.0
        %1803 = vmatpush1.msra.mxu0 0.0
        %1804 = vmatprep.subr.mxu0 0.0
        %1805 = vmatpush1.msra.mxu0 0.0
        %1806 = vmatprep.subr.mxu0 0.0
        %1807 = vmatpush1.msra.mxu0 0.0
        %1808 = vmatprep.subr.mxu0 0.0
        %1809 = vmatpush1.msra.mxu0 0.0
        %1810 = vmatprep.subr.mxu0 0.0
        %1811 = vmatpush1.msra.mxu0 0.0
        %1812 = vmatprep.subr.mxu0 0.0
        %1813 = vmatpush1.msra.mxu0 0.0
        %1814 = vmatprep.subr.mxu0 0.0
        %1815 = vmatpush1.msra.mxu0 0.0
        %1816 = vmatprep.subr.mxu0 0.0
        %1817 = vmatpush1.msra.mxu0 0.0
        %1818 = vmatprep.subr.mxu0 0.0
        %1819 = vmatpush1.msra.mxu0 0.0
        %1820 = vmatprep.mubr.f32.mxu0 0.0
        %1821 = vmatmul.mubr.f32.gmra.mrb[0].mxu0 %v1683
        %v1822 = vpop.f32.mrb[0].mxu0
        %v1823 = vadd.f32 0.0, %v1822
        %v1824 = vpop.f32.mrb[0].mxu0
        %v1825 = vadd.f32 0.0, %v1824
        %1826 = vdwg.mxu0
        %1827 = vmatprep.subr.mxu0 %v1366
        %1828 = vmatpush1.msra.mxu0 %v1365
        %1829 = vmatprep.subr.mxu0 %v1390
        %1830 = vmatpush1.msra.mxu0 %v1389
        %1831 = vmatprep.subr.mxu0 %v1481
        %1832 = vmatpush1.msra.mxu0 %v1480
        %1833 = vmatprep.subr.mxu0 %v1522
        %1834 = vmatpush1.msra.mxu0 %v1521
        %1835 = vmatprep.subr.mxu0 %v1275
        %1836 = vmatpush1.msra.mxu0 %v1274
        %1837 = vmatprep.subr.mxu0 %v1563
        %1838 = vmatpush1.msra.mxu0 %v1562
        %1839 = vmatprep.subr.mxu0 %v1604
        %1840 = vmatpush1.msra.mxu0 %v1603
        %1841 = vmatprep.subr.mxu0 %v1629
        %1842 = vmatpush1.msra.mxu0 %v1628
        %1843 = vmatprep.subr.mxu0 %v1678
        %1844 = vmatpush1.msra.mxu0 %v1677
        %1845 = vmatprep.subr.mxu0 0.0
        %1846 = vmatpush1.msra.mxu0 0.0
        %1847 = vmatprep.subr.mxu0 0.0
        %1848 = vmatpush1.msra.mxu0 0.0
        %1849 = vmatprep.subr.mxu0 0.0
        %1850 = vmatpush1.msra.mxu0 0.0
        %1851 = vmatprep.subr.mxu0 0.0
        %1852 = vmatpush1.msra.mxu0 0.0
        %1853 = vmatprep.subr.mxu0 0.0
        %1854 = vmatpush1.msra.mxu0 0.0
        %1855 = vmatprep.subr.mxu0 0.0
        %1856 = vmatpush1.msra.mxu0 0.0
        %1857 = vmatprep.subr.mxu0 0.0
        %1858 = vmatpush1.msra.mxu0 0.0
        %1859 = vmatprep.subr.mxu0 0.0
        %1860 = vmatpush1.msra.mxu0 0.0
        %1861 = vmatprep.subr.mxu0 0.0
        %1862 = vmatpush1.msra.mxu0 0.0
        %1863 = vmatprep.subr.mxu0 0.0
        %1864 = vmatpush1.msra.mxu0 0.0
        %1865 = vmatprep.subr.mxu0 0.0
        %1866 = vmatpush1.msra.mxu0 0.0
        %1867 = vmatprep.subr.mxu0 0.0
        %1868 = vmatpush1.msra.mxu0 0.0
        %1869 = vmatprep.subr.mxu0 0.0
        %1870 = vmatpush1.msra.mxu0 0.0
        %1871 = vmatprep.subr.mxu0 0.0
        %1872 = vmatpush1.msra.mxu0 0.0
        %1873 = vmatprep.subr.mxu0 0.0
        %1874 = vmatpush1.msra.mxu0 0.0
        %1875 = vmatprep.subr.mxu0 0.0
        %1876 = vmatpush1.msra.mxu0 0.0
        %1877 = vmatprep.subr.mxu0 0.0
        %1878 = vmatpush1.msra.mxu0 0.0
        %1879 = vmatprep.subr.mxu0 0.0
        %1880 = vmatpush1.msra.mxu0 0.0
        %1881 = vmatprep.subr.mxu0 0.0
        %1882 = vmatpush1.msra.mxu0 0.0
        %1883 = vmatprep.subr.mxu0 0.0
        %1884 = vmatpush1.msra.mxu0 0.0
        %1885 = vmatprep.subr.mxu0 0.0
        %1886 = vmatpush1.msra.mxu0 0.0
        %1887 = vmatprep.subr.mxu0 0.0
        %1888 = vmatpush1.msra.mxu0 0.0
        %1889 = vmatprep.subr.mxu0 0.0
        %1890 = vmatpush1.msra.mxu0 0.0
        %1891 = vmatprep.mubr.f32.mxu0 0.0
        %1892 = vmatmul.mubr.f32.gmra.mrb[0].mxu0 %v1683
        %v1893 = vpop.f32.mrb[0].mxu0
        %v1894 = vadd.f32 0.0, %v1893
        %v1895 = vpop.f32.mrb[0].mxu0
        %v1896 = vadd.f32 0.0, %v1895
        %1897 = vdwg.mxu0
        %1898 = vmatprep.subr.mxu0 %v1368
        %1899 = vmatpush1.msra.mxu0 %v1367
        %1900 = vmatprep.subr.mxu0 %v1392
        %1901 = vmatpush1.msra.mxu0 %v1391
        %1902 = vmatprep.subr.mxu0 %v1483
        %1903 = vmatpush1.msra.mxu0 %v1482
        %1904 = vmatprep.subr.mxu0 %v1524
        %1905 = vmatpush1.msra.mxu0 %v1523
        %1906 = vmatprep.subr.mxu0 %v1277
        %1907 = vmatpush1.msra.mxu0 %v1276
        %1908 = vmatprep.subr.mxu0 %v1565
        %1909 = vmatpush1.msra.mxu0 %v1564
        %1910 = vmatprep.subr.mxu0 %v1606
        %1911 = vmatpush1.msra.mxu0 %v1605
        %1912 = vmatprep.subr.mxu0 %v1639
        %1913 = vmatpush1.msra.mxu0 %v1630
        %1914 = vmatprep.subr.mxu0 %v1680
        %1915 = vmatpush1.msra.mxu0 %v1679
        %1916 = vmatprep.subr.mxu0 0.0
        %1917 = vmatpush1.msra.mxu0 0.0
        %1918 = vmatprep.subr.mxu0 0.0
        %1919 = vmatpush1.msra.mxu0 0.0
        %1920 = vmatprep.subr.mxu0 0.0
        %1921 = vmatpush1.msra.mxu0 0.0
        %1922 = vmatprep.subr.mxu0 0.0
        %1923 = vmatpush1.msra.mxu0 0.0
        %1924 = vmatprep.subr.mxu0 0.0
        %1925 = vmatpush1.msra.mxu0 0.0
        %1926 = vmatprep.subr.mxu0 0.0
        %1927 = vmatpush1.msra.mxu0 0.0
        %1928 = vmatprep.subr.mxu0 0.0
        %1929 = vmatpush1.msra.mxu0 0.0
        %1930 = vmatprep.subr.mxu0 0.0
        %1931 = vmatpush1.msra.mxu0 0.0
        %1932 = vmatprep.subr.mxu0 0.0
        %1933 = vmatpush1.msra.mxu0 0.0
        %1934 = vmatprep.subr.mxu0 0.0
        %1935 = vmatpush1.msra.mxu0 0.0
        %1936 = vmatprep.subr.mxu0 0.0
        %1937 = vmatpush1.msra.mxu0 0.0
        %1938 = vmatprep.subr.mxu0 0.0
        %1939 = vmatpush1.msra.mxu0 0.0
        %1940 = vmatprep.subr.mxu0 0.0
        %1941 = vmatpush1.msra.mxu0 0.0
        %1942 = vmatprep.subr.mxu0 0.0
        %1943 = vmatpush1.msra.mxu0 0.0
        %1944 = vmatprep.subr.mxu0 0.0
        %1945 = vmatpush1.msra.mxu0 0.0
        %1946 = vmatprep.subr.mxu0 0.0
        %1947 = vmatpush1.msra.mxu0 0.0
        %1948 = vmatprep.subr.mxu0 0.0
        %1949 = vmatpush1.msra.mxu0 0.0
        %1950 = vmatprep.subr.mxu0 0.0
        %1951 = vmatpush1.msra.mxu0 0.0
        %1952 = vmatprep.subr.mxu0 0.0
        %1953 = vmatpush1.msra.mxu0 0.0
        %1954 = vmatprep.subr.mxu0 0.0
        %1955 = vmatpush1.msra.mxu0 0.0
        %1956 = vmatprep.subr.mxu0 0.0
        %1957 = vmatpush1.msra.mxu0 0.0
        %1958 = vmatprep.subr.mxu0 0.0
        %1959 = vmatpush1.msra.mxu0 0.0
        %1960 = vmatprep.subr.mxu0 0.0
        %1961 = vmatpush1.msra.mxu0 0.0
        %1962 = vmatprep.mubr.f32.mxu0 0.0
        %1963 = vmatmul.mubr.f32.gmra.mrb[0].mxu0 %v1683
        %v1964 = vpop.f32.mrb[0].mxu0
        %v1965 = vadd.f32 0.0, %v1964
        %v1966 = vpop.f32.mrb[0].mxu0
        %v1967 = vadd.f32 0.0, %v1966
        %1968 = vdwg.mxu0
        %v1969 = vld [vmem:[%s7] sm:$0xff]
        %v1970 = vld [vmem:[%s8] sm:$0xff]
        %v1971 = vadd.f32 %v1752, %v1754
        %v1972 = vadd.f32 %v1971, %v1823
        %v1973 = vadd.f32 %v1972, %v1825
        %v1974 = vadd.f32 %v1973, %v1894
        %v1975 = vadd.f32 %v1974, %v1896
        %v1976 = vadd.f32 %v1975, %v1965
        %v1977 = vadd.f32 %v1976, %v1967
        %1978 = vadd.xlane.f32.xlu0 %v1977
        %v1979 = vpop.xlane.xlu0 %1978
        %v1980 = vrot.slane %v1979, 4
        %v1981 = vadd.f32 %v1979, %v1980
        %v1982 = vrot.slane %v1981, 2
        %v1983 = vadd.f32 %v1981, %v1982
        %v1984 = vrot.slane %v1983, 1
        %v1985 = vadd.f32 %v1983, %v1984
        %v1986 = vmul.f32 %v1985, 0.00012207031
        %v1987 = vsub.f32 %v1752, %v1986
        %v1988 = vsub.f32 %v1754, %v1986
        %v1989 = vsub.f32 %v1823, %v1986
        %v1990 = vsub.f32 %v1825, %v1986
        %v1991 = vsub.f32 %v1894, %v1986
        %v1992 = vsub.f32 %v1896, %v1986
        %v1993 = vsub.f32 %v1965, %v1986
        %v1994 = vsub.f32 %v1967, %v1986
        %v1995 = vmul.f32 %v1987, %v1987
        %v1996 = vmul.f32 %v1988, %v1988
        %v1997 = vmul.f32 %v1989, %v1989
        %v1998 = vmul.f32 %v1990, %v1990
        %v1999 = vmul.f32 %v1991, %v1991
        %v2000 = vmul.f32 %v1992, %v1992
        %v2001 = vmul.f32 %v1993, %v1993
        %v2002 = vmul.f32 %v1994, %v1994
        %v2003 = vadd.f32 %v1995, %v1996
        %v2004 = vadd.f32 %v2003, %v1997
        %v2005 = vadd.f32 %v2004, %v1998
        %v2006 = vadd.f32 %v2005, %v1999
        %v2007 = vadd.f32 %v2006, %v2000
        %v2008 = vadd.f32 %v2007, %v2001
        %v2009 = vadd.f32 %v2008, %v2002
        %2010 = vadd.xlane.f32.xlu0 %v2009
        %v2011 = vpop.xlane.xlu0 %2010
        %v2012 = vrot.slane %v2011, 4
        %v2013 = vadd.f32 %v2011, %v2012
        %v2014 = vrot.slane %v2013, 2
        %v2015 = vadd.f32 %v2013, %v2014
        %v2016 = vrot.slane %v2015, 1
        %v2017 = vadd.f32 %v2015, %v2016
        %v2018 = vmul.f32 %v2017, 0.00012207031
        %v2019 = vadd.f32 %v2018, 1e-05
        %v2020 = vrsqrt.pop %v2019
        %v2021 = vmul.f32 %v1987, %v2020
        %v2022 = vmul.f32 %v1988, %v2020
        %v2023 = vmul.f32 %v1989, %v2020
        %v2024 = vmul.f32 %v1990, %v2020
        %v2025 = vmul.f32 %v1991, %v2020
        %v2026 = vmul.f32 %v1992, %v2020
        %v2027 = vmul.f32 %v1993, %v2020
        %v2028 = vmul.f32 %v1994, %v2020
        %2030 = vset.pattern.permute.xlu0 0
        %2031 = vperm.xlu0 %2030, %v1969
        %v2032 = vpop.permute.xlu0 %2031
        %v2034 = vmul.f32 %v2021, %v2032
        %v2035 = vmul.f32 %v2022, %v2032
        %v2036 = vmul.f32 %v2023, %v2032
        %v2037 = vmul.f32 %v2024, %v2032
        %v2038 = vmul.f32 %v2025, %v2032
        %v2039 = vmul.f32 %v2026, %v2032
        %v2040 = vmul.f32 %v2027, %v2032
        %v2041 = vmul.f32 %v2028, %v2032
        %2043 = vset.pattern.permute.xlu0 0
        %2044 = vperm.xlu0 %2043, %v1970
        %v2045 = vpop.permute.xlu0 %2044
        %v2047 = vadd.f32 %v2034, %v2045
        %v2048 = vadd.f32 %v2035, %v2045
        %v2049 = vadd.f32 %v2036, %v2045
        %v2050 = vadd.f32 %v2037, %v2045
        %v2051 = vadd.f32 %v2038, %v2045
        %v2052 = vadd.f32 %v2039, %v2045
        %v2053 = vadd.f32 %v2040, %v2045
        %v2054 = vadd.f32 %v2041, %v2045
        %v2055 = vmul.f32 %v2047, 0.5
        %v2056 = vmul.f32 %v2048, 0.5
        %v2057 = vmul.f32 %v2049, 0.5
        %v2058 = vmul.f32 %v2050, 0.5
        %v2059 = vmul.f32 %v2051, 0.5
        %v2060 = vmul.f32 %v2052, 0.5
        %v2061 = vmul.f32 %v2053, 0.5
        %v2062 = vmul.f32 %v2054, 0.5
        %v2063 = vmul.f32 %v2047, 0.70710677
        %v2064 = vmul.f32 %v2048, 0.70710677
        %v2065 = vmul.f32 %v2049, 0.70710677
        %v2066 = vmul.f32 %v2050, 0.70710677
        %v2067 = vmul.f32 %v2051, 0.70710677
        %v2068 = vmul.f32 %v2052, 0.70710677
        %v2069 = vmul.f32 %v2053, 0.70710677
        %v2070 = vmul.f32 %v2054, 0.70710677
        %v2071 = verf.f32.pop %v2063
        %v2072 = verf.f32.pop %v2064
        %v2073 = verf.f32.pop %v2065
        %v2074 = verf.f32.pop %v2066
        %v2075 = verf.f32.pop %v2067
        %v2076 = verf.f32.pop %v2068
        %v2077 = verf.f32.pop %v2069
        %v2078 = verf.f32.pop %v2070
        %v2079 = vadd.f32 %v2071, 1.0
        %v2080 = vadd.f32 %v2072, 1.0
        %v2081 = vadd.f32 %v2073, 1.0
        %v2082 = vadd.f32 %v2074, 1.0
        %v2083 = vadd.f32 %v2075, 1.0
        %v2084 = vadd.f32 %v2076, 1.0
        %v2085 = vadd.f32 %v2077, 1.0
        %v2086 = vadd.f32 %v2078, 1.0
        %v2087 = vmul.f32 %v2055, %v2079
        %v2088 = vmul.f32 %v2056, %v2080
        %v2089 = vmul.f32 %v2057, %v2081
        %v2090 = vmul.f32 %v2058, %v2082
        %v2091 = vmul.f32 %v2059, %v2083
        %v2092 = vmul.f32 %v2060, %v2084
        %v2093 = vmul.f32 %v2061, %v2085
        %v2094 = vmul.f32 %v2062, %v2086
        %v2095 = vld [vmem:[%s9] sm:$0xff]
        %2104 = vrot.lane.b32.xlu0 %v2087, 33
        %v2105 = vpop.permute.xlu0 %2104
        %2106 = vrot.lane.b32.xlu0 %v2088, 33
        %v2107 = vpop.permute.xlu0 %2106
        %2108 = vrot.lane.b32.xlu0 %v2089, 33
        %v2109 = vpop.permute.xlu0 %2108
        %2110 = vrot.lane.b32.xlu0 %v2090, 33
        %v2111 = vpop.permute.xlu0 %2110
        %2112 = vrot.lane.b32.xlu0 %v2091, 33
        %v2113 = vpop.permute.xlu0 %2112
        %2114 = vrot.lane.b32.xlu0 %v2092, 33
        %v2115 = vpop.permute.xlu0 %2114
        %2116 = vrot.lane.b32.xlu0 %v2093, 33
        %v2117 = vpop.permute.xlu0 %2116
        %2118 = vrot.lane.b32.xlu0 %v2094, 33
        %v2119 = vpop.permute.xlu0 %2118
        %v2120 = vsel %vm1303, %v2105, %v2107
        %v2121 = vsel %vm1303, %v2107, %v2109
        %v2122 = vsel %vm1303, %v2109, %v2111
        %v2123 = vsel %vm1303, %v2111, %v2113
        %v2124 = vsel %vm1303, %v2113, %v2115
        %v2125 = vsel %vm1303, %v2115, %v2117
        %v2126 = vsel %vm1303, %v2117, %v2119
        %v2135 = vsel %vm1303, 0.0, %v2105
        %v2136 = vmul.f32 %v2135, %v1324
        %v2137 = vmul.f32 %v2120, %v1328
        %v2138 = vmul.f32 %v2121, %v1332
        %v2139 = vmul.f32 %v2122, %v1336
        %v2140 = vmul.f32 %v2123, %v1340
        %v2141 = vmul.f32 %v2124, %v1344
        %v2142 = vmul.f32 %v2125, %v1348
        %v2143 = vmul.f32 %v2126, %v1352
        %2144 = vrot.lane.b32.xlu0 %v2087, 32
        %v2145 = vpop.permute.xlu0 %2144
        %2146 = vrot.lane.b32.xlu0 %v2088, 32
        %v2147 = vpop.permute.xlu0 %2146
        %2148 = vrot.lane.b32.xlu0 %v2089, 32
        %v2149 = vpop.permute.xlu0 %2148
        %2150 = vrot.lane.b32.xlu0 %v2090, 32
        %v2151 = vpop.permute.xlu0 %2150
        %2152 = vrot.lane.b32.xlu0 %v2091, 32
        %v2153 = vpop.permute.xlu0 %2152
        %2154 = vrot.lane.b32.xlu0 %v2092, 32
        %v2155 = vpop.permute.xlu0 %2154
        %2156 = vrot.lane.b32.xlu0 %v2093, 32
        %v2157 = vpop.permute.xlu0 %2156
        %2158 = vrot.lane.b32.xlu0 %v2094, 32
        %v2159 = vpop.permute.xlu0 %2158
        %v2160 = vsel %vm1385, %v2145, %v2147
        %v2161 = vsel %vm1385, %v2147, %v2149
        %v2162 = vsel %vm1385, %v2149, %v2151
        %v2163 = vsel %vm1385, %v2151, %v2153
        %v2164 = vsel %vm1385, %v2153, %v2155
        %v2165 = vsel %vm1385, %v2155, %v2157
        %v2166 = vsel %vm1385, %v2157, %v2159
        %v2175 = vsel %vm1385, 0.0, %v2145
        %2176 = vrot.lane.b32.xlu0 %v2087, 31
        %v2177 = vpop.permute.xlu0 %2176
        %2178 = vrot.lane.b32.xlu0 %v2088, 31
        %v2179 = vpop.permute.xlu0 %2178
        %2180 = vrot.lane.b32.xlu0 %v2089, 31
        %v2181 = vpop.permute.xlu0 %2180
        %2182 = vrot.lane.b32.xlu0 %v2090, 31
        %v2183 = vpop.permute.xlu0 %2182
        %2184 = vrot.lane.b32.xlu0 %v2091, 31
        %v2185 = vpop.permute.xlu0 %2184
        %2186 = vrot.lane.b32.xlu0 %v2092, 31
        %v2187 = vpop.permute.xlu0 %2186
        %2188 = vrot.lane.b32.xlu0 %v2093, 31
        %v2189 = vpop.permute.xlu0 %2188
        %2190 = vrot.lane.b32.xlu0 %v2094, 31
        %v2191 = vpop.permute.xlu0 %2190
        %v2192 = vsel %vm1418, %v2177, %v2179
        %v2193 = vsel %vm1418, %v2179, %v2181
        %v2194 = vsel %vm1418, %v2181, %v2183
        %v2195 = vsel %vm1418, %v2183, %v2185
        %v2196 = vsel %vm1418, %v2185, %v2187
        %v2197 = vsel %vm1418, %v2187, %v2189
        %v2198 = vsel %vm1418, %v2189, %v2191
        %v2207 = vsel %vm1418, 0.0, %v2177
        %v2208 = vmul.f32 %v2207, %v1439
        %v2209 = vmul.f32 %v2192, %v1443
        %v2210 = vmul.f32 %v2193, %v1447
        %v2211 = vmul.f32 %v2194, %v1451
        %v2212 = vmul.f32 %v2195, %v1455
        %v2213 = vmul.f32 %v2196, %v1459
        %v2214 = vmul.f32 %v2197, %v1463
        %v2215 = vmul.f32 %v2198, %v1467
        %2216 = vrot.lane.b32.xlu0 %v2087, 1
        %v2217 = vpop.permute.xlu0 %2216
        %2218 = vrot.lane.b32.xlu0 %v2088, 1
        %v2219 = vpop.permute.xlu0 %2218
        %2220 = vrot.lane.b32.xlu0 %v2089, 1
        %v2221 = vpop.permute.xlu0 %2220
        %2222 = vrot.lane.b32.xlu0 %v2090, 1
        %v2223 = vpop.permute.xlu0 %2222
        %2224 = vrot.lane.b32.xlu0 %v2091, 1
        %v2225 = vpop.permute.xlu0 %2224
        %2226 = vrot.lane.b32.xlu0 %v2092, 1
        %v2227 = vpop.permute.xlu0 %2226
        %2228 = vrot.lane.b32.xlu0 %v2093, 1
        %v2229 = vpop.permute.xlu0 %2228
        %2230 = vrot.lane.b32.xlu0 %v2094, 1
        %v2231 = vpop.permute.xlu0 %2230
        %v2232 = vsel %vm1500, %v2217, %v2219
        %v2233 = vsel %vm1500, %v2219, %v2221
        %v2234 = vsel %vm1500, %v2221, %v2223
        %v2235 = vsel %vm1500, %v2223, %v2225
        %v2236 = vsel %vm1500, %v2225, %v2227
        %v2237 = vsel %vm1500, %v2227, %v2229
        %v2238 = vsel %vm1500, %v2229, %v2231
        %v2247 = vsel %vm1500, 0.0, %v2217
        %v2248 = vmul.f32 %v2247, %v1324
        %v2249 = vmul.f32 %v2232, %v1328
        %v2250 = vmul.f32 %v2233, %v1332
        %v2251 = vmul.f32 %v2234, %v1336
        %v2252 = vmul.f32 %v2235, %v1340
        %v2253 = vmul.f32 %v2236, %v1344
        %v2254 = vmul.f32 %v2237, %v1348
        %v2255 = vmul.f32 %v2238, %v1352
        %2256 = vrot.lane.b32.xlu0 %v2087, 127
        %v2257 = vpop.permute.xlu0 %2256
        %2258 = vrot.lane.b32.xlu0 %v2088, 127
        %v2259 = vpop.permute.xlu0 %2258
        %2260 = vrot.lane.b32.xlu0 %v2089, 127
        %v2261 = vpop.permute.xlu0 %2260
        %2262 = vrot.lane.b32.xlu0 %v2090, 127
        %v2263 = vpop.permute.xlu0 %2262
        %2264 = vrot.lane.b32.xlu0 %v2091, 127
        %v2265 = vpop.permute.xlu0 %2264
        %2266 = vrot.lane.b32.xlu0 %v2092, 127
        %v2267 = vpop.permute.xlu0 %2266
        %2268 = vrot.lane.b32.xlu0 %v2093, 127
        %v2269 = vpop.permute.xlu0 %2268
        %2270 = vrot.lane.b32.xlu0 %v2094, 127
        %v2271 = vpop.permute.xlu0 %2270
        %v2272 = vsel %vm1541, %v2257, %v2259
        %v2273 = vsel %vm1541, %v2259, %v2261
        %v2274 = vsel %vm1541, %v2261, %v2263
        %v2275 = vsel %vm1541, %v2263, %v2265
        %v2276 = vsel %vm1541, %v2265, %v2267
        %v2277 = vsel %vm1541, %v2267, %v2269
        %v2278 = vsel %vm1541, %v2269, %v2271
        %v2287 = vsel %vm1541, %v2271, 0.0
        %v2288 = vmul.f32 %v2272, %v1439
        %v2289 = vmul.f32 %v2273, %v1443
        %v2290 = vmul.f32 %v2274, %v1447
        %v2291 = vmul.f32 %v2275, %v1451
        %v2292 = vmul.f32 %v2276, %v1455
        %v2293 = vmul.f32 %v2277, %v1459
        %v2294 = vmul.f32 %v2278, %v1463
        %v2295 = vmul.f32 %v2287, %v1467
        %2296 = vrot.lane.b32.xlu0 %v2087, 97
        %v2297 = vpop.permute.xlu0 %2296
        %2298 = vrot.lane.b32.xlu0 %v2088, 97
        %v2299 = vpop.permute.xlu0 %2298
        %2300 = vrot.lane.b32.xlu0 %v2089, 97
        %v2301 = vpop.permute.xlu0 %2300
        %2302 = vrot.lane.b32.xlu0 %v2090, 97
        %v2303 = vpop.permute.xlu0 %2302
        %2304 = vrot.lane.b32.xlu0 %v2091, 97
        %v2305 = vpop.permute.xlu0 %2304
        %2306 = vrot.lane.b32.xlu0 %v2092, 97
        %v2307 = vpop.permute.xlu0 %2306
        %2308 = vrot.lane.b32.xlu0 %v2093, 97
        %v2309 = vpop.permute.xlu0 %2308
        %2310 = vrot.lane.b32.xlu0 %v2094, 97
        %v2311 = vpop.permute.xlu0 %2310
        %v2312 = vsel %vm1582, %v2297, %v2299
        %v2313 = vsel %vm1582, %v2299, %v2301
        %v2314 = vsel %vm1582, %v2301, %v2303
        %v2315 = vsel %vm1582, %v2303, %v2305
        %v2316 = vsel %vm1582, %v2305, %v2307
        %v2317 = vsel %vm1582, %v2307, %v2309
        %v2318 = vsel %vm1582, %v2309, %v2311
        %v2327 = vsel %vm1582, %v2311, 0.0
        %v2328 = vmul.f32 %v2312, %v1324
        %v2329 = vmul.f32 %v2313, %v1328
        %v2330 = vmul.f32 %v2314, %v1332
        %v2331 = vmul.f32 %v2315, %v1336
        %v2332 = vmul.f32 %v2316, %v1340
        %v2333 = vmul.f32 %v2317, %v1344
        %v2334 = vmul.f32 %v2318, %v1348
        %v2335 = vmul.f32 %v2327, %v1352
        %2336 = vrot.lane.b32.xlu0 %v2087, 96
        %v2337 = vpop.permute.xlu0 %2336
        %2338 = vrot.lane.b32.xlu0 %v2088, 96
        %v2339 = vpop.permute.xlu0 %2338
        %2340 = vrot.lane.b32.xlu0 %v2089, 96
        %v2341 = vpop.permute.xlu0 %2340
        %2342 = vrot.lane.b32.xlu0 %v2090, 96
        %v2343 = vpop.permute.xlu0 %2342
        %2344 = vrot.lane.b32.xlu0 %v2091, 96
        %v2345 = vpop.permute.xlu0 %2344
        %2346 = vrot.lane.b32.xlu0 %v2092, 96
        %v2347 = vpop.permute.xlu0 %2346
        %2348 = vrot.lane.b32.xlu0 %v2093, 96
        %v2349 = vpop.permute.xlu0 %2348
        %2350 = vrot.lane.b32.xlu0 %v2094, 96
        %v2351 = vpop.permute.xlu0 %2350
        %v2352 = vsel %vm1623, %v2337, %v2339
        %v2353 = vsel %vm1623, %v2339, %v2341
        %v2354 = vsel %vm1623, %v2341, %v2343
        %v2355 = vsel %vm1623, %v2343, %v2345
        %v2356 = vsel %vm1623, %v2345, %v2347
        %v2357 = vsel %vm1623, %v2347, %v2349
        %v2358 = vsel %vm1623, %v2349, %v2351
        %v2367 = vsel %vm1623, %v2351, 0.0
        %2368 = vrot.lane.b32.xlu0 %v2087, 95
        %v2369 = vpop.permute.xlu0 %2368
        %2370 = vrot.lane.b32.xlu0 %v2088, 95
        %v2371 = vpop.permute.xlu0 %2370
        %2372 = vrot.lane.b32.xlu0 %v2089, 95
        %v2373 = vpop.permute.xlu0 %2372
        %2374 = vrot.lane.b32.xlu0 %v2090, 95
        %v2375 = vpop.permute.xlu0 %2374
        %2376 = vrot.lane.b32.xlu0 %v2091, 95
        %v2377 = vpop.permute.xlu0 %2376
        %2378 = vrot.lane.b32.xlu0 %v2092, 95
        %v2379 = vpop.permute.xlu0 %2378
        %2380 = vrot.lane.b32.xlu0 %v2093, 95
        %v2381 = vpop.permute.xlu0 %2380
        %2382 = vrot.lane.b32.xlu0 %v2094, 95
        %v2383 = vpop.permute.xlu0 %2382
        %v2384 = vsel %vm1656, %v2369, %v2371
        %v2385 = vsel %vm1656, %v2371, %v2373
        %v2386 = vsel %vm1656, %v2373, %v2375
        %v2387 = vsel %vm1656, %v2375, %v2377
        %v2388 = vsel %vm1656, %v2377, %v2379
        %v2389 = vsel %vm1656, %v2379, %v2381
        %v2390 = vsel %vm1656, %v2381, %v2383
        %v2399 = vsel %vm1656, %v2383, 0.0
        %v2400 = vmul.f32 %v2384, %v1439
        %v2401 = vmul.f32 %v2385, %v1443
        %v2402 = vmul.f32 %v2386, %v1447
        %v2403 = vmul.f32 %v2387, %v1451
        %v2404 = vmul.f32 %v2388, %v1455
        %v2405 = vmul.f32 %v2389, %v1459
        %v2406 = vmul.f32 %v2390, %v1463
        %v2407 = vmul.f32 %v2399, %v1467
        %v2409 = vsel %vm1681, %v2095, 0
        %2411 = vmatprep.subr.mxu0 %v2137
        %2412 = vmatpush1.msra.mxu0 %v2136
        %2413 = vmatprep.subr.mxu0 %v2160
        %2414 = vmatpush1.msra.mxu0 %v2175
        %2415 = vmatprep.subr.mxu0 %v2209
        %2416 = vmatpush1.msra.mxu0 %v2208
        %2417 = vmatprep.subr.mxu0 %v2249
        %2418 = vmatpush1.msra.mxu0 %v2248
        %2419 = vmatprep.subr.mxu0 %v2088
        %2420 = vmatpush1.msra.mxu0 %v2087
        %2421 = vmatprep.subr.mxu0 %v2289
        %2422 = vmatpush1.msra.mxu0 %v2288
        %2423 = vmatprep.subr.mxu0 %v2329
        %2424 = vmatpush1.msra.mxu0 %v2328
        %2425 = vmatprep.subr.mxu0 %v2353
        %2426 = vmatpush1.msra.mxu0 %v2352
        %2427 = vmatprep.subr.mxu0 %v2401
        %2428 = vmatpush1.msra.mxu0 %v2400
        %2429 = vmatprep.subr.mxu0 0.0
        %2430 = vmatpush1.msra.mxu0 0.0
        %2431 = vmatprep.subr.mxu0 0.0
        %2432 = vmatpush1.msra.mxu0 0.0
        %2433 = vmatprep.subr.mxu0 0.0
        %2434 = vmatpush1.msra.mxu0 0.0
        %2435 = vmatprep.subr.mxu0 0.0
        %2436 = vmatpush1.msra.mxu0 0.0
        %2437 = vmatprep.subr.mxu0 0.0
        %2438 = vmatpush1.msra.mxu0 0.0
        %2439 = vmatprep.subr.mxu0 0.0
        %2440 = vmatpush1.msra.mxu0 0.0
        %2441 = vmatprep.subr.mxu0 0.0
        %2442 = vmatpush1.msra.mxu0 0.0
        %2443 = vmatprep.subr.mxu0 0.0
        %2444 = vmatpush1.msra.mxu0 0.0
        %2445 = vmatprep.subr.mxu0 0.0
        %2446 = vmatpush1.msra.mxu0 0.0
        %2447 = vmatprep.subr.mxu0 0.0
        %2448 = vmatpush1.msra.mxu0 0.0
        %2449 = vmatprep.subr.mxu0 0.0
        %2450 = vmatpush1.msra.mxu0 0.0
        %2451 = vmatprep.subr.mxu0 0.0
        %2452 = vmatpush1.msra.mxu0 0.0
        %2453 = vmatprep.subr.mxu0 0.0
        %2454 = vmatpush1.msra.mxu0 0.0
        %2455 = vmatprep.subr.mxu0 0.0
        %2456 = vmatpush1.msra.mxu0 0.0
        %2457 = vmatprep.subr.mxu0 0.0
        %2458 = vmatpush1.msra.mxu0 0.0
        %2459 = vmatprep.subr.mxu0 0.0
        %2460 = vmatpush1.msra.mxu0 0.0
        %2461 = vmatprep.subr.mxu0 0.0
        %2462 = vmatpush1.msra.mxu0 0.0
        %2463 = vmatprep.subr.mxu0 0.0
        %2464 = vmatpush1.msra.mxu0 0.0
        %2465 = vmatprep.subr.mxu0 0.0
        %2466 = vmatpush1.msra.mxu0 0.0
        %2467 = vmatprep.subr.mxu0 0.0
        %2468 = vmatpush1.msra.mxu0 0.0
        %2469 = vmatprep.subr.mxu0 0.0
        %2470 = vmatpush1.msra.mxu0 0.0
        %2471 = vmatprep.subr.mxu0 0.0
        %2472 = vmatpush1.msra.mxu0 0.0
        %2473 = vmatprep.subr.mxu0 0.0
        %2474 = vmatpush1.msra.mxu0 0.0
        %2475 = vmatprep.mubr.f32.mxu0 0.0
        %2476 = vmatmul.mubr.f32.gmra.mrb[0].mxu0 %v2409
        %v2477 = vpop.f32.mrb[0].mxu0
        %v2478 = vadd.f32 0.0, %v2477
        %v2479 = vpop.f32.mrb[0].mxu0
        %v2480 = vadd.f32 0.0, %v2479
        %2481 = vdwg.mxu0
        %2482 = vmatprep.subr.mxu0 %v2139
        %2483 = vmatpush1.msra.mxu0 %v2138
        %2484 = vmatprep.subr.mxu0 %v2162
        %2485 = vmatpush1.msra.mxu0 %v2161
        %2486 = vmatprep.subr.mxu0 %v2211
        %2487 = vmatpush1.msra.mxu0 %v2210
        %2488 = vmatprep.subr.mxu0 %v2251
        %2489 = vmatpush1.msra.mxu0 %v2250
        %2490 = vmatprep.subr.mxu0 %v2090
        %2491 = vmatpush1.msra.mxu0 %v2089
        %2492 = vmatprep.subr.mxu0 %v2291
        %2493 = vmatpush1.msra.mxu0 %v2290
        %2494 = vmatprep.subr.mxu0 %v2331
        %2495 = vmatpush1.msra.mxu0 %v2330
        %2496 = vmatprep.subr.mxu0 %v2355
        %2497 = vmatpush1.msra.mxu0 %v2354
        %2498 = vmatprep.subr.mxu0 %v2403
        %2499 = vmatpush1.msra.mxu0 %v2402
        %2500 = vmatprep.subr.mxu0 0.0
        %2501 = vmatpush1.msra.mxu0 0.0
        %2502 = vmatprep.subr.mxu0 0.0
        %2503 = vmatpush1.msra.mxu0 0.0
        %2504 = vmatprep.subr.mxu0 0.0
        %2505 = vmatpush1.msra.mxu0 0.0
        %2506 = vmatprep.subr.mxu0 0.0
        %2507 = vmatpush1.msra.mxu0 0.0
        %2508 = vmatprep.subr.mxu0 0.0
        %2509 = vmatpush1.msra.mxu0 0.0
        %2510 = vmatprep.subr.mxu0 0.0
        %2511 = vmatpush1.msra.mxu0 0.0
        %2512 = vmatprep.subr.mxu0 0.0
        %2513 = vmatpush1.msra.mxu0 0.0
        %2514 = vmatprep.subr.mxu0 0.0
        %2515 = vmatpush1.msra.mxu0 0.0
        %2516 = vmatprep.subr.mxu0 0.0
        %2517 = vmatpush1.msra.mxu0 0.0
        %2518 = vmatprep.subr.mxu0 0.0
        %2519 = vmatpush1.msra.mxu0 0.0
        %2520 = vmatprep.subr.mxu0 0.0
        %2521 = vmatpush1.msra.mxu0 0.0
        %2522 = vmatprep.subr.mxu0 0.0
        %2523 = vmatpush1.msra.mxu0 0.0
        %2524 = vmatprep.subr.mxu0 0.0
        %2525 = vmatpush1.msra.mxu0 0.0
        %2526 = vmatprep.subr.mxu0 0.0
        %2527 = vmatpush1.msra.mxu0 0.0
        %2528 = vmatprep.subr.mxu0 0.0
        %2529 = vmatpush1.msra.mxu0 0.0
        %2530 = vmatprep.subr.mxu0 0.0
        %2531 = vmatpush1.msra.mxu0 0.0
        %2532 = vmatprep.subr.mxu0 0.0
        %2533 = vmatpush1.msra.mxu0 0.0
        %2534 = vmatprep.subr.mxu0 0.0
        %2535 = vmatpush1.msra.mxu0 0.0
        %2536 = vmatprep.subr.mxu0 0.0
        %2537 = vmatpush1.msra.mxu0 0.0
        %2538 = vmatprep.subr.mxu0 0.0
        %2539 = vmatpush1.msra.mxu0 0.0
        %2540 = vmatprep.subr.mxu0 0.0
        %2541 = vmatpush1.msra.mxu0 0.0
        %2542 = vmatprep.subr.mxu0 0.0
        %2543 = vmatpush1.msra.mxu0 0.0
        %2544 = vmatprep.subr.mxu0 0.0
        %2545 = vmatpush1.msra.mxu0 0.0
        %2546 = vmatprep.mubr.f32.mxu0 0.0
        %2547 = vmatmul.mubr.f32.gmra.mrb[0].mxu0 %v2409
        %v2548 = vpop.f32.mrb[0].mxu0
        %v2549 = vadd.f32 0.0, %v2548
        %v2550 = vpop.f32.mrb[0].mxu0
        %v2551 = vadd.f32 0.0, %v2550
        %2552 = vdwg.mxu0
        %2553 = vmatprep.subr.mxu0 %v2141
        %2554 = vmatpush1.msra.mxu0 %v2140
        %2555 = vmatprep.subr.mxu0 %v2164
        %2556 = vmatpush1.msra.mxu0 %v2163
        %2557 = vmatprep.subr.mxu0 %v2213
        %2558 = vmatpush1.msra.mxu0 %v2212
        %2559 = vmatprep.subr.mxu0 %v2253
        %2560 = vmatpush1.msra.mxu0 %v2252
        %2561 = vmatprep.subr.mxu0 %v2092
        %2562 = vmatpush1.msra.mxu0 %v2091
        %2563 = vmatprep.subr.mxu0 %v2293
        %2564 = vmatpush1.msra.mxu0 %v2292
        %2565 = vmatprep.subr.mxu0 %v2333
        %2566 = vmatpush1.msra.mxu0 %v2332
        %2567 = vmatprep.subr.mxu0 %v2357
        %2568 = vmatpush1.msra.mxu0 %v2356
        %2569 = vmatprep.subr.mxu0 %v2405
        %2570 = vmatpush1.msra.mxu0 %v2404
        %2571 = vmatprep.subr.mxu0 0.0
        %2572 = vmatpush1.msra.mxu0 0.0
        %2573 = vmatprep.subr.mxu0 0.0
        %2574 = vmatpush1.msra.mxu0 0.0
        %2575 = vmatprep.subr.mxu0 0.0
        %2576 = vmatpush1.msra.mxu0 0.0
        %2577 = vmatprep.subr.mxu0 0.0
        %2578 = vmatpush1.msra.mxu0 0.0
        %2579 = vmatprep.subr.mxu0 0.0
        %2580 = vmatpush1.msra.mxu0 0.0
        %2581 = vmatprep.subr.mxu0 0.0
        %2582 = vmatpush1.msra.mxu0 0.0
        %2583 = vmatprep.subr.mxu0 0.0
        %2584 = vmatpush1.msra.mxu0 0.0
        %2585 = vmatprep.subr.mxu0 0.0
        %2586 = vmatpush1.msra.mxu0 0.0
        %2587 = vmatprep.subr.mxu0 0.0
        %2588 = vmatpush1.msra.mxu0 0.0
        %2589 = vmatprep.subr.mxu0 0.0
        %2590 = vmatpush1.msra.mxu0 0.0
        %2591 = vmatprep.subr.mxu0 0.0
        %2592 = vmatpush1.msra.mxu0 0.0
        %2593 = vmatprep.subr.mxu0 0.0
        %2594 = vmatpush1.msra.mxu0 0.0
        %2595 = vmatprep.subr.mxu0 0.0
        %2596 = vmatpush1.msra.mxu0 0.0
        %2597 = vmatprep.subr.mxu0 0.0
        %2598 = vmatpush1.msra.mxu0 0.0
        %2599 = vmatprep.subr.mxu0 0.0
        %2600 = vmatpush1.msra.mxu0 0.0
        %2601 = vmatprep.subr.mxu0 0.0
        %2602 = vmatpush1.msra.mxu0 0.0
        %2603 = vmatprep.subr.mxu0 0.0
        %2604 = vmatpush1.msra.mxu0 0.0
        %2605 = vmatprep.subr.mxu0 0.0
        %2606 = vmatpush1.msra.mxu0 0.0
        %2607 = vmatprep.subr.mxu0 0.0
        %2608 = vmatpush1.msra.mxu0 0.0
        %2609 = vmatprep.subr.mxu0 0.0
        %2610 = vmatpush1.msra.mxu0 0.0
        %2611 = vmatprep.subr.mxu0 0.0
        %2612 = vmatpush1.msra.mxu0 0.0
        %2613 = vmatprep.subr.mxu0 0.0
        %2614 = vmatpush1.msra.mxu0 0.0
        %2615 = vmatprep.subr.mxu0 0.0
        %2616 = vmatpush1.msra.mxu0 0.0
        %2617 = vmatprep.mubr.f32.mxu0 0.0
        %2618 = vmatmul.mubr.f32.gmra.mrb[0].mxu0 %v2409
        %v2619 = vpop.f32.mrb[0].mxu0
        %v2620 = vadd.f32 0.0, %v2619
        %v2621 = vpop.f32.mrb[0].mxu0
        %v2622 = vadd.f32 0.0, %v2621
        %2623 = vdwg.mxu0
        %2624 = vmatprep.subr.mxu0 %v2143
        %2625 = vmatpush1.msra.mxu0 %v2142
        %2626 = vmatprep.subr.mxu0 %v2166
        %2627 = vmatpush1.msra.mxu0 %v2165
        %2628 = vmatprep.subr.mxu0 %v2215
        %2629 = vmatpush1.msra.mxu0 %v2214
        %2630 = vmatprep.subr.mxu0 %v2255
        %2631 = vmatpush1.msra.mxu0 %v2254
        %2632 = vmatprep.subr.mxu0 %v2094
        %2633 = vmatpush1.msra.mxu0 %v2093
        %2634 = vmatprep.subr.mxu0 %v2295
        %2635 = vmatpush1.msra.mxu0 %v2294
        %2636 = vmatprep.subr.mxu0 %v2335
        %2637 = vmatpush1.msra.mxu0 %v2334
        %2638 = vmatprep.subr.mxu0 %v2367
        %2639 = vmatpush1.msra.mxu0 %v2358
        %2640 = vmatprep.subr.mxu0 %v2407
        %2641 = vmatpush1.msra.mxu0 %v2406
        %2642 = vmatprep.subr.mxu0 0.0
        %2643 = vmatpush1.msra.mxu0 0.0
        %2644 = vmatprep.subr.mxu0 0.0
        %2645 = vmatpush1.msra.mxu0 0.0
        %2646 = vmatprep.subr.mxu0 0.0
        %2647 = vmatpush1.msra.mxu0 0.0
        %2648 = vmatprep.subr.mxu0 0.0
        %2649 = vmatpush1.msra.mxu0 0.0
        %2650 = vmatprep.subr.mxu0 0.0
        %2651 = vmatpush1.msra.mxu0 0.0
        %2652 = vmatprep.subr.mxu0 0.0
        %2653 = vmatpush1.msra.mxu0 0.0
        %2654 = vmatprep.subr.mxu0 0.0
        %2655 = vmatpush1.msra.mxu0 0.0
        %2656 = vmatprep.subr.mxu0 0.0
        %2657 = vmatpush1.msra.mxu0 0.0
        %2658 = vmatprep.subr.mxu0 0.0
        %2659 = vmatpush1.msra.mxu0 0.0
        %2660 = vmatprep.subr.mxu0 0.0
        %2661 = vmatpush1.msra.mxu0 0.0
        %2662 = vmatprep.subr.mxu0 0.0
        %2663 = vmatpush1.msra.mxu0 0.0
        %2664 = vmatprep.subr.mxu0 0.0
        %2665 = vmatpush1.msra.mxu0 0.0
        %2666 = vmatprep.subr.mxu0 0.0
        %2667 = vmatpush1.msra.mxu0 0.0
        %2668 = vmatprep.subr.mxu0 0.0
        %2669 = vmatpush1.msra.mxu0 0.0
        %2670 = vmatprep.subr.mxu0 0.0
        %2671 = vmatpush1.msra.mxu0 0.0
        %2672 = vmatprep.subr.mxu0 0.0
        %2673 = vmatpush1.msra.mxu0 0.0
        %2674 = vmatprep.subr.mxu0 0.0
        %2675 = vmatpush1.msra.mxu0 0.0
        %2676 = vmatprep.subr.mxu0 0.0
        %2677 = vmatpush1.msra.mxu0 0.0
        %2678 = vmatprep.subr.mxu0 0.0
        %2679 = vmatpush1.msra.mxu0 0.0
        %2680 = vmatprep.subr.mxu0 0.0
        %2681 = vmatpush1.msra.mxu0 0.0
        %2682 = vmatprep.subr.mxu0 0.0
        %2683 = vmatpush1.msra.mxu0 0.0
        %2684 = vmatprep.subr.mxu0 0.0
        %2685 = vmatpush1.msra.mxu0 0.0
        %2686 = vmatprep.subr.mxu0 0.0
        %2687 = vmatpush1.msra.mxu0 0.0
        %2688 = vmatprep.mubr.f32.mxu0 0.0
        %2689 = vmatmul.mubr.f32.gmra.mrb[0].mxu0 %v2409
        %v2690 = vpop.f32.mrb[0].mxu0
        %v2691 = vadd.f32 0.0, %v2690
        %v2692 = vpop.f32.mrb[0].mxu0
        %v2693 = vadd.f32 0.0, %v2692
        %2694 = vdwg.mxu0
        %v2695 = vld [vmem:[%s10] sm:$0xff]
        %v2696 = vld [vmem:[%s11] sm:$0xff]
        %v2697 = vadd.f32 %v2478, %v2480
        %v2698 = vadd.f32 %v2697, %v2549
        %v2699 = vadd.f32 %v2698, %v2551
        %v2700 = vadd.f32 %v2699, %v2620
        %v2701 = vadd.f32 %v2700, %v2622
        %v2702 = vadd.f32 %v2701, %v2691
        %v2703 = vadd.f32 %v2702, %v2693
        %2704 = vadd.xlane.f32.xlu0 %v2703
        %v2705 = vpop.xlane.xlu0 %2704
        %v2706 = vrot.slane %v2705, 4
        %v2707 = vadd.f32 %v2705, %v2706
        %v2708 = vrot.slane %v2707, 2
        %v2709 = vadd.f32 %v2707, %v2708
        %v2710 = vrot.slane %v2709, 1
        %v2711 = vadd.f32 %v2709, %v2710
        %v2712 = vmul.f32 %v2711, 0.00012207031
        %v2713 = vsub.f32 %v2478, %v2712
        %v2714 = vsub.f32 %v2480, %v2712
        %v2715 = vsub.f32 %v2549, %v2712
        %v2716 = vsub.f32 %v2551, %v2712
        %v2717 = vsub.f32 %v2620, %v2712
        %v2718 = vsub.f32 %v2622, %v2712
        %v2719 = vsub.f32 %v2691, %v2712
        %v2720 = vsub.f32 %v2693, %v2712
        %v2721 = vmul.f32 %v2713, %v2713
        %v2722 = vmul.f32 %v2714, %v2714
        %v2723 = vmul.f32 %v2715, %v2715
        %v2724 = vmul.f32 %v2716, %v2716
        %v2725 = vmul.f32 %v2717, %v2717
        %v2726 = vmul.f32 %v2718, %v2718
        %v2727 = vmul.f32 %v2719, %v2719
        %v2728 = vmul.f32 %v2720, %v2720
        %v2729 = vadd.f32 %v2721, %v2722
        %v2730 = vadd.f32 %v2729, %v2723
        %v2731 = vadd.f32 %v2730, %v2724
        %v2732 = vadd.f32 %v2731, %v2725
        %v2733 = vadd.f32 %v2732, %v2726
        %v2734 = vadd.f32 %v2733, %v2727
        %v2735 = vadd.f32 %v2734, %v2728
        %2736 = vadd.xlane.f32.xlu0 %v2735
        %v2737 = vpop.xlane.xlu0 %2736
        %v2738 = vrot.slane %v2737, 4
        %v2739 = vadd.f32 %v2737, %v2738
        %v2740 = vrot.slane %v2739, 2
        %v2741 = vadd.f32 %v2739, %v2740
        %v2742 = vrot.slane %v2741, 1
        %v2743 = vadd.f32 %v2741, %v2742
        %v2744 = vmul.f32 %v2743, 0.00012207031
        %v2745 = vadd.f32 %v2744, 1e-05
        %v2746 = vrsqrt.pop %v2745
        %v2747 = vmul.f32 %v2713, %v2746
        %v2748 = vmul.f32 %v2714, %v2746
        %v2749 = vmul.f32 %v2715, %v2746
        %v2750 = vmul.f32 %v2716, %v2746
        %v2751 = vmul.f32 %v2717, %v2746
        %v2752 = vmul.f32 %v2718, %v2746
        %v2753 = vmul.f32 %v2719, %v2746
        %v2754 = vmul.f32 %v2720, %v2746
        %2756 = vset.pattern.permute.xlu0 0
        %2757 = vperm.xlu0 %2756, %v2695
        %v2758 = vpop.permute.xlu0 %2757
        %v2760 = vmul.f32 %v2747, %v2758
        %v2761 = vmul.f32 %v2748, %v2758
        %v2762 = vmul.f32 %v2749, %v2758
        %v2763 = vmul.f32 %v2750, %v2758
        %v2764 = vmul.f32 %v2751, %v2758
        %v2765 = vmul.f32 %v2752, %v2758
        %v2766 = vmul.f32 %v2753, %v2758
        %v2767 = vmul.f32 %v2754, %v2758
        %2769 = vset.pattern.permute.xlu0 0
        %2770 = vperm.xlu0 %2769, %v2696
        %v2771 = vpop.permute.xlu0 %2770
        %v2773 = vadd.f32 %v2760, %v2771
        %v2774 = vadd.f32 %v2761, %v2771
        %v2775 = vadd.f32 %v2762, %v2771
        %v2776 = vadd.f32 %v2763, %v2771
        %v2777 = vadd.f32 %v2764, %v2771
        %v2778 = vadd.f32 %v2765, %v2771
        %v2779 = vadd.f32 %v2766, %v2771
        %v2780 = vadd.f32 %v2767, %v2771
        %v2781 = vadd.f32 %v1270, %v2773
        %v2782 = vadd.f32 %v1271, %v2774
        %v2783 = vadd.f32 %v1272, %v2775
        %v2784 = vadd.f32 %v1273, %v2776
        %v2785 = vadd.f32 %v1274, %v2777
        %v2786 = vadd.f32 %v1275, %v2778
        %v2787 = vadd.f32 %v1276, %v2779
        %v2788 = vadd.f32 %v1277, %v2780
        %v2789 = vmul.f32 %v2781, 0.5
        %v2790 = vmul.f32 %v2782, 0.5
        %v2791 = vmul.f32 %v2783, 0.5
        %v2792 = vmul.f32 %v2784, 0.5
        %v2793 = vmul.f32 %v2785, 0.5
        %v2794 = vmul.f32 %v2786, 0.5
        %v2795 = vmul.f32 %v2787, 0.5
        %v2796 = vmul.f32 %v2788, 0.5
        %v2797 = vmul.f32 %v2781, 0.70710677
        %v2798 = vmul.f32 %v2782, 0.70710677
        %v2799 = vmul.f32 %v2783, 0.70710677
        %v2800 = vmul.f32 %v2784, 0.70710677
        %v2801 = vmul.f32 %v2785, 0.70710677
        %v2802 = vmul.f32 %v2786, 0.70710677
        %v2803 = vmul.f32 %v2787, 0.70710677
        %v2804 = vmul.f32 %v2788, 0.70710677
        %v2805 = verf.f32.pop %v2797
        %v2806 = verf.f32.pop %v2798
        %v2807 = verf.f32.pop %v2799
        %v2808 = verf.f32.pop %v2800
        %v2809 = verf.f32.pop %v2801
        %v2810 = verf.f32.pop %v2802
        %v2811 = verf.f32.pop %v2803
        %v2812 = verf.f32.pop %v2804
        %v2813 = vadd.f32 %v2805, 1.0
        %v2814 = vadd.f32 %v2806, 1.0
        %v2815 = vadd.f32 %v2807, 1.0
        %v2816 = vadd.f32 %v2808, 1.0
        %v2817 = vadd.f32 %v2809, 1.0
        %v2818 = vadd.f32 %v2810, 1.0
        %v2819 = vadd.f32 %v2811, 1.0
        %v2820 = vadd.f32 %v2812, 1.0
        %v2821 = vmul.f32 %v2789, %v2813
        %v2822 = vmul.f32 %v2790, %v2814
        %v2823 = vmul.f32 %v2791, %v2815
        %v2824 = vmul.f32 %v2792, %v2816
        %v2825 = vmul.f32 %v2793, %v2817
        %v2826 = vmul.f32 %v2794, %v2818
        %v2827 = vmul.f32 %v2795, %v2819
        %v2828 = vmul.f32 %v2796, %v2820
        %v2829 = vld [vmem:[%s12] sm:$0xf]
        %2838 = vrot.lane.b32.xlu0 %v2821, 33
        %v2839 = vpop.permute.xlu0 %2838
        %2840 = vrot.lane.b32.xlu0 %v2822, 33
        %v2841 = vpop.permute.xlu0 %2840
        %2842 = vrot.lane.b32.xlu0 %v2823, 33
        %v2843 = vpop.permute.xlu0 %2842
        %2844 = vrot.lane.b32.xlu0 %v2824, 33
        %v2845 = vpop.permute.xlu0 %2844
        %2846 = vrot.lane.b32.xlu0 %v2825, 33
        %v2847 = vpop.permute.xlu0 %2846
        %2848 = vrot.lane.b32.xlu0 %v2826, 33
        %v2849 = vpop.permute.xlu0 %2848
        %2850 = vrot.lane.b32.xlu0 %v2827, 33
        %v2851 = vpop.permute.xlu0 %2850
        %2852 = vrot.lane.b32.xlu0 %v2828, 33
        %v2853 = vpop.permute.xlu0 %2852
        %v2854 = vsel %vm1303, %v2839, %v2841
        %v2855 = vsel %vm1303, %v2841, %v2843
        %v2856 = vsel %vm1303, %v2843, %v2845
        %v2857 = vsel %vm1303, %v2845, %v2847
        %v2858 = vsel %vm1303, %v2847, %v2849
        %v2859 = vsel %vm1303, %v2849, %v2851
        %v2860 = vsel %vm1303, %v2851, %v2853
        %v2869 = vsel %vm1303, 0.0, %v2839
        %v2870 = vmul.f32 %v2869, %v1324
        %v2871 = vmul.f32 %v2854, %v1328
        %v2872 = vmul.f32 %v2855, %v1332
        %v2873 = vmul.f32 %v2856, %v1336
        %v2874 = vmul.f32 %v2857, %v1340
        %v2875 = vmul.f32 %v2858, %v1344
        %v2876 = vmul.f32 %v2859, %v1348
        %v2877 = vmul.f32 %v2860, %v1352
        %2878 = vrot.lane.b32.xlu0 %v2821, 32
        %v2879 = vpop.permute.xlu0 %2878
        %2880 = vrot.lane.b32.xlu0 %v2822, 32
        %v2881 = vpop.permute.xlu0 %2880
        %2882 = vrot.lane.b32.xlu0 %v2823, 32
        %v2883 = vpop.permute.xlu0 %2882
        %2884 = vrot.lane.b32.xlu0 %v2824, 32
        %v2885 = vpop.permute.xlu0 %2884
        %2886 = vrot.lane.b32.xlu0 %v2825, 32
        %v2887 = vpop.permute.xlu0 %2886
        %2888 = vrot.lane.b32.xlu0 %v2826, 32
        %v2889 = vpop.permute.xlu0 %2888
        %2890 = vrot.lane.b32.xlu0 %v2827, 32
        %v2891 = vpop.permute.xlu0 %2890
        %2892 = vrot.lane.b32.xlu0 %v2828, 32
        %v2893 = vpop.permute.xlu0 %2892
        %v2894 = vsel %vm1385, %v2879, %v2881
        %v2895 = vsel %vm1385, %v2881, %v2883
        %v2896 = vsel %vm1385, %v2883, %v2885
        %v2897 = vsel %vm1385, %v2885, %v2887
        %v2898 = vsel %vm1385, %v2887, %v2889
        %v2899 = vsel %vm1385, %v2889, %v2891
        %v2900 = vsel %vm1385, %v2891, %v2893
        %v2909 = vsel %vm1385, 0.0, %v2879
        %2910 = vrot.lane.b32.xlu0 %v2821, 31
        %v2911 = vpop.permute.xlu0 %2910
        %2912 = vrot.lane.b32.xlu0 %v2822, 31
        %v2913 = vpop.permute.xlu0 %2912
        %2914 = vrot.lane.b32.xlu0 %v2823, 31
        %v2915 = vpop.permute.xlu0 %2914
        %2916 = vrot.lane.b32.xlu0 %v2824, 31
        %v2917 = vpop.permute.xlu0 %2916
        %2918 = vrot.lane.b32.xlu0 %v2825, 31
        %v2919 = vpop.permute.xlu0 %2918
        %2920 = vrot.lane.b32.xlu0 %v2826, 31
        %v2921 = vpop.permute.xlu0 %2920
        %2922 = vrot.lane.b32.xlu0 %v2827, 31
        %v2923 = vpop.permute.xlu0 %2922
        %2924 = vrot.lane.b32.xlu0 %v2828, 31
        %v2925 = vpop.permute.xlu0 %2924
        %v2926 = vsel %vm1418, %v2911, %v2913
        %v2927 = vsel %vm1418, %v2913, %v2915
        %v2928 = vsel %vm1418, %v2915, %v2917
        %v2929 = vsel %vm1418, %v2917, %v2919
        %v2930 = vsel %vm1418, %v2919, %v2921
        %v2931 = vsel %vm1418, %v2921, %v2923
        %v2932 = vsel %vm1418, %v2923, %v2925
        %v2941 = vsel %vm1418, 0.0, %v2911
        %v2942 = vmul.f32 %v2941, %v1439
        %v2943 = vmul.f32 %v2926, %v1443
        %v2944 = vmul.f32 %v2927, %v1447
        %v2945 = vmul.f32 %v2928, %v1451
        %v2946 = vmul.f32 %v2929, %v1455
        %v2947 = vmul.f32 %v2930, %v1459
        %v2948 = vmul.f32 %v2931, %v1463
        %v2949 = vmul.f32 %v2932, %v1467
        %2950 = vrot.lane.b32.xlu0 %v2821, 1
        %v2951 = vpop.permute.xlu0 %2950
        %2952 = vrot.lane.b32.xlu0 %v2822, 1
        %v2953 = vpop.permute.xlu0 %2952
        %2954 = vrot.lane.b32.xlu0 %v2823, 1
        %v2955 = vpop.permute.xlu0 %2954
        %2956 = vrot.lane.b32.xlu0 %v2824, 1
        %v2957 = vpop.permute.xlu0 %2956
        %2958 = vrot.lane.b32.xlu0 %v2825, 1
        %v2959 = vpop.permute.xlu0 %2958
        %2960 = vrot.lane.b32.xlu0 %v2826, 1
        %v2961 = vpop.permute.xlu0 %2960
        %2962 = vrot.lane.b32.xlu0 %v2827, 1
        %v2963 = vpop.permute.xlu0 %2962
        %2964 = vrot.lane.b32.xlu0 %v2828, 1
        %v2965 = vpop.permute.xlu0 %2964
        %v2966 = vsel %vm1500, %v2951, %v2953
        %v2967 = vsel %vm1500, %v2953, %v2955
        %v2968 = vsel %vm1500, %v2955, %v2957
        %v2969 = vsel %vm1500, %v2957, %v2959
        %v2970 = vsel %vm1500, %v2959, %v2961
        %v2971 = vsel %vm1500, %v2961, %v2963
        %v2972 = vsel %vm1500, %v2963, %v2965
        %v2981 = vsel %vm1500, 0.0, %v2951
        %v2982 = vmul.f32 %v2981, %v1324
        %v2983 = vmul.f32 %v2966, %v1328
        %v2984 = vmul.f32 %v2967, %v1332
        %v2985 = vmul.f32 %v2968, %v1336
        %v2986 = vmul.f32 %v2969, %v1340
        %v2987 = vmul.f32 %v2970, %v1344
        %v2988 = vmul.f32 %v2971, %v1348
        %v2989 = vmul.f32 %v2972, %v1352
        %2990 = vrot.lane.b32.xlu0 %v2821, 127
        %v2991 = vpop.permute.xlu0 %2990
        %2992 = vrot.lane.b32.xlu0 %v2822, 127
        %v2993 = vpop.permute.xlu0 %2992
        %2994 = vrot.lane.b32.xlu0 %v2823, 127
        %v2995 = vpop.permute.xlu0 %2994
        %2996 = vrot.lane.b32.xlu0 %v2824, 127
        %v2997 = vpop.permute.xlu0 %2996
        %2998 = vrot.lane.b32.xlu0 %v2825, 127
        %v2999 = vpop.permute.xlu0 %2998
        %3000 = vrot.lane.b32.xlu0 %v2826, 127
        %v3001 = vpop.permute.xlu0 %3000
        %3002 = vrot.lane.b32.xlu0 %v2827, 127
        %v3003 = vpop.permute.xlu0 %3002
        %3004 = vrot.lane.b32.xlu0 %v2828, 127
        %v3005 = vpop.permute.xlu0 %3004
        %v3006 = vsel %vm1541, %v2991, %v2993
        %v3007 = vsel %vm1541, %v2993, %v2995
        %v3008 = vsel %vm1541, %v2995, %v2997
        %v3009 = vsel %vm1541, %v2997, %v2999
        %v3010 = vsel %vm1541, %v2999, %v3001
        %v3011 = vsel %vm1541, %v3001, %v3003
        %v3012 = vsel %vm1541, %v3003, %v3005
        %v3021 = vsel %vm1541, %v3005, 0.0
        %v3022 = vmul.f32 %v3006, %v1439
        %v3023 = vmul.f32 %v3007, %v1443
        %v3024 = vmul.f32 %v3008, %v1447
        %v3025 = vmul.f32 %v3009, %v1451
        %v3026 = vmul.f32 %v3010, %v1455
        %v3027 = vmul.f32 %v3011, %v1459
        %v3028 = vmul.f32 %v3012, %v1463
        %v3029 = vmul.f32 %v3021, %v1467
        %3030 = vrot.lane.b32.xlu0 %v2821, 97
        %v3031 = vpop.permute.xlu0 %3030
        %3032 = vrot.lane.b32.xlu0 %v2822, 97
        %v3033 = vpop.permute.xlu0 %3032
        %3034 = vrot.lane.b32.xlu0 %v2823, 97
        %v3035 = vpop.permute.xlu0 %3034
        %3036 = vrot.lane.b32.xlu0 %v2824, 97
        %v3037 = vpop.permute.xlu0 %3036
        %3038 = vrot.lane.b32.xlu0 %v2825, 97
        %v3039 = vpop.permute.xlu0 %3038
        %3040 = vrot.lane.b32.xlu0 %v2826, 97
        %v3041 = vpop.permute.xlu0 %3040
        %3042 = vrot.lane.b32.xlu0 %v2827, 97
        %v3043 = vpop.permute.xlu0 %3042
        %3044 = vrot.lane.b32.xlu0 %v2828, 97
        %v3045 = vpop.permute.xlu0 %3044
        %v3046 = vsel %vm1582, %v3031, %v3033
        %v3047 = vsel %vm1582, %v3033, %v3035
        %v3048 = vsel %vm1582, %v3035, %v3037
        %v3049 = vsel %vm1582, %v3037, %v3039
        %v3050 = vsel %vm1582, %v3039, %v3041
        %v3051 = vsel %vm1582, %v3041, %v3043
        %v3052 = vsel %vm1582, %v3043, %v3045
        %v3061 = vsel %vm1582, %v3045, 0.0
        %v3062 = vmul.f32 %v3046, %v1324
        %v3063 = vmul.f32 %v3047, %v1328
        %v3064 = vmul.f32 %v3048, %v1332
        %v3065 = vmul.f32 %v3049, %v1336
        %v3066 = vmul.f32 %v3050, %v1340
        %v3067 = vmul.f32 %v3051, %v1344
        %v3068 = vmul.f32 %v3052, %v1348
        %v3069 = vmul.f32 %v3061, %v1352
        %3070 = vrot.lane.b32.xlu0 %v2821, 96
        %v3071 = vpop.permute.xlu0 %3070
        %3072 = vrot.lane.b32.xlu0 %v2822, 96
        %v3073 = vpop.permute.xlu0 %3072
        %3074 = vrot.lane.b32.xlu0 %v2823, 96
        %v3075 = vpop.permute.xlu0 %3074
        %3076 = vrot.lane.b32.xlu0 %v2824, 96
        %v3077 = vpop.permute.xlu0 %3076
        %3078 = vrot.lane.b32.xlu0 %v2825, 96
        %v3079 = vpop.permute.xlu0 %3078
        %3080 = vrot.lane.b32.xlu0 %v2826, 96
        %v3081 = vpop.permute.xlu0 %3080
        %3082 = vrot.lane.b32.xlu0 %v2827, 96
        %v3083 = vpop.permute.xlu0 %3082
        %3084 = vrot.lane.b32.xlu0 %v2828, 96
        %v3085 = vpop.permute.xlu0 %3084
        %v3086 = vsel %vm1623, %v3071, %v3073
        %v3087 = vsel %vm1623, %v3073, %v3075
        %v3088 = vsel %vm1623, %v3075, %v3077
        %v3089 = vsel %vm1623, %v3077, %v3079
        %v3090 = vsel %vm1623, %v3079, %v3081
        %v3091 = vsel %vm1623, %v3081, %v3083
        %v3092 = vsel %vm1623, %v3083, %v3085
        %v3101 = vsel %vm1623, %v3085, 0.0
        %3102 = vrot.lane.b32.xlu0 %v2821, 95
        %v3103 = vpop.permute.xlu0 %3102
        %3104 = vrot.lane.b32.xlu0 %v2822, 95
        %v3105 = vpop.permute.xlu0 %3104
        %3106 = vrot.lane.b32.xlu0 %v2823, 95
        %v3107 = vpop.permute.xlu0 %3106
        %3108 = vrot.lane.b32.xlu0 %v2824, 95
        %v3109 = vpop.permute.xlu0 %3108
        %3110 = vrot.lane.b32.xlu0 %v2825, 95
        %v3111 = vpop.permute.xlu0 %3110
        %3112 = vrot.lane.b32.xlu0 %v2826, 95
        %v3113 = vpop.permute.xlu0 %3112
        %3114 = vrot.lane.b32.xlu0 %v2827, 95
        %v3115 = vpop.permute.xlu0 %3114
        %3116 = vrot.lane.b32.xlu0 %v2828, 95
        %v3117 = vpop.permute.xlu0 %3116
        %v3118 = vsel %vm1656, %v3103, %v3105
        %v3119 = vsel %vm1656, %v3105, %v3107
        %v3120 = vsel %vm1656, %v3107, %v3109
        %v3121 = vsel %vm1656, %v3109, %v3111
        %v3122 = vsel %vm1656, %v3111, %v3113
        %v3123 = vsel %vm1656, %v3113, %v3115
        %v3124 = vsel %vm1656, %v3115, %v3117
        %v3133 = vsel %vm1656, %v3117, 0.0
        %v3134 = vmul.f32 %v3118, %v1439
        %v3135 = vmul.f32 %v3119, %v1443
        %v3136 = vmul.f32 %v3120, %v1447
        %v3137 = vmul.f32 %v3121, %v1451
        %v3138 = vmul.f32 %v3122, %v1455
        %v3139 = vmul.f32 %v3123, %v1459
        %v3140 = vmul.f32 %v3124, %v1463
        %v3141 = vmul.f32 %v3133, %v1467
        %v3143 = vsel %vm1681, %v2829, 0
        %3145 = vmatprep.subr.mxu0 %v2871
        %3146 = vmatpush1.msra.mxu0 %v2870
        %3147 = vmatprep.subr.mxu0 %v2894
        %3148 = vmatpush1.msra.mxu0 %v2909
        %3149 = vmatprep.subr.mxu0 %v2943
        %3150 = vmatpush1.msra.mxu0 %v2942
        %3151 = vmatprep.subr.mxu0 %v2983
        %3152 = vmatpush1.msra.mxu0 %v2982
        %3153 = vmatprep.subr.mxu0 %v2822
        %3154 = vmatpush1.msra.mxu0 %v2821
        %3155 = vmatprep.subr.mxu0 %v3023
        %3156 = vmatpush1.msra.mxu0 %v3022
        %3157 = vmatprep.subr.mxu0 %v3063
        %3158 = vmatpush1.msra.mxu0 %v3062
        %3159 = vmatprep.subr.mxu0 %v3087
        %3160 = vmatpush1.msra.mxu0 %v3086
        %3161 = vmatprep.subr.mxu0 %v3135
        %3162 = vmatpush1.msra.mxu0 %v3134
        %3163 = vmatprep.subr.mxu0 0.0
        %3164 = vmatpush1.msra.mxu0 0.0
        %3165 = vmatprep.subr.mxu0 0.0
        %3166 = vmatpush1.msra.mxu0 0.0
        %3167 = vmatprep.subr.mxu0 0.0
        %3168 = vmatpush1.msra.mxu0 0.0
        %3169 = vmatprep.subr.mxu0 0.0
        %3170 = vmatpush1.msra.mxu0 0.0
        %3171 = vmatprep.subr.mxu0 0.0
        %3172 = vmatpush1.msra.mxu0 0.0
        %3173 = vmatprep.subr.mxu0 0.0
        %3174 = vmatpush1.msra.mxu0 0.0
        %3175 = vmatprep.subr.mxu0 0.0
        %3176 = vmatpush1.msra.mxu0 0.0
        %3177 = vmatprep.subr.mxu0 0.0
        %3178 = vmatpush1.msra.mxu0 0.0
        %3179 = vmatprep.subr.mxu0 0.0
        %3180 = vmatpush1.msra.mxu0 0.0
        %3181 = vmatprep.subr.mxu0 0.0
        %3182 = vmatpush1.msra.mxu0 0.0
        %3183 = vmatprep.subr.mxu0 0.0
        %3184 = vmatpush1.msra.mxu0 0.0
        %3185 = vmatprep.subr.mxu0 0.0
        %3186 = vmatpush1.msra.mxu0 0.0
        %3187 = vmatprep.subr.mxu0 0.0
        %3188 = vmatpush1.msra.mxu0 0.0
        %3189 = vmatprep.subr.mxu0 0.0
        %3190 = vmatpush1.msra.mxu0 0.0
        %3191 = vmatprep.subr.mxu0 0.0
        %3192 = vmatpush1.msra.mxu0 0.0
        %3193 = vmatprep.subr.mxu0 0.0
        %3194 = vmatpush1.msra.mxu0 0.0
        %3195 = vmatprep.subr.mxu0 0.0
        %3196 = vmatpush1.msra.mxu0 0.0
        %3197 = vmatprep.subr.mxu0 0.0
        %3198 = vmatpush1.msra.mxu0 0.0
        %3199 = vmatprep.subr.mxu0 0.0
        %3200 = vmatpush1.msra.mxu0 0.0
        %3201 = vmatprep.subr.mxu0 0.0
        %3202 = vmatpush1.msra.mxu0 0.0
        %3203 = vmatprep.subr.mxu0 0.0
        %3204 = vmatpush1.msra.mxu0 0.0
        %3205 = vmatprep.subr.mxu0 0.0
        %3206 = vmatpush1.msra.mxu0 0.0
        %3207 = vmatprep.subr.mxu0 0.0
        %3208 = vmatpush1.msra.mxu0 0.0
        %3209 = vmatprep.mubr.f32.mxu0 0.0
        %3210 = vmatmul.mubr.f32.gmra.mrb[0].mxu0 %v3143
        %v3211 = vpop.f32.mrb[0].mxu0
        %v3212 = vadd.f32 0.0, %v3211
        %v3213 = vpop.f32.mrb[0].mxu0
        %v3214 = vadd.f32 0.0, %v3213
        %3215 = vdwg.mxu0
        %3216 = vmatprep.subr.mxu0 %v2873
        %3217 = vmatpush1.msra.mxu0 %v2872
        %3218 = vmatprep.subr.mxu0 %v2896
        %3219 = vmatpush1.msra.mxu0 %v2895
        %3220 = vmatprep.subr.mxu0 %v2945
        %3221 = vmatpush1.msra.mxu0 %v2944
        %3222 = vmatprep.subr.mxu0 %v2985
        %3223 = vmatpush1.msra.mxu0 %v2984
        %3224 = vmatprep.subr.mxu0 %v2824
        %3225 = vmatpush1.msra.mxu0 %v2823
        %3226 = vmatprep.subr.mxu0 %v3025
        %3227 = vmatpush1.msra.mxu0 %v3024
        %3228 = vmatprep.subr.mxu0 %v3065
        %3229 = vmatpush1.msra.mxu0 %v3064
        %3230 = vmatprep.subr.mxu0 %v3089
        %3231 = vmatpush1.msra.mxu0 %v3088
        %3232 = vmatprep.subr.mxu0 %v3137
        %3233 = vmatpush1.msra.mxu0 %v3136
        %3234 = vmatprep.subr.mxu0 0.0
        %3235 = vmatpush1.msra.mxu0 0.0
        %3236 = vmatprep.subr.mxu0 0.0
        %3237 = vmatpush1.msra.mxu0 0.0
        %3238 = vmatprep.subr.mxu0 0.0
        %3239 = vmatpush1.msra.mxu0 0.0
        %3240 = vmatprep.subr.mxu0 0.0
        %3241 = vmatpush1.msra.mxu0 0.0
        %3242 = vmatprep.subr.mxu0 0.0
        %3243 = vmatpush1.msra.mxu0 0.0
        %3244 = vmatprep.subr.mxu0 0.0
        %3245 = vmatpush1.msra.mxu0 0.0
        %3246 = vmatprep.subr.mxu0 0.0
        %3247 = vmatpush1.msra.mxu0 0.0
        %3248 = vmatprep.subr.mxu0 0.0
        %3249 = vmatpush1.msra.mxu0 0.0
        %3250 = vmatprep.subr.mxu0 0.0
        %3251 = vmatpush1.msra.mxu0 0.0
        %3252 = vmatprep.subr.mxu0 0.0
        %3253 = vmatpush1.msra.mxu0 0.0
        %3254 = vmatprep.subr.mxu0 0.0
        %3255 = vmatpush1.msra.mxu0 0.0
        %3256 = vmatprep.subr.mxu0 0.0
        %3257 = vmatpush1.msra.mxu0 0.0
        %3258 = vmatprep.subr.mxu0 0.0
        %3259 = vmatpush1.msra.mxu0 0.0
        %3260 = vmatprep.subr.mxu0 0.0
        %3261 = vmatpush1.msra.mxu0 0.0
        %3262 = vmatprep.subr.mxu0 0.0
        %3263 = vmatpush1.msra.mxu0 0.0
        %3264 = vmatprep.subr.mxu0 0.0
        %3265 = vmatpush1.msra.mxu0 0.0
        %3266 = vmatprep.subr.mxu0 0.0
        %3267 = vmatpush1.msra.mxu0 0.0
        %3268 = vmatprep.subr.mxu0 0.0
        %3269 = vmatpush1.msra.mxu0 0.0
        %3270 = vmatprep.subr.mxu0 0.0
        %3271 = vmatpush1.msra.mxu0 0.0
        %3272 = vmatprep.subr.mxu0 0.0
        %3273 = vmatpush1.msra.mxu0 0.0
        %3274 = vmatprep.subr.mxu0 0.0
        %3275 = vmatpush1.msra.mxu0 0.0
        %3276 = vmatprep.subr.mxu0 0.0
        %3277 = vmatpush1.msra.mxu0 0.0
        %3278 = vmatprep.subr.mxu0 0.0
        %3279 = vmatpush1.msra.mxu0 0.0
        %3280 = vmatprep.mubr.f32.mxu0 0.0
        %3281 = vmatmul.mubr.f32.gmra.mrb[0].mxu0 %v3143
        %v3282 = vpop.f32.mrb[0].mxu0
        %v3283 = vadd.f32 0.0, %v3282
        %v3284 = vpop.f32.mrb[0].mxu0
        %v3285 = vadd.f32 0.0, %v3284
        %3286 = vdwg.mxu0
        %3287 = vmatprep.subr.mxu0 %v2875
        %3288 = vmatpush1.msra.mxu0 %v2874
        %3289 = vmatprep.subr.mxu0 %v2898
        %3290 = vmatpush1.msra.mxu0 %v2897
        %3291 = vmatprep.subr.mxu0 %v2947
        %3292 = vmatpush1.msra.mxu0 %v2946
        %3293 = vmatprep.subr.mxu0 %v2987
        %3294 = vmatpush1.msra.mxu0 %v2986
        %3295 = vmatprep.subr.mxu0 %v2826
        %3296 = vmatpush1.msra.mxu0 %v2825
        %3297 = vmatprep.subr.mxu0 %v3027
        %3298 = vmatpush1.msra.mxu0 %v3026
        %3299 = vmatprep.subr.mxu0 %v3067
        %3300 = vmatpush1.msra.mxu0 %v3066
        %3301 = vmatprep.subr.mxu0 %v3091
        %3302 = vmatpush1.msra.mxu0 %v3090
        %3303 = vmatprep.subr.mxu0 %v3139
        %3304 = vmatpush1.msra.mxu0 %v3138
        %3305 = vmatprep.subr.mxu0 0.0
        %3306 = vmatpush1.msra.mxu0 0.0
        %3307 = vmatprep.subr.mxu0 0.0
        %3308 = vmatpush1.msra.mxu0 0.0
        %3309 = vmatprep.subr.mxu0 0.0
        %3310 = vmatpush1.msra.mxu0 0.0
        %3311 = vmatprep.subr.mxu0 0.0
        %3312 = vmatpush1.msra.mxu0 0.0
        %3313 = vmatprep.subr.mxu0 0.0
        %3314 = vmatpush1.msra.mxu0 0.0
        %3315 = vmatprep.subr.mxu0 0.0
        %3316 = vmatpush1.msra.mxu0 0.0
        %3317 = vmatprep.subr.mxu0 0.0
        %3318 = vmatpush1.msra.mxu0 0.0
        %3319 = vmatprep.subr.mxu0 0.0
        %3320 = vmatpush1.msra.mxu0 0.0
        %3321 = vmatprep.subr.mxu0 0.0
        %3322 = vmatpush1.msra.mxu0 0.0
        %3323 = vmatprep.subr.mxu0 0.0
        %3324 = vmatpush1.msra.mxu0 0.0
        %3325 = vmatprep.subr.mxu0 0.0
        %3326 = vmatpush1.msra.mxu0 0.0
        %3327 = vmatprep.subr.mxu0 0.0
        %3328 = vmatpush1.msra.mxu0 0.0
        %3329 = vmatprep.subr.mxu0 0.0
        %3330 = vmatpush1.msra.mxu0 0.0
        %3331 = vmatprep.subr.mxu0 0.0
        %3332 = vmatpush1.msra.mxu0 0.0
        %3333 = vmatprep.subr.mxu0 0.0
        %3334 = vmatpush1.msra.mxu0 0.0
        %3335 = vmatprep.subr.mxu0 0.0
        %3336 = vmatpush1.msra.mxu0 0.0
        %3337 = vmatprep.subr.mxu0 0.0
        %3338 = vmatpush1.msra.mxu0 0.0
        %3339 = vmatprep.subr.mxu0 0.0
        %3340 = vmatpush1.msra.mxu0 0.0
        %3341 = vmatprep.subr.mxu0 0.0
        %3342 = vmatpush1.msra.mxu0 0.0
        %3343 = vmatprep.subr.mxu0 0.0
        %3344 = vmatpush1.msra.mxu0 0.0
        %3345 = vmatprep.subr.mxu0 0.0
        %3346 = vmatpush1.msra.mxu0 0.0
        %3347 = vmatprep.subr.mxu0 0.0
        %3348 = vmatpush1.msra.mxu0 0.0
        %3349 = vmatprep.subr.mxu0 0.0
        %3350 = vmatpush1.msra.mxu0 0.0
        %3351 = vmatprep.mubr.f32.mxu0 0.0
        %3352 = vmatmul.mubr.f32.gmra.mrb[0].mxu0 %v3143
        %v3353 = vpop.f32.mrb[0].mxu0
        %v3354 = vadd.f32 0.0, %v3353
        %v3355 = vpop.f32.mrb[0].mxu0
        %v3356 = vadd.f32 0.0, %v3355
        %3357 = vdwg.mxu0
        %3358 = vmatprep.subr.mxu0 %v2877
        %3359 = vmatpush1.msra.mxu0 %v2876
        %3360 = vmatprep.subr.mxu0 %v2900
        %3361 = vmatpush1.msra.mxu0 %v2899
        %3362 = vmatprep.subr.mxu0 %v2949
        %3363 = vmatpush1.msra.mxu0 %v2948
        %3364 = vmatprep.subr.mxu0 %v2989
        %3365 = vmatpush1.msra.mxu0 %v2988
        %3366 = vmatprep.subr.mxu0 %v2828
        %3367 = vmatpush1.msra.mxu0 %v2827
        %3368 = vmatprep.subr.mxu0 %v3029
        %3369 = vmatpush1.msra.mxu0 %v3028
        %3370 = vmatprep.subr.mxu0 %v3069
        %3371 = vmatpush1.msra.mxu0 %v3068
        %3372 = vmatprep.subr.mxu0 %v3101
        %3373 = vmatpush1.msra.mxu0 %v3092
        %3374 = vmatprep.subr.mxu0 %v3141
        %3375 = vmatpush1.msra.mxu0 %v3140
        %3376 = vmatprep.subr.mxu0 0.0
        %3377 = vmatpush1.msra.mxu0 0.0
        %3378 = vmatprep.subr.mxu0 0.0
        %3379 = vmatpush1.msra.mxu0 0.0
        %3380 = vmatprep.subr.mxu0 0.0
        %3381 = vmatpush1.msra.mxu0 0.0
        %3382 = vmatprep.subr.mxu0 0.0
        %3383 = vmatpush1.msra.mxu0 0.0
        %3384 = vmatprep.subr.mxu0 0.0
        %3385 = vmatpush1.msra.mxu0 0.0
        %3386 = vmatprep.subr.mxu0 0.0
        %3387 = vmatpush1.msra.mxu0 0.0
        %3388 = vmatprep.subr.mxu0 0.0
        %3389 = vmatpush1.msra.mxu0 0.0
        %3390 = vmatprep.subr.mxu0 0.0
        %3391 = vmatpush1.msra.mxu0 0.0
        %3392 = vmatprep.subr.mxu0 0.0
        %3393 = vmatpush1.msra.mxu0 0.0
        %3394 = vmatprep.subr.mxu0 0.0
        %3395 = vmatpush1.msra.mxu0 0.0
        %3396 = vmatprep.subr.mxu0 0.0
        %3397 = vmatpush1.msra.mxu0 0.0
        %3398 = vmatprep.subr.mxu0 0.0
        %3399 = vmatpush1.msra.mxu0 0.0
        %3400 = vmatprep.subr.mxu0 0.0
        %3401 = vmatpush1.msra.mxu0 0.0
        %3402 = vmatprep.subr.mxu0 0.0
        %3403 = vmatpush1.msra.mxu0 0.0
        %3404 = vmatprep.subr.mxu0 0.0
        %3405 = vmatpush1.msra.mxu0 0.0
        %3406 = vmatprep.subr.mxu0 0.0
        %3407 = vmatpush1.msra.mxu0 0.0
        %3408 = vmatprep.subr.mxu0 0.0
        %3409 = vmatpush1.msra.mxu0 0.0
        %3410 = vmatprep.subr.mxu0 0.0
        %3411 = vmatpush1.msra.mxu0 0.0
        %3412 = vmatprep.subr.mxu0 0.0
        %3413 = vmatpush1.msra.mxu0 0.0
        %3414 = vmatprep.subr.mxu0 0.0
        %3415 = vmatpush1.msra.mxu0 0.0
        %3416 = vmatprep.subr.mxu0 0.0
        %3417 = vmatpush1.msra.mxu0 0.0
        %3418 = vmatprep.subr.mxu0 0.0
        %3419 = vmatpush1.msra.mxu0 0.0
        %3420 = vmatprep.subr.mxu0 0.0
        %3421 = vmatpush1.msra.mxu0 0.0
        %3422 = vmatprep.mubr.f32.mxu0 0.0
        %3423 = vmatmul.mubr.f32.gmra.mrb[0].mxu0 %v3143
        %v3424 = vpop.f32.mrb[0].mxu0
        %v3425 = vadd.f32 0.0, %v3424
        %v3426 = vpop.f32.mrb[0].mxu0
        %v3427 = vadd.f32 0.0, %v3426
        %3428 = vdwg.mxu0
        %v3429 = vld [vmem:[%s13] sm:$0xf]
        %v3430 = vld [vmem:[%s14] sm:$0xf]
        %v3431 = vsel %vm1269, %v3212, 0.0
        %v3432 = vsel %vm1269, %v3214, 0.0
        %v3433 = vadd.f32 %v3431, %v3432
        %v3434 = vsel %vm1269, %v3283, 0.0
        %v3435 = vadd.f32 %v3433, %v3434
        %v3436 = vsel %vm1269, %v3285, 0.0
        %v3437 = vadd.f32 %v3435, %v3436
        %v3438 = vsel %vm1269, %v3354, 0.0
        %v3439 = vadd.f32 %v3437, %v3438
        %v3440 = vsel %vm1269, %v3356, 0.0
        %v3441 = vadd.f32 %v3439, %v3440
        %v3442 = vsel %vm1269, %v3425, 0.0
        %v3443 = vadd.f32 %v3441, %v3442
        %v3444 = vsel %vm1269, %v3427, 0.0
        %v3445 = vadd.f32 %v3443, %v3444
        %3446 = vadd.xlane.f32.xlu0 %v3445
        %v3447 = vpop.xlane.xlu0 %3446
        %v3448 = vsel %vm1269, %v3447, 0.0
        %v3449 = vrot.slane %v3448, 4
        %v3450 = vadd.f32 %v3448, %v3449
        %v3451 = vrot.slane %v3450, 2
        %v3452 = vadd.f32 %v3450, %v3451
        %v3453 = vrot.slane %v3452, 1
        %v3454 = vadd.f32 %v3452, %v3453
        %v3455 = vmul.f32 %v3454, 0.00024414063
        %v3456 = vsub.f32 %v3212, %v3455
        %v3457 = vsub.f32 %v3214, %v3455
        %v3458 = vsub.f32 %v3283, %v3455
        %v3459 = vsub.f32 %v3285, %v3455
        %v3460 = vsub.f32 %v3354, %v3455
        %v3461 = vsub.f32 %v3356, %v3455
        %v3462 = vsub.f32 %v3425, %v3455
        %v3463 = vsub.f32 %v3427, %v3455
        %v3464 = vmul.f32 %v3456, %v3456
        %v3465 = vmul.f32 %v3457, %v3457
        %v3466 = vmul.f32 %v3458, %v3458
        %v3467 = vmul.f32 %v3459, %v3459
        %v3468 = vmul.f32 %v3460, %v3460
        %v3469 = vmul.f32 %v3461, %v3461
        %v3470 = vmul.f32 %v3462, %v3462
        %v3471 = vmul.f32 %v3463, %v3463
        %v3472 = vsel %vm1269, %v3464, 0.0
        %v3473 = vsel %vm1269, %v3465, 0.0
        %v3474 = vadd.f32 %v3472, %v3473
        %v3475 = vsel %vm1269, %v3466, 0.0
        %v3476 = vadd.f32 %v3474, %v3475
        %v3477 = vsel %vm1269, %v3467, 0.0
        %v3478 = vadd.f32 %v3476, %v3477
        %v3479 = vsel %vm1269, %v3468, 0.0
        %v3480 = vadd.f32 %v3478, %v3479
        %v3481 = vsel %vm1269, %v3469, 0.0
        %v3482 = vadd.f32 %v3480, %v3481
        %v3483 = vsel %vm1269, %v3470, 0.0
        %v3484 = vadd.f32 %v3482, %v3483
        %v3485 = vsel %vm1269, %v3471, 0.0
        %v3486 = vadd.f32 %v3484, %v3485
        %3487 = vadd.xlane.f32.xlu0 %v3486
        %v3488 = vpop.xlane.xlu0 %3487
        %v3489 = vsel %vm1269, %v3488, 0.0
        %v3490 = vrot.slane %v3489, 4
        %v3491 = vadd.f32 %v3489, %v3490
        %v3492 = vrot.slane %v3491, 2
        %v3493 = vadd.f32 %v3491, %v3492
        %v3494 = vrot.slane %v3493, 1
        %v3495 = vadd.f32 %v3493, %v3494
        %v3496 = vmul.f32 %v3495, 0.00024414063
        %v3497 = vadd.f32 %v3496, 1e-05
        %v3498 = vrsqrt.pop %v3497
        %v3499 = vmul.f32 %v3456, %v3498
        %v3500 = vmul.f32 %v3457, %v3498
        %v3501 = vmul.f32 %v3458, %v3498
        %v3502 = vmul.f32 %v3459, %v3498
        %v3503 = vmul.f32 %v3460, %v3498
        %v3504 = vmul.f32 %v3461, %v3498
        %v3505 = vmul.f32 %v3462, %v3498
        %v3506 = vmul.f32 %v3463, %v3498
        %3508 = vset.pattern.permute.xlu0 0
        %3509 = vperm.xlu0 %3508, %v3429
        %v3510 = vpop.permute.xlu0 %3509
        %v3512 = vmul.f32 %v3499, %v3510
        %v3513 = vmul.f32 %v3500, %v3510
        %v3514 = vmul.f32 %v3501, %v3510
        %v3515 = vmul.f32 %v3502, %v3510
        %v3516 = vmul.f32 %v3503, %v3510
        %v3517 = vmul.f32 %v3504, %v3510
        %v3518 = vmul.f32 %v3505, %v3510
        %v3519 = vmul.f32 %v3506, %v3510
        %3521 = vset.pattern.permute.xlu0 0
        %3522 = vperm.xlu0 %3521, %v3430
        %v3523 = vpop.permute.xlu0 %3522
        %v3525 = vadd.f32 %v3512, %v3523
        %v3526 = vadd.f32 %v3513, %v3523
        %v3527 = vadd.f32 %v3514, %v3523
        %v3528 = vadd.f32 %v3515, %v3523
        %v3529 = vadd.f32 %v3516, %v3523
        %v3530 = vadd.f32 %v3517, %v3523
        %v3531 = vadd.f32 %v3518, %v3523
        %v3532 = vadd.f32 %v3519, %v3523
        %v3533 = vmul.f32 %v3525, 0.5
        %v3534 = vmul.f32 %v3526, 0.5
        %v3535 = vmul.f32 %v3527, 0.5
        %v3536 = vmul.f32 %v3528, 0.5
        %v3537 = vmul.f32 %v3529, 0.5
        %v3538 = vmul.f32 %v3530, 0.5
        %v3539 = vmul.f32 %v3531, 0.5
        %v3540 = vmul.f32 %v3532, 0.5
        %v3541 = vmul.f32 %v3525, 0.70710677
        %v3542 = vmul.f32 %v3526, 0.70710677
        %v3543 = vmul.f32 %v3527, 0.70710677
        %v3544 = vmul.f32 %v3528, 0.70710677
        %v3545 = vmul.f32 %v3529, 0.70710677
        %v3546 = vmul.f32 %v3530, 0.70710677
        %v3547 = vmul.f32 %v3531, 0.70710677
        %v3548 = vmul.f32 %v3532, 0.70710677
        %v3549 = verf.f32.pop %v3541
        %v3550 = verf.f32.pop %v3542
        %v3551 = verf.f32.pop %v3543
        %v3552 = verf.f32.pop %v3544
        %v3553 = verf.f32.pop %v3545
        %v3554 = verf.f32.pop %v3546
        %v3555 = verf.f32.pop %v3547
        %v3556 = verf.f32.pop %v3548
        %v3557 = vadd.f32 %v3549, 1.0
        %v3558 = vadd.f32 %v3550, 1.0
        %v3559 = vadd.f32 %v3551, 1.0
        %v3560 = vadd.f32 %v3552, 1.0
        %v3561 = vadd.f32 %v3553, 1.0
        %v3562 = vadd.f32 %v3554, 1.0
        %v3563 = vadd.f32 %v3555, 1.0
        %v3564 = vadd.f32 %v3556, 1.0
        %v3565 = vmul.f32 %v3533, %v3557
        %v3566 = vmul.f32 %v3534, %v3558
        %v3567 = vmul.f32 %v3535, %v3559
        %v3568 = vmul.f32 %v3536, %v3560
        %v3569 = vmul.f32 %v3537, %v3561
        %v3570 = vmul.f32 %v3538, %v3562
        %v3571 = vmul.f32 %v3539, %v3563
        %v3572 = vmul.f32 %v3540, %v3564
        %v3573 = vld [vmem:[%s15] sm:$0xff]
        %3582 = vrot.lane.b32.xlu0 %v3565, 33
        %v3583 = vpop.permute.xlu0 %3582
        %3584 = vrot.lane.b32.xlu0 %v3566, 33
        %v3585 = vpop.permute.xlu0 %3584
        %3586 = vrot.lane.b32.xlu0 %v3567, 33
        %v3587 = vpop.permute.xlu0 %3586
        %3588 = vrot.lane.b32.xlu0 %v3568, 33
        %v3589 = vpop.permute.xlu0 %3588
        %3590 = vrot.lane.b32.xlu0 %v3569, 33
        %v3591 = vpop.permute.xlu0 %3590
        %3592 = vrot.lane.b32.xlu0 %v3570, 33
        %v3593 = vpop.permute.xlu0 %3592
        %3594 = vrot.lane.b32.xlu0 %v3571, 33
        %v3595 = vpop.permute.xlu0 %3594
        %3596 = vrot.lane.b32.xlu0 %v3572, 33
        %v3597 = vpop.permute.xlu0 %3596
        %v3598 = vsel %vm1303, %v3583, %v3585
        %v3599 = vsel %vm1303, %v3585, %v3587
        %v3600 = vsel %vm1303, %v3587, %v3589
        %v3601 = vsel %vm1303, %v3589, %v3591
        %v3602 = vsel %vm1303, %v3591, %v3593
        %v3603 = vsel %vm1303, %v3593, %v3595
        %v3604 = vsel %vm1303, %v3595, %v3597
        %v3613 = vsel %vm1303, 0.0, %v3583
        %v3614 = vmul.f32 %v3613, %v1324
        %v3615 = vmul.f32 %v3598, %v1328
        %v3616 = vmul.f32 %v3599, %v1332
        %v3617 = vmul.f32 %v3600, %v1336
        %v3618 = vmul.f32 %v3601, %v1340
        %v3619 = vmul.f32 %v3602, %v1344
        %v3620 = vmul.f32 %v3603, %v1348
        %v3621 = vmul.f32 %v3604, %v1352
        %3622 = vrot.lane.b32.xlu0 %v3565, 32
        %v3623 = vpop.permute.xlu0 %3622
        %3624 = vrot.lane.b32.xlu0 %v3566, 32
        %v3625 = vpop.permute.xlu0 %3624
        %3626 = vrot.lane.b32.xlu0 %v3567, 32
        %v3627 = vpop.permute.xlu0 %3626
        %3628 = vrot.lane.b32.xlu0 %v3568, 32
        %v3629 = vpop.permute.xlu0 %3628
        %3630 = vrot.lane.b32.xlu0 %v3569, 32
        %v3631 = vpop.permute.xlu0 %3630
        %3632 = vrot.lane.b32.xlu0 %v3570, 32
        %v3633 = vpop.permute.xlu0 %3632
        %3634 = vrot.lane.b32.xlu0 %v3571, 32
        %v3635 = vpop.permute.xlu0 %3634
        %3636 = vrot.lane.b32.xlu0 %v3572, 32
        %v3637 = vpop.permute.xlu0 %3636
        %v3638 = vsel %vm1385, %v3623, %v3625
        %v3639 = vsel %vm1385, %v3625, %v3627
        %v3640 = vsel %vm1385, %v3627, %v3629
        %v3641 = vsel %vm1385, %v3629, %v3631
        %v3642 = vsel %vm1385, %v3631, %v3633
        %v3643 = vsel %vm1385, %v3633, %v3635
        %v3644 = vsel %vm1385, %v3635, %v3637
        %v3646 = vsel %vm1385, 0.0, %v3623
        %3647 = vrot.lane.b32.xlu0 %v3565, 31
        %v3648 = vpop.permute.xlu0 %3647
        %3649 = vrot.lane.b32.xlu0 %v3566, 31
        %v3650 = vpop.permute.xlu0 %3649
        %3651 = vrot.lane.b32.xlu0 %v3567, 31
        %v3652 = vpop.permute.xlu0 %3651
        %3653 = vrot.lane.b32.xlu0 %v3568, 31
        %v3654 = vpop.permute.xlu0 %3653
        %3655 = vrot.lane.b32.xlu0 %v3569, 31
        %v3656 = vpop.permute.xlu0 %3655
        %3657 = vrot.lane.b32.xlu0 %v3570, 31
        %v3658 = vpop.permute.xlu0 %3657
        %3659 = vrot.lane.b32.xlu0 %v3571, 31
        %v3660 = vpop.permute.xlu0 %3659
        %3661 = vrot.lane.b32.xlu0 %v3572, 31
        %v3662 = vpop.permute.xlu0 %3661
        %v3663 = vsel %vm1418, %v3648, %v3650
        %v3664 = vsel %vm1418, %v3650, %v3652
        %v3665 = vsel %vm1418, %v3652, %v3654
        %v3666 = vsel %vm1418, %v3654, %v3656
        %v3667 = vsel %vm1418, %v3656, %v3658
        %v3668 = vsel %vm1418, %v3658, %v3660
        %v3669 = vsel %vm1418, %v3660, %v3662
        %v3678 = vsel %vm1418, 0.0, %v3648
        %v3679 = vmul.f32 %v3678, %v1439
        %v3680 = vmul.f32 %v3663, %v1443
        %v3681 = vmul.f32 %v3664, %v1447
        %v3682 = vmul.f32 %v3665, %v1451
        %v3683 = vmul.f32 %v3666, %v1455
        %v3684 = vmul.f32 %v3667, %v1459
        %v3685 = vmul.f32 %v3668, %v1463
        %v3686 = vmul.f32 %v3669, %v1467
        %3687 = vrot.lane.b32.xlu0 %v3565, 1
        %v3688 = vpop.permute.xlu0 %3687
        %3689 = vrot.lane.b32.xlu0 %v3566, 1
        %v3690 = vpop.permute.xlu0 %3689
        %3691 = vrot.lane.b32.xlu0 %v3567, 1
        %v3692 = vpop.permute.xlu0 %3691
        %3693 = vrot.lane.b32.xlu0 %v3568, 1
        %v3694 = vpop.permute.xlu0 %3693
        %3695 = vrot.lane.b32.xlu0 %v3569, 1
        %v3696 = vpop.permute.xlu0 %3695
        %3697 = vrot.lane.b32.xlu0 %v3570, 1
        %v3698 = vpop.permute.xlu0 %3697
        %3699 = vrot.lane.b32.xlu0 %v3571, 1
        %v3700 = vpop.permute.xlu0 %3699
        %3701 = vrot.lane.b32.xlu0 %v3572, 1
        %v3702 = vpop.permute.xlu0 %3701
        %v3703 = vsel %vm1500, %v3688, %v3690
        %v3704 = vsel %vm1500, %v3690, %v3692
        %v3705 = vsel %vm1500, %v3692, %v3694
        %v3706 = vsel %vm1500, %v3694, %v3696
        %v3707 = vsel %vm1500, %v3696, %v3698
        %v3708 = vsel %vm1500, %v3698, %v3700
        %v3709 = vsel %vm1500, %v3700, %v3702
        %v3718 = vsel %vm1500, 0.0, %v3688
        %v3719 = vmul.f32 %v3718, %v1324
        %v3720 = vmul.f32 %v3703, %v1328
        %v3721 = vmul.f32 %v3704, %v1332
        %v3722 = vmul.f32 %v3705, %v1336
        %v3723 = vmul.f32 %v3706, %v1340
        %v3724 = vmul.f32 %v3707, %v1344
        %v3725 = vmul.f32 %v3708, %v1348
        %v3726 = vmul.f32 %v3709, %v1352
        %3727 = vrot.lane.b32.xlu0 %v3565, 127
        %v3728 = vpop.permute.xlu0 %3727
        %3729 = vrot.lane.b32.xlu0 %v3566, 127
        %v3730 = vpop.permute.xlu0 %3729
        %3731 = vrot.lane.b32.xlu0 %v3567, 127
        %v3732 = vpop.permute.xlu0 %3731
        %3733 = vrot.lane.b32.xlu0 %v3568, 127
        %v3734 = vpop.permute.xlu0 %3733
        %3735 = vrot.lane.b32.xlu0 %v3569, 127
        %v3736 = vpop.permute.xlu0 %3735
        %3737 = vrot.lane.b32.xlu0 %v3570, 127
        %v3738 = vpop.permute.xlu0 %3737
        %3739 = vrot.lane.b32.xlu0 %v3571, 127
        %v3740 = vpop.permute.xlu0 %3739
        %3741 = vrot.lane.b32.xlu0 %v3572, 127
        %v3742 = vpop.permute.xlu0 %3741
        %v3743 = vsel %vm1541, %v3728, %v3730
        %v3744 = vsel %vm1541, %v3730, %v3732
        %v3745 = vsel %vm1541, %v3732, %v3734
        %v3746 = vsel %vm1541, %v3734, %v3736
        %v3747 = vsel %vm1541, %v3736, %v3738
        %v3748 = vsel %vm1541, %v3738, %v3740
        %v3749 = vsel %vm1541, %v3740, %v3742
        %v3758 = vsel %vm1541, %v3742, 0.0
        %v3759 = vmul.f32 %v3743, %v1439
        %v3760 = vmul.f32 %v3744, %v1443
        %v3761 = vmul.f32 %v3745, %v1447
        %v3762 = vmul.f32 %v3746, %v1451
        %v3763 = vmul.f32 %v3747, %v1455
        %v3764 = vmul.f32 %v3748, %v1459
        %v3765 = vmul.f32 %v3749, %v1463
        %v3766 = vmul.f32 %v3758, %v1467
        %3767 = vrot.lane.b32.xlu0 %v3565, 97
        %v3768 = vpop.permute.xlu0 %3767
        %3769 = vrot.lane.b32.xlu0 %v3566, 97
        %v3770 = vpop.permute.xlu0 %3769
        %3771 = vrot.lane.b32.xlu0 %v3567, 97
        %v3772 = vpop.permute.xlu0 %3771
        %3773 = vrot.lane.b32.xlu0 %v3568, 97
        %v3774 = vpop.permute.xlu0 %3773
        %3775 = vrot.lane.b32.xlu0 %v3569, 97
        %v3776 = vpop.permute.xlu0 %3775
        %3777 = vrot.lane.b32.xlu0 %v3570, 97
        %v3778 = vpop.permute.xlu0 %3777
        %3779 = vrot.lane.b32.xlu0 %v3571, 97
        %v3780 = vpop.permute.xlu0 %3779
        %3781 = vrot.lane.b32.xlu0 %v3572, 97
        %v3782 = vpop.permute.xlu0 %3781
        %v3783 = vsel %vm1582, %v3768, %v3770
        %v3784 = vsel %vm1582, %v3770, %v3772
        %v3785 = vsel %vm1582, %v3772, %v3774
        %v3786 = vsel %vm1582, %v3774, %v3776
        %v3787 = vsel %vm1582, %v3776, %v3778
        %v3788 = vsel %vm1582, %v3778, %v3780
        %v3789 = vsel %vm1582, %v3780, %v3782
        %v3798 = vsel %vm1582, %v3782, 0.0
        %v3799 = vmul.f32 %v3783, %v1324
        %v3800 = vmul.f32 %v3784, %v1328
        %v3801 = vmul.f32 %v3785, %v1332
        %v3802 = vmul.f32 %v3786, %v1336
        %v3803 = vmul.f32 %v3787, %v1340
        %v3804 = vmul.f32 %v3788, %v1344
        %v3805 = vmul.f32 %v3789, %v1348
        %v3806 = vmul.f32 %v3798, %v1352
        %3807 = vrot.lane.b32.xlu0 %v3565, 96
        %v3808 = vpop.permute.xlu0 %3807
        %3809 = vrot.lane.b32.xlu0 %v3566, 96
        %v3810 = vpop.permute.xlu0 %3809
        %3811 = vrot.lane.b32.xlu0 %v3567, 96
        %v3812 = vpop.permute.xlu0 %3811
        %3813 = vrot.lane.b32.xlu0 %v3568, 96
        %v3814 = vpop.permute.xlu0 %3813
        %3815 = vrot.lane.b32.xlu0 %v3569, 96
        %v3816 = vpop.permute.xlu0 %3815
        %3817 = vrot.lane.b32.xlu0 %v3570, 96
        %v3818 = vpop.permute.xlu0 %3817
        %3819 = vrot.lane.b32.xlu0 %v3571, 96
        %v3820 = vpop.permute.xlu0 %3819
        %3821 = vrot.lane.b32.xlu0 %v3572, 96
        %v3822 = vpop.permute.xlu0 %3821
        %v3823 = vsel %vm1623, %v3808, %v3810
        %v3824 = vsel %vm1623, %v3810, %v3812
        %v3825 = vsel %vm1623, %v3812, %v3814
        %v3826 = vsel %vm1623, %v3814, %v3816
        %v3827 = vsel %vm1623, %v3816, %v3818
        %v3828 = vsel %vm1623, %v3818, %v3820
        %v3829 = vsel %vm1623, %v3820, %v3822
        %v3831 = vsel %vm1623, %v3822, 0.0
        %3832 = vrot.lane.b32.xlu0 %v3565, 95
        %v3833 = vpop.permute.xlu0 %3832
        %3834 = vrot.lane.b32.xlu0 %v3566, 95
        %v3835 = vpop.permute.xlu0 %3834
        %3836 = vrot.lane.b32.xlu0 %v3567, 95
        %v3837 = vpop.permute.xlu0 %3836
        %3838 = vrot.lane.b32.xlu0 %v3568, 95
        %v3839 = vpop.permute.xlu0 %3838
        %3840 = vrot.lane.b32.xlu0 %v3569, 95
        %v3841 = vpop.permute.xlu0 %3840
        %3842 = vrot.lane.b32.xlu0 %v3570, 95
        %v3843 = vpop.permute.xlu0 %3842
        %3844 = vrot.lane.b32.xlu0 %v3571, 95
        %v3845 = vpop.permute.xlu0 %3844
        %3846 = vrot.lane.b32.xlu0 %v3572, 95
        %v3847 = vpop.permute.xlu0 %3846
        %v3848 = vsel %vm1656, %v3833, %v3835
        %v3849 = vsel %vm1656, %v3835, %v3837
        %v3850 = vsel %vm1656, %v3837, %v3839
        %v3851 = vsel %vm1656, %v3839, %v3841
        %v3852 = vsel %vm1656, %v3841, %v3843
        %v3853 = vsel %vm1656, %v3843, %v3845
        %v3854 = vsel %vm1656, %v3845, %v3847
        %v3863 = vsel %vm1656, %v3847, 0.0
        %v3864 = vmul.f32 %v3848, %v1439
        %v3865 = vmul.f32 %v3849, %v1443
        %v3866 = vmul.f32 %v3850, %v1447
        %v3867 = vmul.f32 %v3851, %v1451
        %v3868 = vmul.f32 %v3852, %v1455
        %v3869 = vmul.f32 %v3853, %v1459
        %v3870 = vmul.f32 %v3854, %v1463
        %v3871 = vmul.f32 %v3863, %v1467
        %v3873 = vrot.slane %v3646, 4
        %v3874 = vrot.slane %v3638, 4
        %v3875 = vrot.slane %v3639, 4
        %v3876 = vrot.slane %v3640, 4
        %v3877 = vrot.slane %v3641, 4
        %v3878 = vrot.slane %v3642, 4
        %v3879 = vrot.slane %v3643, 4
        %v3880 = vrot.slane %v3644, 4
        %v3897 = vrot.slane %v3719, 4
        %v3898 = vrot.slane %v3720, 4
        %v3899 = vrot.slane %v3721, 4
        %v3900 = vrot.slane %v3722, 4
        %v3901 = vrot.slane %v3723, 4
        %v3902 = vrot.slane %v3724, 4
        %v3903 = vrot.slane %v3725, 4
        %v3904 = vrot.slane %v3726, 4
        %v3921 = vrot.slane %v3759, 4
        %v3922 = vrot.slane %v3760, 4
        %v3923 = vrot.slane %v3761, 4
        %v3924 = vrot.slane %v3762, 4
        %v3925 = vrot.slane %v3763, 4
        %v3926 = vrot.slane %v3764, 4
        %v3927 = vrot.slane %v3765, 4
        %v3928 = vrot.slane %v3766, 4
        %v3938 = vrot.slane %v3823, 4
        %v3939 = vrot.slane %v3824, 4
        %v3940 = vrot.slane %v3825, 4
        %v3941 = vrot.slane %v3826, 4
        %v3942 = vrot.slane %v3827, 4
        %v3943 = vrot.slane %v3828, 4
        %v3944 = vrot.slane %v3829, 4
        %v3945 = vrot.slane %v3831, 4
        %v3954 = vsel %vm1269, %v3614, %v3873
        %v3955 = vsel %vm1269, %v3615, %v3874
        %v3956 = vsel %vm1269, %v3616, %v3875
        %v3957 = vsel %vm1269, %v3617, %v3876
        %v3958 = vsel %vm1269, %v3618, %v3877
        %v3959 = vsel %vm1269, %v3619, %v3878
        %v3960 = vsel %vm1269, %v3620, %v3879
        %v3961 = vsel %vm1269, %v3621, %v3880
        %v3962 = vsel %vm1269, %v3679, %v3897
        %v3963 = vsel %vm1269, %v3680, %v3898
        %v3964 = vsel %vm1269, %v3681, %v3899
        %v3965 = vsel %vm1269, %v3682, %v3900
        %v3966 = vsel %vm1269, %v3683, %v3901
        %v3967 = vsel %vm1269, %v3684, %v3902
        %v3968 = vsel %vm1269, %v3685, %v3903
        %v3969 = vsel %vm1269, %v3686, %v3904
        %v3970 = vsel %vm1269, %v3565, %v3921
        %v3971 = vsel %vm1269, %v3566, %v3922
        %v3972 = vsel %vm1269, %v3567, %v3923
        %v3973 = vsel %vm1269, %v3568, %v3924
        %v3974 = vsel %vm1269, %v3569, %v3925
        %v3975 = vsel %vm1269, %v3570, %v3926
        %v3976 = vsel %vm1269, %v3571, %v3927
        %v3977 = vsel %vm1269, %v3572, %v3928
        %v3978 = vsel %vm1269, %v3799, %v3938
        %v3979 = vsel %vm1269, %v3800, %v3939
        %v3980 = vsel %vm1269, %v3801, %v3940
        %v3981 = vsel %vm1269, %v3802, %v3941
        %v3982 = vsel %vm1269, %v3803, %v3942
        %v3983 = vsel %vm1269, %v3804, %v3943
        %v3984 = vsel %vm1269, %v3805, %v3944
        %v3985 = vsel %vm1269, %v3806, %v3945
        %vm3986 = vcmask 293888
        %v3988 = vsel %vm3986, %v3573, 0
        %v3991 = vsel %vm1269, %v3864, 0
        %v3994 = vsel %vm1269, %v3865, 0
        %v3997 = vsel %vm1269, %v3866, 0
        %v4000 = vsel %vm1269, %v3867, 0
        %v4003 = vsel %vm1269, %v3868, 0
        %v4006 = vsel %vm1269, %v3869, 0
        %v4009 = vsel %vm1269, %v3870, 0
        %v4012 = vsel %vm1269, %v3871, 0
        %4014 = vmatprep.subr.mxu0 %v3955
        %4015 = vmatpush1.msra.mxu0 %v3954
        %4016 = vmatprep.subr.mxu0 %v3963
        %4017 = vmatpush1.msra.mxu0 %v3962
        %4018 = vmatprep.subr.mxu0 %v3971
        %4019 = vmatpush1.msra.mxu0 %v3970
        %4020 = vmatprep.subr.mxu0 %v3979
        %4021 = vmatpush1.msra.mxu0 %v3978
        %4022 = vmatprep.subr.mxu0 %v3994
        %4023 = vmatpush1.msra.mxu0 %v3991
        %4024 = vmatprep.subr.mxu0 0.0
        %4025 = vmatpush1.msra.mxu0 0.0
        %4026 = vmatprep.subr.mxu0 0.0
        %4027 = vmatpush1.msra.mxu0 0.0
        %4028 = vmatprep.subr.mxu0 0.0
        %4029 = vmatpush1.msra.mxu0 0.0
        %4030 = vmatprep.subr.mxu0 0.0
        %4031 = vmatpush1.msra.mxu0 0.0
        %4032 = vmatprep.subr.mxu0 0.0
        %4033 = vmatpush1.msra.mxu0 0.0
        %4034 = vmatprep.subr.mxu0 0.0
        %4035 = vmatpush1.msra.mxu0 0.0
        %4036 = vmatprep.subr.mxu0 0.0
        %4037 = vmatpush1.msra.mxu0 0.0
        %4038 = vmatprep.subr.mxu0 0.0
        %4039 = vmatpush1.msra.mxu0 0.0
        %4040 = vmatprep.subr.mxu0 0.0
        %4041 = vmatpush1.msra.mxu0 0.0
        %4042 = vmatprep.subr.mxu0 0.0
        %4043 = vmatpush1.msra.mxu0 0.0
        %4044 = vmatprep.subr.mxu0 0.0
        %4045 = vmatpush1.msra.mxu0 0.0
        %4046 = vmatprep.subr.mxu0 0.0
        %4047 = vmatpush1.msra.mxu0 0.0
        %4048 = vmatprep.subr.mxu0 0.0
        %4049 = vmatpush1.msra.mxu0 0.0
        %4050 = vmatprep.subr.mxu0 0.0
        %4051 = vmatpush1.msra.mxu0 0.0
        %4052 = vmatprep.subr.mxu0 0.0
        %4053 = vmatpush1.msra.mxu0 0.0
        %4054 = vmatprep.subr.mxu0 0.0
        %4055 = vmatpush1.msra.mxu0 0.0
        %4056 = vmatprep.subr.mxu0 0.0
        %4057 = vmatpush1.msra.mxu0 0.0
        %4058 = vmatprep.subr.mxu0 0.0
        %4059 = vmatpush1.msra.mxu0 0.0
        %4060 = vmatprep.subr.mxu0 0.0
        %4061 = vmatpush1.msra.mxu0 0.0
        %4062 = vmatprep.subr.mxu0 0.0
        %4063 = vmatpush1.msra.mxu0 0.0
        %4064 = vmatprep.subr.mxu0 0.0
        %4065 = vmatpush1.msra.mxu0 0.0
        %4066 = vmatprep.subr.mxu0 0.0
        %4067 = vmatpush1.msra.mxu0 0.0
        %4068 = vmatprep.subr.mxu0 0.0
        %4069 = vmatpush1.msra.mxu0 0.0
        %4070 = vmatprep.subr.mxu0 0.0
        %4071 = vmatpush1.msra.mxu0 0.0
        %4072 = vmatprep.subr.mxu0 0.0
        %4073 = vmatpush1.msra.mxu0 0.0
        %4074 = vmatprep.subr.mxu0 0.0
        %4075 = vmatpush1.msra.mxu0 0.0
        %4076 = vmatprep.subr.mxu0 0.0
        %4077 = vmatpush1.msra.mxu0 0.0
        %4078 = vmatprep.mubr.f32.mxu0 0.0
        %4079 = vmatmul.mubr.f32.gmra.mrb[0].mxu0 %v3988
        %v4080 = vpop.f32.mrb[0].mxu0
        %v4081 = vadd.f32 0.0, %v4080
        %v4082 = vpop.f32.mrb[0].mxu0
        %v4083 = vadd.f32 0.0, %v4082
        %4084 = vdwg.mxu0
        %4085 = vmatprep.subr.mxu0 %v3957
        %4086 = vmatpush1.msra.mxu0 %v3956
        %4087 = vmatprep.subr.mxu0 %v3965
        %4088 = vmatpush1.msra.mxu0 %v3964
        %4089 = vmatprep.subr.mxu0 %v3973
        %4090 = vmatpush1.msra.mxu0 %v3972
        %4091 = vmatprep.subr.mxu0 %v3981
        %4092 = vmatpush1.msra.mxu0 %v3980
        %4093 = vmatprep.subr.mxu0 %v4000
        %4094 = vmatpush1.msra.mxu0 %v3997
        %4095 = vmatprep.subr.mxu0 0.0
        %4096 = vmatpush1.msra.mxu0 0.0
        %4097 = vmatprep.subr.mxu0 0.0
        %4098 = vmatpush1.msra.mxu0 0.0
        %4099 = vmatprep.subr.mxu0 0.0
        %4100 = vmatpush1.msra.mxu0 0.0
        %4101 = vmatprep.subr.mxu0 0.0
        %4102 = vmatpush1.msra.mxu0 0.0
        %4103 = vmatprep.subr.mxu0 0.0
        %4104 = vmatpush1.msra.mxu0 0.0
        %4105 = vmatprep.subr.mxu0 0.0
        %4106 = vmatpush1.msra.mxu0 0.0
        %4107 = vmatprep.subr.mxu0 0.0
        %4108 = vmatpush1.msra.mxu0 0.0
        %4109 = vmatprep.subr.mxu0 0.0
        %4110 = vmatpush1.msra.mxu0 0.0
        %4111 = vmatprep.subr.mxu0 0.0
        %4112 = vmatpush1.msra.mxu0 0.0
        %4113 = vmatprep.subr.mxu0 0.0
        %4114 = vmatpush1.msra.mxu0 0.0
        %4115 = vmatprep.subr.mxu0 0.0
        %4116 = vmatpush1.msra.mxu0 0.0
        %4117 = vmatprep.subr.mxu0 0.0
        %4118 = vmatpush1.msra.mxu0 0.0
        %4119 = vmatprep.subr.mxu0 0.0
        %4120 = vmatpush1.msra.mxu0 0.0
        %4121 = vmatprep.subr.mxu0 0.0
        %4122 = vmatpush1.msra.mxu0 0.0
        %4123 = vmatprep.subr.mxu0 0.0
        %4124 = vmatpush1.msra.mxu0 0.0
        %4125 = vmatprep.subr.mxu0 0.0
        %4126 = vmatpush1.msra.mxu0 0.0
        %4127 = vmatprep.subr.mxu0 0.0
        %4128 = vmatpush1.msra.mxu0 0.0
        %4129 = vmatprep.subr.mxu0 0.0
        %4130 = vmatpush1.msra.mxu0 0.0
        %4131 = vmatprep.subr.mxu0 0.0
        %4132 = vmatpush1.msra.mxu0 0.0
        %4133 = vmatprep.subr.mxu0 0.0
        %4134 = vmatpush1.msra.mxu0 0.0
        %4135 = vmatprep.subr.mxu0 0.0
        %4136 = vmatpush1.msra.mxu0 0.0
        %4137 = vmatprep.subr.mxu0 0.0
        %4138 = vmatpush1.msra.mxu0 0.0
        %4139 = vmatprep.subr.mxu0 0.0
        %4140 = vmatpush1.msra.mxu0 0.0
        %4141 = vmatprep.subr.mxu0 0.0
        %4142 = vmatpush1.msra.mxu0 0.0
        %4143 = vmatprep.subr.mxu0 0.0
        %4144 = vmatpush1.msra.mxu0 0.0
        %4145 = vmatprep.subr.mxu0 0.0
        %4146 = vmatpush1.msra.mxu0 0.0
        %4147 = vmatprep.subr.mxu0 0.0
        %4148 = vmatpush1.msra.mxu0 0.0
        %4149 = vmatprep.mubr.f32.mxu0 0.0
        %4150 = vmatmul.mubr.f32.gmra.mrb[0].mxu0 %v3988
        %v4151 = vpop.f32.mrb[0].mxu0
        %v4152 = vadd.f32 0.0, %v4151
        %v4153 = vpop.f32.mrb[0].mxu0
        %v4154 = vadd.f32 0.0, %v4153
        %4155 = vdwg.mxu0
        %4156 = vmatprep.subr.mxu0 %v3959
        %4157 = vmatpush1.msra.mxu0 %v3958
        %4158 = vmatprep.subr.mxu0 %v3967
        %4159 = vmatpush1.msra.mxu0 %v3966
        %4160 = vmatprep.subr.mxu0 %v3975
        %4161 = vmatpush1.msra.mxu0 %v3974
        %4162 = vmatprep.subr.mxu0 %v3983
        %4163 = vmatpush1.msra.mxu0 %v3982
        %4164 = vmatprep.subr.mxu0 %v4006
        %4165 = vmatpush1.msra.mxu0 %v4003
        %4166 = vmatprep.subr.mxu0 0.0
        %4167 = vmatpush1.msra.mxu0 0.0
        %4168 = vmatprep.subr.mxu0 0.0
        %4169 = vmatpush1.msra.mxu0 0.0
        %4170 = vmatprep.subr.mxu0 0.0
        %4171 = vmatpush1.msra.mxu0 0.0
        %4172 = vmatprep.subr.mxu0 0.0
        %4173 = vmatpush1.msra.mxu0 0.0
        %4174 = vmatprep.subr.mxu0 0.0
        %4175 = vmatpush1.msra.mxu0 0.0
        %4176 = vmatprep.subr.mxu0 0.0
        %4177 = vmatpush1.msra.mxu0 0.0
        %4178 = vmatprep.subr.mxu0 0.0
        %4179 = vmatpush1.msra.mxu0 0.0
        %4180 = vmatprep.subr.mxu0 0.0
        %4181 = vmatpush1.msra.mxu0 0.0
        %4182 = vmatprep.subr.mxu0 0.0
        %4183 = vmatpush1.msra.mxu0 0.0
        %4184 = vmatprep.subr.mxu0 0.0
        %4185 = vmatpush1.msra.mxu0 0.0
        %4186 = vmatprep.subr.mxu0 0.0
        %4187 = vmatpush1.msra.mxu0 0.0
        %4188 = vmatprep.subr.mxu0 0.0
        %4189 = vmatpush1.msra.mxu0 0.0
        %4190 = vmatprep.subr.mxu0 0.0
        %4191 = vmatpush1.msra.mxu0 0.0
        %4192 = vmatprep.subr.mxu0 0.0
        %4193 = vmatpush1.msra.mxu0 0.0
        %4194 = vmatprep.subr.mxu0 0.0
        %4195 = vmatpush1.msra.mxu0 0.0
        %4196 = vmatprep.subr.mxu0 0.0
        %4197 = vmatpush1.msra.mxu0 0.0
        %4198 = vmatprep.subr.mxu0 0.0
        %4199 = vmatpush1.msra.mxu0 0.0
        %4200 = vmatprep.subr.mxu0 0.0
        %4201 = vmatpush1.msra.mxu0 0.0
        %4202 = vmatprep.subr.mxu0 0.0
        %4203 = vmatpush1.msra.mxu0 0.0
        %4204 = vmatprep.subr.mxu0 0.0
        %4205 = vmatpush1.msra.mxu0 0.0
        %4206 = vmatprep.subr.mxu0 0.0
        %4207 = vmatpush1.msra.mxu0 0.0
        %4208 = vmatprep.subr.mxu0 0.0
        %4209 = vmatpush1.msra.mxu0 0.0
        %4210 = vmatprep.subr.mxu0 0.0
        %4211 = vmatpush1.msra.mxu0 0.0
        %4212 = vmatprep.subr.mxu0 0.0
        %4213 = vmatpush1.msra.mxu0 0.0
        %4214 = vmatprep.subr.mxu0 0.0
        %4215 = vmatpush1.msra.mxu0 0.0
        %4216 = vmatprep.subr.mxu0 0.0
        %4217 = vmatpush1.msra.mxu0 0.0
        %4218 = vmatprep.subr.mxu0 0.0
        %4219 = vmatpush1.msra.mxu0 0.0
        %4220 = vmatprep.mubr.f32.mxu0 0.0
        %4221 = vmatmul.mubr.f32.gmra.mrb[0].mxu0 %v3988
        %v4222 = vpop.f32.mrb[0].mxu0
        %v4223 = vadd.f32 0.0, %v4222
        %v4224 = vpop.f32.mrb[0].mxu0
        %v4225 = vadd.f32 0.0, %v4224
        %4226 = vdwg.mxu0
        %4227 = vmatprep.subr.mxu0 %v3961
        %4228 = vmatpush1.msra.mxu0 %v3960
        %4229 = vmatprep.subr.mxu0 %v3969
        %4230 = vmatpush1.msra.mxu0 %v3968
        %4231 = vmatprep.subr.mxu0 %v3977
        %4232 = vmatpush1.msra.mxu0 %v3976
        %4233 = vmatprep.subr.mxu0 %v3985
        %4234 = vmatpush1.msra.mxu0 %v3984
        %4235 = vmatprep.subr.mxu0 %v4012
        %4236 = vmatpush1.msra.mxu0 %v4009
        %4237 = vmatprep.subr.mxu0 0.0
        %4238 = vmatpush1.msra.mxu0 0.0
        %4239 = vmatprep.subr.mxu0 0.0
        %4240 = vmatpush1.msra.mxu0 0.0
        %4241 = vmatprep.subr.mxu0 0.0
        %4242 = vmatpush1.msra.mxu0 0.0
        %4243 = vmatprep.subr.mxu0 0.0
        %4244 = vmatpush1.msra.mxu0 0.0
        %4245 = vmatprep.subr.mxu0 0.0
        %4246 = vmatpush1.msra.mxu0 0.0
        %4247 = vmatprep.subr.mxu0 0.0
        %4248 = vmatpush1.msra.mxu0 0.0
        %4249 = vmatprep.subr.mxu0 0.0
        %4250 = vmatpush1.msra.mxu0 0.0
        %4251 = vmatprep.subr.mxu0 0.0
        %4252 = vmatpush1.msra.mxu0 0.0
        %4253 = vmatprep.subr.mxu0 0.0
        %4254 = vmatpush1.msra.mxu0 0.0
        %4255 = vmatprep.subr.mxu0 0.0
        %4256 = vmatpush1.msra.mxu0 0.0
        %4257 = vmatprep.subr.mxu0 0.0
        %4258 = vmatpush1.msra.mxu0 0.0
        %4259 = vmatprep.subr.mxu0 0.0
        %4260 = vmatpush1.msra.mxu0 0.0
        %4261 = vmatprep.subr.mxu0 0.0
        %4262 = vmatpush1.msra.mxu0 0.0
        %4263 = vmatprep.subr.mxu0 0.0
        %4264 = vmatpush1.msra.mxu0 0.0
        %4265 = vmatprep.subr.mxu0 0.0
        %4266 = vmatpush1.msra.mxu0 0.0
        %4267 = vmatprep.subr.mxu0 0.0
        %4268 = vmatpush1.msra.mxu0 0.0
        %4269 = vmatprep.subr.mxu0 0.0
        %4270 = vmatpush1.msra.mxu0 0.0
        %4271 = vmatprep.subr.mxu0 0.0
        %4272 = vmatpush1.msra.mxu0 0.0
        %4273 = vmatprep.subr.mxu0 0.0
        %4274 = vmatpush1.msra.mxu0 0.0
        %4275 = vmatprep.subr.mxu0 0.0
        %4276 = vmatpush1.msra.mxu0 0.0
        %4277 = vmatprep.subr.mxu0 0.0
        %4278 = vmatpush1.msra.mxu0 0.0
        %4279 = vmatprep.subr.mxu0 0.0
        %4280 = vmatpush1.msra.mxu0 0.0
        %4281 = vmatprep.subr.mxu0 0.0
        %4282 = vmatpush1.msra.mxu0 0.0
        %4283 = vmatprep.subr.mxu0 0.0
        %4284 = vmatpush1.msra.mxu0 0.0
        %4285 = vmatprep.subr.mxu0 0.0
        %4286 = vmatpush1.msra.mxu0 0.0
        %4287 = vmatprep.subr.mxu0 0.0
        %4288 = vmatpush1.msra.mxu0 0.0
        %4289 = vmatprep.subr.mxu0 0.0
        %4290 = vmatpush1.msra.mxu0 0.0
        %4291 = vmatprep.mubr.f32.mxu0 0.0
        %4292 = vmatmul.mubr.f32.gmra.mrb[0].mxu0 %v3988
        %v4293 = vpop.f32.mrb[0].mxu0
        %v4294 = vadd.f32 0.0, %v4293
        %v4295 = vpop.f32.mrb[0].mxu0
        %v4296 = vadd.f32 0.0, %v4295
        %4297 = vdwg.mxu0
        %v4298 = vld [vmem:[%s16] sm:$0xff]
        %v4299 = vld [vmem:[%s17] sm:$0xff]
        %v4300 = vadd.f32 %v4081, %v4083
        %v4301 = vadd.f32 %v4300, %v4152
        %v4302 = vadd.f32 %v4301, %v4154
        %v4303 = vadd.f32 %v4302, %v4223
        %v4304 = vadd.f32 %v4303, %v4225
        %v4305 = vadd.f32 %v4304, %v4294
        %v4306 = vadd.f32 %v4305, %v4296
        %4307 = vadd.xlane.f32.xlu0 %v4306
        %v4308 = vpop.xlane.xlu0 %4307
        %v4309 = vrot.slane %v4308, 4
        %v4310 = vadd.f32 %v4308, %v4309
        %v4311 = vrot.slane %v4310, 2
        %v4312 = vadd.f32 %v4310, %v4311
        %v4313 = vrot.slane %v4312, 1
        %v4314 = vadd.f32 %v4312, %v4313
        %v4315 = vmul.f32 %v4314, 0.00012207031
        %v4316 = vsub.f32 %v4081, %v4315
        %v4317 = vsub.f32 %v4083, %v4315
        %v4318 = vsub.f32 %v4152, %v4315
        %v4319 = vsub.f32 %v4154, %v4315
        %v4320 = vsub.f32 %v4223, %v4315
        %v4321 = vsub.f32 %v4225, %v4315
        %v4322 = vsub.f32 %v4294, %v4315
        %v4323 = vsub.f32 %v4296, %v4315
        %v4324 = vmul.f32 %v4316, %v4316
        %v4325 = vmul.f32 %v4317, %v4317
        %v4326 = vmul.f32 %v4318, %v4318
        %v4327 = vmul.f32 %v4319, %v4319
        %v4328 = vmul.f32 %v4320, %v4320
        %v4329 = vmul.f32 %v4321, %v4321
        %v4330 = vmul.f32 %v4322, %v4322
        %v4331 = vmul.f32 %v4323, %v4323
        %v4332 = vadd.f32 %v4324, %v4325
        %v4333 = vadd.f32 %v4332, %v4326
        %v4334 = vadd.f32 %v4333, %v4327
        %v4335 = vadd.f32 %v4334, %v4328
        %v4336 = vadd.f32 %v4335, %v4329
        %v4337 = vadd.f32 %v4336, %v4330
        %v4338 = vadd.f32 %v4337, %v4331
        %4339 = vadd.xlane.f32.xlu0 %v4338
        %v4340 = vpop.xlane.xlu0 %4339
        %v4341 = vrot.slane %v4340, 4
        %v4342 = vadd.f32 %v4340, %v4341
        %v4343 = vrot.slane %v4342, 2
        %v4344 = vadd.f32 %v4342, %v4343
        %v4345 = vrot.slane %v4344, 1
        %v4346 = vadd.f32 %v4344, %v4345
        %v4347 = vmul.f32 %v4346, 0.00012207031
        %v4348 = vadd.f32 %v4347, 1e-05
        %v4349 = vrsqrt.pop %v4348
        %v4350 = vmul.f32 %v4316, %v4349
        %v4351 = vmul.f32 %v4317, %v4349
        %v4352 = vmul.f32 %v4318, %v4349
        %v4353 = vmul.f32 %v4319, %v4349
        %v4354 = vmul.f32 %v4320, %v4349
        %v4355 = vmul.f32 %v4321, %v4349
        %v4356 = vmul.f32 %v4322, %v4349
        %v4357 = vmul.f32 %v4323, %v4349
        %4359 = vset.pattern.permute.xlu0 0
        %4360 = vperm.xlu0 %4359, %v4298
        %v4361 = vpop.permute.xlu0 %4360
        %v4363 = vmul.f32 %v4350, %v4361
        %v4364 = vmul.f32 %v4351, %v4361
        %v4365 = vmul.f32 %v4352, %v4361
        %v4366 = vmul.f32 %v4353, %v4361
        %v4367 = vmul.f32 %v4354, %v4361
        %v4368 = vmul.f32 %v4355, %v4361
        %v4369 = vmul.f32 %v4356, %v4361
        %v4370 = vmul.f32 %v4357, %v4361
        %4372 = vset.pattern.permute.xlu0 0
        %4373 = vperm.xlu0 %4372, %v4299
        %v4374 = vpop.permute.xlu0 %4373
        %v4376 = vadd.f32 %v4363, %v4374
        %v4377 = vadd.f32 %v4364, %v4374
        %v4378 = vadd.f32 %v4365, %v4374
        %v4379 = vadd.f32 %v4366, %v4374
        %v4380 = vadd.f32 %v4367, %v4374
        %v4381 = vadd.f32 %v4368, %v4374
        %v4382 = vadd.f32 %v4369, %v4374
        %v4383 = vadd.f32 %v4370, %v4374
        %v4384 = vld [vmem:[%s682] sm:$0xff]
        %v4385 = vld [vmem:[%s682 + $0x8] sm:$0xff]
        %v4386 = vld [vmem:[%s682 + $0x10] sm:$0xff]
        %v4387 = vld [vmem:[%s682 + $0x18] sm:$0xff]
        %v4388 = vsub.f32 0.0, %v4384
        %v4389 = vsub.f32 0.0, %v4385
        %v4390 = vsub.f32 0.0, %v4386
        %v4391 = vsub.f32 0.0, %v4387
        %v4392 = vmul.f32 %v4388, 1.442695
        %v4393 = vpow.pop %v4392
        %v4394 = vmul.f32 %v4389, 1.442695
        %v4395 = vpow.pop %v4394
        %v4396 = vmul.f32 %v4390, 1.442695
        %v4397 = vpow.pop %v4396
        %v4398 = vmul.f32 %v4391, 1.442695
        %v4399 = vpow.pop %v4398
        %v4400 = vadd.f32 %v4393, 1.0
        %v4401 = vadd.f32 %v4395, 1.0
        %v4402 = vadd.f32 %v4397, 1.0
        %v4403 = vadd.f32 %v4399, 1.0
        %v4404 = vrcp.pop %v4400
        %v4405 = vmul.f32 1.0, %v4404
        %v4406 = vrcp.pop %v4401
        %v4407 = vmul.f32 1.0, %v4406
        %v4408 = vrcp.pop %v4402
        %v4409 = vmul.f32 1.0, %v4408
        %v4410 = vrcp.pop %v4403
        %v4411 = vmul.f32 1.0, %v4410
        %v4412 = vmul.f32 %v4384, %v4405
        %v4413 = vmul.f32 %v4385, %v4407
        %v4414 = vmul.f32 %v4386, %v4409
        %v4415 = vmul.f32 %v4387, %v4411
        %v4416 = vld [vmem:[%s18] sm:$0xff]
        %v4417 = vld [vmem:[%s19] sm:$0xff]
        %v4419 = vsel %vm1385, %v4416, 0
        %4421 = vmatprep.subr.mxu0 0.0
        %4422 = vmatpush1.msra.mxu0 %v4412
        %4423 = vmatprep.subr.mxu0 0.0
        %4424 = vmatpush1.msra.mxu0 %v4413
        %4425 = vmatprep.subr.mxu0 0.0
        %4426 = vmatpush1.msra.mxu0 %v4414
        %4427 = vmatprep.subr.mxu0 0.0
        %4428 = vmatpush1.msra.mxu0 %v4415
        %4429 = vmatprep.subr.mxu0 0.0
        %4430 = vmatpush1.msra.mxu0 0.0
        %4431 = vmatprep.subr.mxu0 0.0
        %4432 = vmatpush1.msra.mxu0 0.0
        %4433 = vmatprep.subr.mxu0 0.0
        %4434 = vmatpush1.msra.mxu0 0.0
        %4435 = vmatprep.subr.mxu0 0.0
        %4436 = vmatpush1.msra.mxu0 0.0
        %4437 = vmatprep.subr.mxu0 0.0
        %4438 = vmatpush1.msra.mxu0 0.0
        %4439 = vmatprep.subr.mxu0 0.0
        %4440 = vmatpush1.msra.mxu0 0.0
        %4441 = vmatprep.subr.mxu0 0.0
        %4442 = vmatpush1.msra.mxu0 0.0
        %4443 = vmatprep.subr.mxu0 0.0
        %4444 = vmatpush1.msra.mxu0 0.0
        %4445 = vmatprep.subr.mxu0 0.0
        %4446 = vmatpush1.msra.mxu0 0.0
        %4447 = vmatprep.subr.mxu0 0.0
        %4448 = vmatpush1.msra.mxu0 0.0
        %4449 = vmatprep.subr.mxu0 0.0
        %4450 = vmatpush1.msra.mxu0 0.0
        %4451 = vmatprep.subr.mxu0 0.0
        %4452 = vmatpush1.msra.mxu0 0.0
        %4453 = vmatprep.subr.mxu0 0.0
        %4454 = vmatpush1.msra.mxu0 0.0
        %4455 = vmatprep.subr.mxu0 0.0
        %4456 = vmatpush1.msra.mxu0 0.0
        %4457 = vmatprep.subr.mxu0 0.0
        %4458 = vmatpush1.msra.mxu0 0.0
        %4459 = vmatprep.subr.mxu0 0.0
        %4460 = vmatpush1.msra.mxu0 0.0
        %4461 = vmatprep.subr.mxu0 0.0
        %4462 = vmatpush1.msra.mxu0 0.0
        %4463 = vmatprep.subr.mxu0 0.0
        %4464 = vmatpush1.msra.mxu0 0.0
        %4465 = vmatprep.subr.mxu0 0.0
        %4466 = vmatpush1.msra.mxu0 0.0
        %4467 = vmatprep.subr.mxu0 0.0
        %4468 = vmatpush1.msra.mxu0 0.0
        %4469 = vmatprep.subr.mxu0 0.0
        %4470 = vmatpush1.msra.mxu0 0.0
        %4471 = vmatprep.subr.mxu0 0.0
        %4472 = vmatpush1.msra.mxu0 0.0
        %4473 = vmatprep.subr.mxu0 0.0
        %4474 = vmatpush1.msra.mxu0 0.0
        %4475 = vmatprep.subr.mxu0 0.0
        %4476 = vmatpush1.msra.mxu0 0.0
        %4477 = vmatprep.subr.mxu0 0.0
        %4478 = vmatpush1.msra.mxu0 0.0
        %4479 = vmatprep.subr.mxu0 0.0
        %4480 = vmatpush1.msra.mxu0 0.0
        %4481 = vmatprep.subr.mxu0 0.0
        %4482 = vmatpush1.msra.mxu0 0.0
        %4483 = vmatprep.subr.mxu0 0.0
        %4484 = vmatpush1.msra.mxu0 0.0
        %4485 = vmatprep.mubr.f32.mxu0 0.0
        %4486 = vmatmul.mubr.f32.gmra.mrb[0].mxu0 %v4419
        %v4487 = vpop.f32.mrb[0].mxu0
        %v4488 = vadd.f32 %v4417, %v4487
        %v4489 = vpop.f32.mrb[0].mxu0
        %4490 = vdwg.mxu0
        %4492 = vset.pattern.permute.xlu0 0
        %4493 = vperm.xlu0 %4492, %v4488
        %v4494 = vpop.permute.xlu0 %4493
        %v4496 = vadd.f32 %v4376, %v4494
        %v4497 = vadd.f32 %v4377, %v4494
        %v4498 = vadd.f32 %v4378, %v4494
        %v4499 = vadd.f32 %v4379, %v4494
        %v4500 = vadd.f32 %v4380, %v4494
        %v4501 = vadd.f32 %v4381, %v4494
        %v4502 = vadd.f32 %v4382, %v4494
        %v4503 = vadd.f32 %v4383, %v4494
        %4504 = vst [vmem:[%s667] sm:$0xff] %v4496
        %4505 = vst [vmem:[%s667 + $0x8] sm:$0xff] %v4497
        %4506 = vst [vmem:[%s667 + $0x10] sm:$0xff] %v4498
        %4507 = vst [vmem:[%s667 + $0x18] sm:$0xff] %v4499
        %4508 = vst [vmem:[%s667 + $0x20] sm:$0xff] %v4500
        %4509 = vst [vmem:[%s667 + $0x28] sm:$0xff] %v4501
        %4510 = vst [vmem:[%s667 + $0x30] sm:$0xff] %v4502
        %4511 = vst [vmem:[%s667 + $0x38] sm:$0xff] %v4503
        %s4512 = sand.u32 %s478, 1
        %s4513 = scalar_lea.sflag [#allocation4], %s4512
        %s4514 = sand.u32 %s478, 1
        %s4515 = smul.addr %s4514, 64
        %s4516 = scalar_lea.vmem [#allocation5], %s4515
        // Predicated region
        $region105: #{tpu_custom_call.1} parent=99 // pred_check
          %p4517 = pneg %p488
        $region106: #{tpu_custom_call.1} parent=99 // pred_check_branch
          %4519 = sbr.rel (%p4517) target = $region108
        $region107: #{tpu_custom_call.1} parent=99 // pred_region
          %s4521 = ssub.s32 1024, 1024
          %4522 = vsyncadd %s4513, %s4521
          %s4523 = smul.addr %s35, 8
          %s4524 = smul.addr %s4523, 128
          %s4525 = scalar_lea.hbm %s20, %s4524
          %s4527 = sshll.u32 %s4516, 4
          %s4528 = int_to_ptr.vmem [resolvable:$true] %s4527
          %4530 = dma.vmem_to_hbm [thread:$0]  %s4528, 1024, %s4525, %s4513
        $region108: #{tpu_custom_call.1} parent=99 // pred_fallthru
          _
      $region100: #{tpu_custom_call.1} parent=5 // pred_fallthru
        _
      %p4531 = scmp.le.s32.totalorder 2, %s30
      // Predicated region
      $region109: #{tpu_custom_call.1} parent=5 // pred_check
        %p4532 = pneg %p4531
      $region110: #{tpu_custom_call.1} parent=5 // pred_check_branch
        %4534 = sbr.rel (%p4532) target = $region112
      $region111: #{tpu_custom_call.1} parent=5 // pred_region
        %s4535 = ssub.s32 %s30, 2
        // Predicated region
        $region113: #{tpu_custom_call.1} parent=111 // pred_check
          %p4536 = pneg %p494
        $region114: #{tpu_custom_call.1} parent=111 // pred_check_branch
          %4538 = sbr.rel (%p4536) target = $region116
        $region115: #{tpu_custom_call.1} parent=111 // pred_region
          %s4539 = sand.u32 %s479, 1
          %s4540 = scalar_lea.sflag [#allocation4], %s4539
          %s4541 = sand.u32 %s479, 1
          %s4542 = smul.addr %s4541, 64
          %s4543 = scalar_lea.vmem [#allocation5], %s4542
          %4544 = dma.done %s4540, 1024
        $region116: #{tpu_custom_call.1} parent=111 // pred_fallthru
          _
      $region112: #{tpu_custom_call.1} parent=5 // pred_fallthru
        _
    $region6: #{tpu_custom_call.1} parent=1 // loop_footer
      %s34 = sadd.s32 1, %s30
    $region7: #{tpu_custom_call.1} parent=1 // loop_footer_branch
      %29 = sbr.rel target = $region3
    $region8: #{tpu_custom_call.1} parent=1 // loop_exit
      _
    %4545 = vsyncpa [#allocation3], 1
    %s4546 = scalar_lea.sflag [#allocation3], 1
    %4547 = vsyncpa %s4546, 1
    %4548 = vsyncpa [#allocation4], 1
    %s4549 = scalar_lea.sflag [#allocation4], 1
    %4550 = vsyncpa %s4549, 1

</llo_original>
